<compile_context>
chip_gen: v5e
topology: v5e:2x2
jax: 0.10.0
libtpu: 0.0.40
codegen_flags: <defaults>
</compile_context>

<pallas_src>
import jax
import jax.numpy as jnp
from jax import lax
from jax.experimental import pallas as pl
from jax.experimental.pallas import tpu as pltpu

KSIZE = 3            # kernel_size = 3, stride = 1
PAD = KSIZE // 2     # = 1
HALO = 4 * PAD       # extra input rows per tile for two stacked 3x3 convs (= 4)
LANE = 128


def resblock_kernel(xa_ref, xb_ref, xres_ref, w1_ref, w2_ref, b1_ref, b2_ref,
                    out_ref, xbuf_ref, mid_ref):
    # xa_ref  : (1, TH,   W+2, Cp) bf16  main rows of the spatially padded input
    # xb_ref  : (1, HALO, W+2, Cp) bf16  bottom 4-row halo of the padded input
    # xres_ref: (1, TH,   W,   Cp) f32   aligned residual block
    # w*_ref  : (3, 3, Cp, Cp)     bf16  HWIO, BN scale pre-folded
    # b*_ref  : (1, Cp)            f32   folded BN bias
    # out_ref : (1, TH, W, Cp)
    # xbuf_ref: (TH+4, W+2, Cp)    bf16  scratch: halo'd input slab
    # mid_ref : (TH+2, W+2, Cp)    bf16  scratch: zero-side-padded intermediate
    _, TH, W, Cp = out_ref.shape
    rows1 = TH + 2 * PAD
    t = pl.program_id(1)
    n_t = pl.num_programs(1)

    # ---- assemble the (TH+4)-row halo'd input slab from the two pipelined blocks
    xbuf_ref[0:TH, :, :] = xa_ref[0]
    xbuf_ref[TH:TH + HALO, :, :] = xb_ref[0]

    # ---- conv1 (BN1 scale folded into w1): 9 shifted (rows1*W, Cp)@(Cp, Cp) matmuls
    acc1 = jnp.zeros((rows1 * W, Cp), jnp.float32)
    for ky in range(KSIZE):
        for kx in range(KSIZE):
            patch = xbuf_ref[ky:ky + rows1, kx:kx + W, :].reshape(rows1 * W, Cp)
            acc1 = acc1 + jnp.dot(patch, w1_ref[ky, kx],
                                  preferred_element_type=jnp.float32)

    # ---- BN1 bias + ReLU (f32), then bf16 for the second MXU pass
    y = jnp.maximum(acc1 + b1_ref[...], 0.0).astype(jnp.bfloat16)
    mid_ref[:, PAD:PAD + W, :] = y.reshape(rows1, W, Cp)

    # zero only the 1-px side columns (interior writes never touch them)
    zcol = jnp.zeros((rows1, PAD, Cp), mid_ref.dtype)
    mid_ref[:, 0:PAD, :] = zcol
    mid_ref[:, PAD + W:PAD + W + PAD, :] = zcol

    # top/bottom halo rows outside the image are conv2's zero padding
    @pl.when(t == 0)
    def _():
        mid_ref[0:1, :, :] = jnp.zeros((1, W + 2 * PAD, Cp), mid_ref.dtype)

    @pl.when(t == n_t - 1)
    def _():
        mid_ref[rows1 - 1:rows1, :, :] = jnp.zeros((1, W + 2 * PAD, Cp),
                                                   mid_ref.dtype)

    # ---- conv2 (BN2 scale folded into w2)
    acc2 = jnp.zeros((TH * W, Cp), jnp.float32)
    for ky in range(KSIZE):
        for kx in range(KSIZE):
            patch = mid_ref[ky:ky + TH, kx:kx + W, :].reshape(TH * W, Cp)
            acc2 = acc2 + jnp.dot(patch, w2_ref[ky, kx],
                                  preferred_element_type=jnp.float32)

    # ---- BN2 bias + residual add + output ReLU (all f32)
    z = acc2 + b2_ref[...]
    z = jnp.maximum(z + xres_ref[0].reshape(TH * W, Cp), 0.0)
    out_ref[...] = z.reshape(1, TH, W, Cp).astype(out_ref.dtype)


def resblock_forward(x_nhwc, w1_hwio, w2_hwio, scale1, bias1, scale2, bias2,
                     *, tile_h=8):
    N, H, W, Cin = x_nhwc.shape
    Cout = w1_hwio.shape[-1]
    assert Cin == Cout, "residual path (stride=1, no downsample) needs Cin == Cout"
    TH = min(tile_h, H)
    assert H % TH == 0 and TH % HALO == 0, "need H % TH == 0 and TH % 4 == 0"
    n_t = H // TH
    Cp = ((Cout + LANE - 1) // LANE) * LANE       # lane-dense channel count
    Wp = W + 2 * PAD
    f32 = jnp.float32

    # Fold BN scale into the conv weights (per output channel); keep biases.
    w1s = w1_hwio.astype(f32) * scale1.astype(f32)[None, None, None, :]
    w2s = w2_hwio.astype(f32) * scale2.astype(f32)[None, None, None, :]
    # Channel-pad to Cp and cast MXU operands to bf16.
    w1p = jnp.zeros((KSIZE, KSIZE, Cp, Cp), jnp.bfloat16)
    w1p = w1p.at[:, :, :Cin, :Cout].set(w1s.astype(jnp.bfloat16))
    w2p = jnp.zeros((KSIZE, KSIZE, Cp, Cp), jnp.bfloat16)
    w2p = w2p.at[:, :, :Cout, :Cout].set(w2s.astype(jnp.bfloat16))
    b1p = jnp.zeros((1, Cp), f32).at[0, :Cout].set(bias1.astype(f32))
    b2p = jnp.zeros((1, Cp), f32).at[0, :Cout].set(bias2.astype(f32))

    # bf16 spatially padded copy (2 rows / 1 col per side) for the MXU path,
    # and an aligned f32 copy for the residual add.
    xpad = jnp.pad(x_nhwc.astype(jnp.bfloat16),
                   ((0, 0), (2 * PAD, 2 * PAD), (PAD, PAD), (0, Cp - Cin)))
    xres = jnp.pad(x_nhwc.astype(f32), ((0, 0), (0, 0), (0, 0), (0, Cp - Cin)))

    out_p = pl.pallas_call(
        resblock_kernel,
        out_shape=jax.ShapeDtypeStruct((N, H, W, Cp), x_nhwc.dtype),
        grid_spec=pltpu.PrefetchScalarGridSpec(
            num_scalar_prefetch=0,
            grid=(N, n_t),
            in_specs=[
                # main TH-row slab of the padded input
                pl.BlockSpec((1, TH, Wp, Cp), lambda n, t: (n, t, 0, 0)),
                # 4-row bottom halo (overlaps the next tile's slab)
                pl.BlockSpec((1, HALO, Wp, Cp),
                             lambda n, t: (n, (t + 1) * (TH // HALO), 0, 0)),
                # aligned residual block (matches out_spec)
                pl.BlockSpec((1, TH, W, Cp), lambda n, t: (n, t, 0, 0)),
                pl.BlockSpec((KSIZE, KSIZE, Cp, Cp), lambda n, t: (0, 0, 0, 0)),
                pl.BlockSpec((KSIZE, KSIZE, Cp, Cp), lambda n, t: (0, 0, 0, 0)),
                pl.BlockSpec((1, Cp), lambda n, t: (0, 0)),
                pl.BlockSpec((1, Cp), lambda n, t: (0, 0)),
            ],
            out_specs=pl.BlockSpec((1, TH, W, Cp), lambda n, t: (n, t, 0, 0)),
            scratch_shapes=[
                pltpu.VMEM((TH + HALO, Wp, Cp), jnp.bfloat16),       # input slab
                pltpu.VMEM((TH + 2 * PAD, Wp, Cp), jnp.bfloat16),    # intermediate
            ],
        ),
        compiler_params=pltpu.CompilerParams(
            dimension_semantics=("parallel", "parallel"),
            vmem_limit_bytes=32 * 1024 * 1024),
    )(xpad, xpad, xres, w1p, w2p, b1p, b2p)

    return out_p[..., :Cout]


def ref_forward(x_nhwc, w1_hwio, w2_hwio, scale1, bias1, scale2, bias2):
    """Pure-JAX reference with the kernel's compute precision:
    bf16 MXU operands, f32 accumulation / BN-bias / ReLU / residual math."""
    dn = ("NHWC", "HWIO", "NHWC")
    f32 = jnp.float32
    w1b = (w1_hwio.astype(f32) * scale1.astype(f32)).astype(jnp.bfloat16)
    w2b = (w2_hwio.astype(f32) * scale2.astype(f32)).astype(jnp.bfloat16)
    y = lax.conv_general_dilated(x_nhwc.astype(jnp.bfloat16), w1b, (1, 1), "SAME",
                                 dimension_numbers=dn,
                                 preferred_element_type=f32)
    y = jnp.maximum(y + bias1.astype(f32), 0.0)
    z = lax.conv_general_dilated(y.astype(jnp.bfloat16), w2b, (1, 1), "SAME",
                                 dimension_numbers=dn,
                                 preferred_element_type=f32)
    z = z + bias2.astype(f32)
    return jnp.maximum(z + x_nhwc.astype(f32), 0.0)


if __name__ == "__main__":
    # Small shapes consistent with the module: in_channels == planes, stride=1.
    N, C, H, W = 2, 4, 16, 16  # NCHW, as PyTorch would see it

    key = jax.random.PRNGKey(0)
    kx, kw1, kw2 = jax.random.split(key, 3)

    # Input (NCHW like PyTorch) then convert to NHWC for the kernel.
    x_nchw = jax.random.normal(kx, (N, C, H, W), dtype=jnp.float32)
    x_nhwc = jnp.transpose(x_nchw, (0, 2, 3, 1))

    # PQConv weight init: torch.rand((out, in, k, k)) * 0.001  (OIHW -> HWIO)
    w1_oihw = jax.random.uniform(kw1, (C, C, KSIZE, KSIZE), jnp.float32) * 1e-3
    w2_oihw = jax.random.uniform(kw2, (C, C, KSIZE, KSIZE), jnp.float32) * 1e-3
    w1_hwio = jnp.transpose(w1_oihw, (2, 3, 1, 0))
    w2_hwio = jnp.transpose(w2_oihw, (2, 3, 1, 0))

    # BatchNorm2d defaults (weight=1, bias=0, running stats 0/1), eval mode,
    # folded into per-channel scale/bias.
    eps = 1e-5
    gamma = jnp.ones((C,), jnp.float32)
    beta = jnp.zeros((C,), jnp.float32)
    rmean = jnp.zeros((C,), jnp.float32)
    rvar = jnp.ones((C,), jnp.float32)
    scale = gamma / jnp.sqrt(rvar + eps)
    bias = beta - rmean * scale

    out_nhwc = resblock_forward(x_nhwc, w1_hwio, w2_hwio,
                                scale, bias, scale, bias)
    out_nhwc = jax.block_until_ready(out_nhwc)

    ref_nhwc = ref_forward(x_nhwc, w1_hwio, w2_hwio, scale, bias, scale, bias)
    assert out_nhwc.shape == (N, H, W, C)
    assert jnp.allclose(out_nhwc, ref_nhwc, atol=1e-4, rtol=1e-4), (
        float(jnp.max(jnp.abs(out_nhwc - ref_nhwc))))

    # Back to NCHW to match PyTorch output convention (not required, just tidy).
    out_nchw = jnp.transpose(out_nhwc, (0, 3, 1, 2))
    jax.block_until_ready(out_nchw)

    print("KERNEL_OK")
</pallas_src>

<mosaic_0001>
module attributes {stable_mosaic.version = 11 : i64} {
  func.func @resblock_kernel(%arg0: i32, %arg1: i32, %arg2: memref<1x8x18x128xbf16, #tpu.memory_space<vmem>>, %arg3: memref<1x4x18x128xbf16, #tpu.memory_space<vmem>>, %arg4: memref<1x8x16x128xf32, #tpu.memory_space<vmem>>, %arg5: memref<3x3x128x128xbf16, #tpu.memory_space<vmem>>, %arg6: memref<3x3x128x128xbf16, #tpu.memory_space<vmem>>, %arg7: memref<1x128xf32, #tpu.memory_space<vmem>>, %arg8: memref<1x128xf32, #tpu.memory_space<vmem>>, %arg9: memref<1x8x16x128xf32, #tpu.memory_space<vmem>>, %arg10: memref<12x18x128xbf16, #tpu.memory_space<vmem>>, %arg11: memref<10x18x128xbf16, #tpu.memory_space<vmem>>) attributes {dimension_semantics = [#tpu.dimension_semantics<parallel>, #tpu.dimension_semantics<parallel>], iteration_bounds = array<i64: 2, 2>, scalar_prefetch = 0 : i64, scratch_operands = 2 : i64, tpu.core_type = #tpu.core_type<tc>, window_params = [{transform_indices = @transform_0, window_bounds = array<i64: 1, 8, 18, 128>}, {transform_indices = @transform_1, window_bounds = array<i64: 1, 4, 18, 128>}, {transform_indices = @transform_2, window_bounds = array<i64: 1, 8, 16, 128>}, {pipeline_mode = #tpu.pipeline_mode<synchronous>, transform_indices = @transform_3, window_bounds = array<i64: 3, 3, 128, 128>}, {pipeline_mode = #tpu.pipeline_mode<synchronous>, transform_indices = @transform_4, window_bounds = array<i64: 3, 3, 128, 128>}, {pipeline_mode = #tpu.pipeline_mode<synchronous>, transform_indices = @transform_5, window_bounds = array<i64: 1, 128>}, {pipeline_mode = #tpu.pipeline_mode<synchronous>, transform_indices = @transform_6, window_bounds = array<i64: 1, 128>}, {transform_indices = @transform_7, window_bounds = array<i64: 1, 8, 16, 128>}]} {
    %c0 = arith.constant 0 : index
    %c0_0 = arith.constant 0 : index
    %c0_1 = arith.constant 0 : index
    %c0_2 = arith.constant 0 : index
    %0 = vector.load %arg2[%c0, %c0_0, %c0_1, %c0_2] : memref<1x8x18x128xbf16, #tpu.memory_space<vmem>>, vector<1x8x18x128xbf16>
    %1 = vector.shape_cast %0 : vector<1x8x18x128xbf16> to vector<8x18x128xbf16>
    %c0_3 = arith.constant 0 : index
    %c0_4 = arith.constant 0 : index
    %c0_5 = arith.constant 0 : index
    %2 = vector.load %arg10[%c0_3, %c0_4, %c0_5] : memref<12x18x128xbf16, #tpu.memory_space<vmem>>, vector<8x18x128xbf16>
    tpu.vector_store %arg10[%c0_3, %c0_4, %c0_5], %1 {strides = array<i32>} : memref<12x18x128xbf16, #tpu.memory_space<vmem>>, vector<8x18x128xbf16>,
    %c0_6 = arith.constant 0 : index
    %c0_7 = arith.constant 0 : index
    %c0_8 = arith.constant 0 : index
    %c0_9 = arith.constant 0 : index
    %3 = vector.load %arg3[%c0_6, %c0_7, %c0_8, %c0_9] : memref<1x4x18x128xbf16, #tpu.memory_space<vmem>>, vector<1x4x18x128xbf16>
    %4 = vector.shape_cast %3 : vector<1x4x18x128xbf16> to vector<4x18x128xbf16>
    %c8 = arith.constant 8 : index
    %c0_10 = arith.constant 0 : index
    %c0_11 = arith.constant 0 : index
    %5 = vector.load %arg10[%c8, %c0_10, %c0_11] : memref<12x18x128xbf16, #tpu.memory_space<vmem>>, vector<4x18x128xbf16>
    tpu.vector_store %arg10[%c8, %c0_10, %c0_11], %4 {strides = array<i32>} : memref<12x18x128xbf16, #tpu.memory_space<vmem>>, vector<4x18x128xbf16>,
    %cst = arith.constant 0.000000e+00 : f32
    %6 = vector.broadcast %cst : f32 to vector<160x128xf32>
    %c0_12 = arith.constant 0 : index
    %c0_13 = arith.constant 0 : index
    %c0_14 = arith.constant 0 : index
    %7 = vector.load %arg10[%c0_12, %c0_13, %c0_14] : memref<12x18x128xbf16, #tpu.memory_space<vmem>>, vector<10x16x128xbf16>
    %8 = vector.shape_cast %7 : vector<10x16x128xbf16> to vector<160x128xbf16>
    %c0_15 = arith.constant 0 : index
    %c0_16 = arith.constant 0 : index
    %c0_17 = arith.constant 0 : index
    %c0_18 = arith.constant 0 : index
    %9 = vector.load %arg5[%c0_15, %c0_16, %c0_17, %c0_18] : memref<3x3x128x128xbf16, #tpu.memory_space<vmem>>, vector<1x1x128x128xbf16>
    %10 = vector.shape_cast %9 : vector<1x1x128x128xbf16> to vector<128x128xbf16>
    %cst_19 = arith.constant dense<0.000000e+00> : vector<160x128xf32>
    %11 = tpu.matmul %8, %10, %cst_19 {dimension_numbers = #tpu.dot_dimension_numbers<[1], [0], [0], [1], [0, 0, 1, 1], [], []>} : vector<160x128xbf16>, vector<128x128xbf16>, vector<160x128xf32> -> vector<160x128xf32>
    %12 = arith.addf %6, %11 : vector<160x128xf32>
    %c0_20 = arith.constant 0 : index
    %c1 = arith.constant 1 : index
    %c0_21 = arith.constant 0 : index
    %13 = vector.load %arg10[%c0_20, %c1, %c0_21] : memref<12x18x128xbf16, #tpu.memory_space<vmem>>, vector<10x16x128xbf16>
    %14 = vector.shape_cast %13 : vector<10x16x128xbf16> to vector<160x128xbf16>
    %c0_22 = arith.constant 0 : index
    %c1_23 = arith.constant 1 : index
    %c0_24 = arith.constant 0 : index
    %c0_25 = arith.constant 0 : index
    %15 = vector.load %arg5[%c0_22, %c1_23, %c0_24, %c0_25] : memref<3x3x128x128xbf16, #tpu.memory_space<vmem>>, vector<1x1x128x128xbf16>
    %16 = vector.shape_cast %15 : vector<1x1x128x128xbf16> to vector<128x128xbf16>
    %cst_26 = arith.constant dense<0.000000e+00> : vector<160x128xf32>
    %17 = tpu.matmul %14, %16, %cst_26 {dimension_numbers = #tpu.dot_dimension_numbers<[1], [0], [0], [1], [0, 0, 1, 1], [], []>} : vector<160x128xbf16>, vector<128x128xbf16>, vector<160x128xf32> -> vector<160x128xf32>
    %18 = arith.addf %12, %17 : vector<160x128xf32>
    %c0_27 = arith.constant 0 : index
    %c2 = arith.constant 2 : index
    %c0_28 = arith.constant 0 : index
    %19 = vector.load %arg10[%c0_27, %c2, %c0_28] : memref<12x18x128xbf16, #tpu.memory_space<vmem>>, vector<10x16x128xbf16>
    %20 = vector.shape_cast %19 : vector<10x16x128xbf16> to vector<160x128xbf16>
    %c0_29 = arith.constant 0 : index
    %c2_30 = arith.constant 2 : index
    %c0_31 = arith.constant 0 : index
    %c0_32 = arith.constant 0 : index
    %21 = vector.load %arg5[%c0_29, %c2_30, %c0_31, %c0_32] : memref<3x3x128x128xbf16, #tpu.memory_space<vmem>>, vector<1x1x128x128xbf16>
    %22 = vector.shape_cast %21 : vector<1x1x128x128xbf16> to vector<128x128xbf16>
    %cst_33 = arith.constant dense<0.000000e+00> : vector<160x128xf32>
    %23 = tpu.matmul %20, %22, %cst_33 {dimension_numbers = #tpu.dot_dimension_numbers<[1], [0], [0], [1], [0, 0, 1, 1], [], []>} : vector<160x128xbf16>, vector<128x128xbf16>, vector<160x128xf32> -> vector<160x128xf32>
    %24 = arith.addf %18, %23 : vector<160x128xf32>
    %c1_34 = arith.constant 1 : index
    %c0_35 = arith.constant 0 : index
    %c0_36 = arith.constant 0 : index
    %25 = vector.load %arg10[%c1_34, %c0_35, %c0_36] : memref<12x18x128xbf16, #tpu.memory_space<vmem>>, vector<10x16x128xbf16>
    %26 = vector.shape_cast %25 : vector<10x16x128xbf16> to vector<160x128xbf16>
    %c1_37 = arith.constant 1 : index
    %c0_38 = arith.constant 0 : index
    %c0_39 = arith.constant 0 : index
    %c0_40 = arith.constant 0 : index
    %27 = vector.load %arg5[%c1_37, %c0_38, %c0_39, %c0_40] : memref<3x3x128x128xbf16, #tpu.memory_space<vmem>>, vector<1x1x128x128xbf16>
    %28 = vector.shape_cast %27 : vector<1x1x128x128xbf16> to vector<128x128xbf16>
    %cst_41 = arith.constant dense<0.000000e+00> : vector<160x128xf32>
    %29 = tpu.matmul %26, %28, %cst_41 {dimension_numbers = #tpu.dot_dimension_numbers<[1], [0], [0], [1], [0, 0, 1, 1], [], []>} : vector<160x128xbf16>, vector<128x128xbf16>, vector<160x128xf32> -> vector<160x128xf32>
    %30 = arith.addf %24, %29 : vector<160x128xf32>
    %c1_42 = arith.constant 1 : index
    %c1_43 = arith.constant 1 : index
    %c0_44 = arith.constant 0 : index
    %31 = vector.load %arg10[%c1_42, %c1_43, %c0_44] : memref<12x18x128xbf16, #tpu.memory_space<vmem>>, vector<10x16x128xbf16>
    %32 = vector.shape_cast %31 : vector<10x16x128xbf16> to vector<160x128xbf16>
    %c1_45 = arith.constant 1 : index
    %c1_46 = arith.constant 1 : index
    %c0_47 = arith.constant 0 : index
    %c0_48 = arith.constant 0 : index
    %33 = vector.load %arg5[%c1_45, %c1_46, %c0_47, %c0_48] : memref<3x3x128x128xbf16, #tpu.memory_space<vmem>>, vector<1x1x128x128xbf16>
    %34 = vector.shape_cast %33 : vector<1x1x128x128xbf16> to vector<128x128xbf16>
    %cst_49 = arith.constant dense<0.000000e+00> : vector<160x128xf32>
    %35 = tpu.matmul %32, %34, %cst_49 {dimension_numbers = #tpu.dot_dimension_numbers<[1], [0], [0], [1], [0, 0, 1, 1], [], []>} : vector<160x128xbf16>, vector<128x128xbf16>, vector<160x128xf32> -> vector<160x128xf32>
    %36 = arith.addf %30, %35 : vector<160x128xf32>
    %c1_50 = arith.constant 1 : index
    %c2_51 = arith.constant 2 : index
    %c0_52 = arith.constant 0 : index
    %37 = vector.load %arg10[%c1_50, %c2_51, %c0_52] : memref<12x18x128xbf16, #tpu.memory_space<vmem>>, vector<10x16x128xbf16>
    %38 = vector.shape_cast %37 : vector<10x16x128xbf16> to vector<160x128xbf16>
    %c1_53 = arith.constant 1 : index
    %c2_54 = arith.constant 2 : index
    %c0_55 = arith.constant 0 : index
    %c0_56 = arith.constant 0 : index
    %39 = vector.load %arg5[%c1_53, %c2_54, %c0_55, %c0_56] : memref<3x3x128x128xbf16, #tpu.memory_space<vmem>>, vector<1x1x128x128xbf16>
    %40 = vector.shape_cast %39 : vector<1x1x128x128xbf16> to vector<128x128xbf16>
    %cst_57 = arith.constant dense<0.000000e+00> : vector<160x128xf32>
    %41 = tpu.matmul %38, %40, %cst_57 {dimension_numbers = #tpu.dot_dimension_numbers<[1], [0], [0], [1], [0, 0, 1, 1], [], []>} : vector<160x128xbf16>, vector<128x128xbf16>, vector<160x128xf32> -> vector<160x128xf32>
    %42 = arith.addf %36, %41 : vector<160x128xf32>
    %c2_58 = arith.constant 2 : index
    %c0_59 = arith.constant 0 : index
    %c0_60 = arith.constant 0 : index
    %43 = vector.load %arg10[%c2_58, %c0_59, %c0_60] : memref<12x18x128xbf16, #tpu.memory_space<vmem>>, vector<10x16x128xbf16>
    %44 = vector.shape_cast %43 : vector<10x16x128xbf16> to vector<160x128xbf16>
    %c2_61 = arith.constant 2 : index
    %c0_62 = arith.constant 0 : index
    %c0_63 = arith.constant 0 : index
    %c0_64 = arith.constant 0 : index
    %45 = vector.load %arg5[%c2_61, %c0_62, %c0_63, %c0_64] : memref<3x3x128x128xbf16, #tpu.memory_space<vmem>>, vector<1x1x128x128xbf16>
    %46 = vector.shape_cast %45 : vector<1x1x128x128xbf16> to vector<128x128xbf16>
    %cst_65 = arith.constant dense<0.000000e+00> : vector<160x128xf32>
    %47 = tpu.matmul %44, %46, %cst_65 {dimension_numbers = #tpu.dot_dimension_numbers<[1], [0], [0], [1], [0, 0, 1, 1], [], []>} : vector<160x128xbf16>, vector<128x128xbf16>, vector<160x128xf32> -> vector<160x128xf32>
    %48 = arith.addf %42, %47 : vector<160x128xf32>
    %c2_66 = arith.constant 2 : index
    %c1_67 = arith.constant 1 : index
    %c0_68 = arith.constant 0 : index
    %49 = vector.load %arg10[%c2_66, %c1_67, %c0_68] : memref<12x18x128xbf16, #tpu.memory_space<vmem>>, vector<10x16x128xbf16>
    %50 = vector.shape_cast %49 : vector<10x16x128xbf16> to vector<160x128xbf16>
    %c2_69 = arith.constant 2 : index
    %c1_70 = arith.constant 1 : index
    %c0_71 = arith.constant 0 : index
    %c0_72 = arith.constant 0 : index
    %51 = vector.load %arg5[%c2_69, %c1_70, %c0_71, %c0_72] : memref<3x3x128x128xbf16, #tpu.memory_space<vmem>>, vector<1x1x128x128xbf16>
    %52 = vector.shape_cast %51 : vector<1x1x128x128xbf16> to vector<128x128xbf16>
    %cst_73 = arith.constant dense<0.000000e+00> : vector<160x128xf32>
    %53 = tpu.matmul %50, %52, %cst_73 {dimension_numbers = #tpu.dot_dimension_numbers<[1], [0], [0], [1], [0, 0, 1, 1], [], []>} : vector<160x128xbf16>, vector<128x128xbf16>, vector<160x128xf32> -> vector<160x128xf32>
    %54 = arith.addf %48, %53 : vector<160x128xf32>
    %c2_74 = arith.constant 2 : index
    %c2_75 = arith.constant 2 : index
    %c0_76 = arith.constant 0 : index
    %55 = vector.load %arg10[%c2_74, %c2_75, %c0_76] : memref<12x18x128xbf16, #tpu.memory_space<vmem>>, vector<10x16x128xbf16>
    %56 = vector.shape_cast %55 : vector<10x16x128xbf16> to vector<160x128xbf16>
    %c2_77 = arith.constant 2 : index
    %c2_78 = arith.constant 2 : index
    %c0_79 = arith.constant 0 : index
    %c0_80 = arith.constant 0 : index
    %57 = vector.load %arg5[%c2_77, %c2_78, %c0_79, %c0_80] : memref<3x3x128x128xbf16, #tpu.memory_space<vmem>>, vector<1x1x128x128xbf16>
    %58 = vector.shape_cast %57 : vector<1x1x128x128xbf16> to vector<128x128xbf16>
    %cst_81 = arith.constant dense<0.000000e+00> : vector<160x128xf32>
    %59 = tpu.matmul %56, %58, %cst_81 {dimension_numbers = #tpu.dot_dimension_numbers<[1], [0], [0], [1], [0, 0, 1, 1], [], []>} : vector<160x128xbf16>, vector<128x128xbf16>, vector<160x128xf32> -> vector<160x128xf32>
    %60 = arith.addf %54, %59 : vector<160x128xf32>
    %c0_82 = arith.constant 0 : index
    %c0_83 = arith.constant 0 : index
    %61 = vector.load %arg7[%c0_82, %c0_83] : memref<1x128xf32, #tpu.memory_space<vmem>>, vector<1x128xf32>
    %62 = vector.broadcast %61 : vector<1x128xf32> to vector<160x128xf32>
    %63 = arith.addf %60, %62 : vector<160x128xf32>
    %cst_84 = arith.constant 0.000000e+00 : f32
    %64 = vector.broadcast %cst_84 : f32 to vector<160x128xf32>
    %65 = arith.maximumf %63, %64 : vector<160x128xf32>
    %66 = arith.truncf %65 : vector<160x128xf32> to vector<160x128xbf16>
    %67 = vector.shape_cast %66 : vector<160x128xbf16> to vector<10x16x128xbf16>
    %c0_85 = arith.constant 0 : index
    %c1_86 = arith.constant 1 : index
    %c0_87 = arith.constant 0 : index
    %68 = vector.load %arg11[%c0_85, %c1_86, %c0_87] : memref<10x18x128xbf16, #tpu.memory_space<vmem>>, vector<10x16x128xbf16>
    tpu.vector_store %arg11[%c0_85, %c1_86, %c0_87], %67 {strides = array<i32>} : memref<10x18x128xbf16, #tpu.memory_space<vmem>>, vector<10x16x128xbf16>,
    %cst_88 = arith.constant 0.000000e+00 : bf16
    %69 = vector.broadcast %cst_88 : bf16 to vector<10x1x128xbf16>
    %c0_89 = arith.constant 0 : index
    %c0_90 = arith.constant 0 : index
    %c0_91 = arith.constant 0 : index
    %70 = vector.load %arg11[%c0_89, %c0_90, %c0_91] : memref<10x18x128xbf16, #tpu.memory_space<vmem>>, vector<10x1x128xbf16>
    tpu.vector_store %arg11[%c0_89, %c0_90, %c0_91], %69 {strides = array<i32>} : memref<10x18x128xbf16, #tpu.memory_space<vmem>>, vector<10x1x128xbf16>,
    %c0_92 = arith.constant 0 : index
    %c17 = arith.constant 17 : index
    %c0_93 = arith.constant 0 : index
    %71 = vector.load %arg11[%c0_92, %c17, %c0_93] : memref<10x18x128xbf16, #tpu.memory_space<vmem>>, vector<10x1x128xbf16>
    tpu.vector_store %arg11[%c0_92, %c17, %c0_93], %69 {strides = array<i32>} : memref<10x18x128xbf16, #tpu.memory_space<vmem>>, vector<10x1x128xbf16>,
    %c0_i32 = arith.constant 0 : i32
    %72 = arith.cmpi eq, %arg1, %c0_i32 : i32
    %73 = arith.extui %72 : i1 to i32
    %c0_i32_94 = arith.constant 0 : i32
    %74 = arith.cmpi ne, %73, %c0_i32_94 : i32
    scf.if %74 {
      %cst_180 = arith.constant 0.000000e+00 : bf16
      %144 = vector.broadcast %cst_180 : bf16 to vector<1x18x128xbf16>
      %c0_181 = arith.constant 0 : index
      %c0_182 = arith.constant 0 : index
      %c0_183 = arith.constant 0 : index
      %145 = vector.load %arg11[%c0_181, %c0_182, %c0_183] : memref<10x18x128xbf16, #tpu.memory_space<vmem>>, vector<1x18x128xbf16>
      tpu.vector_store %arg11[%c0_181, %c0_182, %c0_183], %144 {strides = array<i32>} : memref<10x18x128xbf16, #tpu.memory_space<vmem>>, vector<1x18x128xbf16>,
    } else {
    }
    %c1_i32 = arith.constant 1 : i32
    %75 = arith.cmpi eq, %arg1, %c1_i32 : i32
    %76 = arith.extui %75 : i1 to i32
    %c0_i32_95 = arith.constant 0 : i32
    %77 = arith.cmpi ne, %76, %c0_i32_95 : i32
    scf.if %77 {
      %cst_180 = arith.constant 0.000000e+00 : bf16
      %144 = vector.broadcast %cst_180 : bf16 to vector<1x18x128xbf16>
      %c9 = arith.constant 9 : index
      %c0_181 = arith.constant 0 : index
      %c0_182 = arith.constant 0 : index
      %145 = vector.load %arg11[%c9, %c0_181, %c0_182] : memref<10x18x128xbf16, #tpu.memory_space<vmem>>, vector<1x18x128xbf16>
      tpu.vector_store %arg11[%c9, %c0_181, %c0_182], %144 {strides = array<i32>} : memref<10x18x128xbf16, #tpu.memory_space<vmem>>, vector<1x18x128xbf16>,
    } else {
    }
    %cst_96 = arith.constant 0.000000e+00 : f32
    %78 = vector.broadcast %cst_96 : f32 to vector<128x128xf32>
    %c0_97 = arith.constant 0 : index
    %c0_98 = arith.constant 0 : index
    %c0_99 = arith.constant 0 : index
    %79 = vector.load %arg11[%c0_97, %c0_98, %c0_99] : memref<10x18x128xbf16, #tpu.memory_space<vmem>>, vector<8x16x128xbf16>
    %80 = vector.shape_cast %79 : vector<8x16x128xbf16> to vector<128x128xbf16>
    %c0_100 = arith.constant 0 : index
    %c0_101 = arith.constant 0 : index
    %c0_102 = arith.constant 0 : index
    %c0_103 = arith.constant 0 : index
    %81 = vector.load %arg6[%c0_100, %c0_101, %c0_102, %c0_103] : memref<3x3x128x128xbf16, #tpu.memory_space<vmem>>, vector<1x1x128x128xbf16>
    %82 = vector.shape_cast %81 : vector<1x1x128x128xbf16> to vector<128x128xbf16>
    %cst_104 = arith.constant dense<0.000000e+00> : vector<128x128xf32>
    %83 = tpu.matmul %80, %82, %cst_104 {dimension_numbers = #tpu.dot_dimension_numbers<[1], [0], [0], [1], [0, 0, 1, 1], [], []>} : vector<128x128xbf16>, vector<128x128xbf16>, vector<128x128xf32> -> vector<128x128xf32>
    %84 = arith.addf %78, %83 : vector<128x128xf32>
    %c0_105 = arith.constant 0 : index
    %c1_106 = arith.constant 1 : index
    %c0_107 = arith.constant 0 : index
    %85 = vector.load %arg11[%c0_105, %c1_106, %c0_107] : memref<10x18x128xbf16, #tpu.memory_space<vmem>>, vector<8x16x128xbf16>
    %86 = vector.shape_cast %85 : vector<8x16x128xbf16> to vector<128x128xbf16>
    %c0_108 = arith.constant 0 : index
    %c1_109 = arith.constant 1 : index
    %c0_110 = arith.constant 0 : index
    %c0_111 = arith.constant 0 : index
    %87 = vector.load %arg6[%c0_108, %c1_109, %c0_110, %c0_111] : memref<3x3x128x128xbf16, #tpu.memory_space<vmem>>, vector<1x1x128x128xbf16>
    %88 = vector.shape_cast %87 : vector<1x1x128x128xbf16> to vector<128x128xbf16>
    %cst_112 = arith.constant dense<0.000000e+00> : vector<128x128xf32>
    %89 = tpu.matmul %86, %88, %cst_112 {dimension_numbers = #tpu.dot_dimension_numbers<[1], [0], [0], [1], [0, 0, 1, 1], [], []>} : vector<128x128xbf16>, vector<128x128xbf16>, vector<128x128xf32> -> vector<128x128xf32>
    %90 = arith.addf %84, %89 : vector<128x128xf32>
    %c0_113 = arith.constant 0 : index
    %c2_114 = arith.constant 2 : index
    %c0_115 = arith.constant 0 : index
    %91 = vector.load %arg11[%c0_113, %c2_114, %c0_115] : memref<10x18x128xbf16, #tpu.memory_space<vmem>>, vector<8x16x128xbf16>
    %92 = vector.shape_cast %91 : vector<8x16x128xbf16> to vector<128x128xbf16>
    %c0_116 = arith.constant 0 : index
    %c2_117 = arith.constant 2 : index
    %c0_118 = arith.constant 0 : index
    %c0_119 = arith.constant 0 : index
    %93 = vector.load %arg6[%c0_116, %c2_117, %c0_118, %c0_119] : memref<3x3x128x128xbf16, #tpu.memory_space<vmem>>, vector<1x1x128x128xbf16>
    %94 = vector.shape_cast %93 : vector<1x1x128x128xbf16> to vector<128x128xbf16>
    %cst_120 = arith.constant dense<0.000000e+00> : vector<128x128xf32>
    %95 = tpu.matmul %92, %94, %cst_120 {dimension_numbers = #tpu.dot_dimension_numbers<[1], [0], [0], [1], [0, 0, 1, 1], [], []>} : vector<128x128xbf16>, vector<128x128xbf16>, vector<128x128xf32> -> vector<128x128xf32>
    %96 = arith.addf %90, %95 : vector<128x128xf32>
    %c1_121 = arith.constant 1 : index
    %c0_122 = arith.constant 0 : index
    %c0_123 = arith.constant 0 : index
    %97 = vector.load %arg11[%c1_121, %c0_122, %c0_123] : memref<10x18x128xbf16, #tpu.memory_space<vmem>>, vector<8x16x128xbf16>
    %98 = vector.shape_cast %97 : vector<8x16x128xbf16> to vector<128x128xbf16>
    %c1_124 = arith.constant 1 : index
    %c0_125 = arith.constant 0 : index
    %c0_126 = arith.constant 0 : index
    %c0_127 = arith.constant 0 : index
    %99 = vector.load %arg6[%c1_124, %c0_125, %c0_126, %c0_127] : memref<3x3x128x128xbf16, #tpu.memory_space<vmem>>, vector<1x1x128x128xbf16>
    %100 = vector.shape_cast %99 : vector<1x1x128x128xbf16> to vector<128x128xbf16>
    %cst_128 = arith.constant dense<0.000000e+00> : vector<128x128xf32>
    %101 = tpu.matmul %98, %100, %cst_128 {dimension_numbers = #tpu.dot_dimension_numbers<[1], [0], [0], [1], [0, 0, 1, 1], [], []>} : vector<128x128xbf16>, vector<128x128xbf16>, vector<128x128xf32> -> vector<128x128xf32>
    %102 = arith.addf %96, %101 : vector<128x128xf32>
    %c1_129 = arith.constant 1 : index
    %c1_130 = arith.constant 1 : index
    %c0_131 = arith.constant 0 : index
    %103 = vector.load %arg11[%c1_129, %c1_130, %c0_131] : memref<10x18x128xbf16, #tpu.memory_space<vmem>>, vector<8x16x128xbf16>
    %104 = vector.shape_cast %103 : vector<8x16x128xbf16> to vector<128x128xbf16>
    %c1_132 = arith.constant 1 : index
    %c1_133 = arith.constant 1 : index
    %c0_134 = arith.constant 0 : index
    %c0_135 = arith.constant 0 : index
    %105 = vector.load %arg6[%c1_132, %c1_133, %c0_134, %c0_135] : memref<3x3x128x128xbf16, #tpu.memory_space<vmem>>, vector<1x1x128x128xbf16>
    %106 = vector.shape_cast %105 : vector<1x1x128x128xbf16> to vector<128x128xbf16>
    %cst_136 = arith.constant dense<0.000000e+00> : vector<128x128xf32>
    %107 = tpu.matmul %104, %106, %cst_136 {dimension_numbers = #tpu.dot_dimension_numbers<[1], [0], [0], [1], [0, 0, 1, 1], [], []>} : vector<128x128xbf16>, vector<128x128xbf16>, vector<128x128xf32> -> vector<128x128xf32>
    %108 = arith.addf %102, %107 : vector<128x128xf32>
    %c1_137 = arith.constant 1 : index
    %c2_138 = arith.constant 2 : index
    %c0_139 = arith.constant 0 : index
    %109 = vector.load %arg11[%c1_137, %c2_138, %c0_139] : memref<10x18x128xbf16, #tpu.memory_space<vmem>>, vector<8x16x128xbf16>
    %110 = vector.shape_cast %109 : vector<8x16x128xbf16> to vector<128x128xbf16>
    %c1_140 = arith.constant 1 : index
    %c2_141 = arith.constant 2 : index
    %c0_142 = arith.constant 0 : index
    %c0_143 = arith.constant 0 : index
    %111 = vector.load %arg6[%c1_140, %c2_141, %c0_142, %c0_143] : memref<3x3x128x128xbf16, #tpu.memory_space<vmem>>, vector<1x1x128x128xbf16>
    %112 = vector.shape_cast %111 : vector<1x1x128x128xbf16> to vector<128x128xbf16>
    %cst_144 = arith.constant dense<0.000000e+00> : vector<128x128xf32>
    %113 = tpu.matmul %110, %112, %cst_144 {dimension_numbers = #tpu.dot_dimension_numbers<[1], [0], [0], [1], [0, 0, 1, 1], [], []>} : vector<128x128xbf16>, vector<128x128xbf16>, vector<128x128xf32> -> vector<128x128xf32>
    %114 = arith.addf %108, %113 : vector<128x128xf32>
    %c2_145 = arith.constant 2 : index
    %c0_146 = arith.constant 0 : index
    %c0_147 = arith.constant 0 : index
    %115 = vector.load %arg11[%c2_145, %c0_146, %c0_147] : memref<10x18x128xbf16, #tpu.memory_space<vmem>>, vector<8x16x128xbf16>
    %116 = vector.shape_cast %115 : vector<8x16x128xbf16> to vector<128x128xbf16>
    %c2_148 = arith.constant 2 : index
    %c0_149 = arith.constant 0 : index
    %c0_150 = arith.constant 0 : index
    %c0_151 = arith.constant 0 : index
    %117 = vector.load %arg6[%c2_148, %c0_149, %c0_150, %c0_151] : memref<3x3x128x128xbf16, #tpu.memory_space<vmem>>, vector<1x1x128x128xbf16>
    %118 = vector.shape_cast %117 : vector<1x1x128x128xbf16> to vector<128x128xbf16>
    %cst_152 = arith.constant dense<0.000000e+00> : vector<128x128xf32>
    %119 = tpu.matmul %116, %118, %cst_152 {dimension_numbers = #tpu.dot_dimension_numbers<[1], [0], [0], [1], [0, 0, 1, 1], [], []>} : vector<128x128xbf16>, vector<128x128xbf16>, vector<128x128xf32> -> vector<128x128xf32>
    %120 = arith.addf %114, %119 : vector<128x128xf32>
    %c2_153 = arith.constant 2 : index
    %c1_154 = arith.constant 1 : index
    %c0_155 = arith.constant 0 : index
    %121 = vector.load %arg11[%c2_153, %c1_154, %c0_155] : memref<10x18x128xbf16, #tpu.memory_space<vmem>>, vector<8x16x128xbf16>
    %122 = vector.shape_cast %121 : vector<8x16x128xbf16> to vector<128x128xbf16>
    %c2_156 = arith.constant 2 : index
    %c1_157 = arith.constant 1 : index
    %c0_158 = arith.constant 0 : index
    %c0_159 = arith.constant 0 : index
    %123 = vector.load %arg6[%c2_156, %c1_157, %c0_158, %c0_159] : memref<3x3x128x128xbf16, #tpu.memory_space<vmem>>, vector<1x1x128x128xbf16>
    %124 = vector.shape_cast %123 : vector<1x1x128x128xbf16> to vector<128x128xbf16>
    %cst_160 = arith.constant dense<0.000000e+00> : vector<128x128xf32>
    %125 = tpu.matmul %122, %124, %cst_160 {dimension_numbers = #tpu.dot_dimension_numbers<[1], [0], [0], [1], [0, 0, 1, 1], [], []>} : vector<128x128xbf16>, vector<128x128xbf16>, vector<128x128xf32> -> vector<128x128xf32>
    %126 = arith.addf %120, %125 : vector<128x128xf32>
    %c2_161 = arith.constant 2 : index
    %c2_162 = arith.constant 2 : index
    %c0_163 = arith.constant 0 : index
    %127 = vector.load %arg11[%c2_161, %c2_162, %c0_163] : memref<10x18x128xbf16, #tpu.memory_space<vmem>>, vector<8x16x128xbf16>
    %128 = vector.shape_cast %127 : vector<8x16x128xbf16> to vector<128x128xbf16>
    %c2_164 = arith.constant 2 : index
    %c2_165 = arith.constant 2 : index
    %c0_166 = arith.constant 0 : index
    %c0_167 = arith.constant 0 : index
    %129 = vector.load %arg6[%c2_164, %c2_165, %c0_166, %c0_167] : memref<3x3x128x128xbf16, #tpu.memory_space<vmem>>, vector<1x1x128x128xbf16>
    %130 = vector.shape_cast %129 : vector<1x1x128x128xbf16> to vector<128x128xbf16>
    %cst_168 = arith.constant dense<0.000000e+00> : vector<128x128xf32>
    %131 = tpu.matmul %128, %130, %cst_168 {dimension_numbers = #tpu.dot_dimension_numbers<[1], [0], [0], [1], [0, 0, 1, 1], [], []>} : vector<128x128xbf16>, vector<128x128xbf16>, vector<128x128xf32> -> vector<128x128xf32>
    %132 = arith.addf %126, %131 : vector<128x128xf32>
    %c0_169 = arith.constant 0 : index
    %c0_170 = arith.constant 0 : index
    %133 = vector.load %arg8[%c0_169, %c0_170] : memref<1x128xf32, #tpu.memory_space<vmem>>, vector<1x128xf32>
    %134 = vector.broadcast %133 : vector<1x128xf32> to vector<128x128xf32>
    %135 = arith.addf %132, %134 : vector<128x128xf32>
    %c0_171 = arith.constant 0 : index
    %c0_172 = arith.constant 0 : index
    %c0_173 = arith.constant 0 : index
    %c0_174 = arith.constant 0 : index
    %136 = vector.load %arg4[%c0_171, %c0_172, %c0_173, %c0_174] : memref<1x8x16x128xf32, #tpu.memory_space<vmem>>, vector<1x8x16x128xf32>
    %137 = vector.shape_cast %136 : vector<1x8x16x128xf32> to vector<8x16x128xf32>
    %138 = vector.shape_cast %137 : vector<8x16x128xf32> to vector<128x128xf32>
    %139 = arith.addf %135, %138 : vector<128x128xf32>
    %cst_175 = arith.constant 0.000000e+00 : f32
    %140 = vector.broadcast %cst_175 : f32 to vector<128x128xf32>
    %141 = arith.maximumf %139, %140 : vector<128x128xf32>
    %142 = vector.shape_cast %141 : vector<128x128xf32> to vector<1x8x16x128xf32>
    %c0_176 = arith.constant 0 : index
    %c0_177 = arith.constant 0 : index
    %c0_178 = arith.constant 0 : index
    %c0_179 = arith.constant 0 : index
    %143 = vector.load %arg9[%c0_176, %c0_177, %c0_178, %c0_179] : memref<1x8x16x128xf32, #tpu.memory_space<vmem>>, vector<1x8x16x128xf32>
    tpu.vector_store %arg9[%c0_176, %c0_177, %c0_178, %c0_179], %142 {strides = array<i32>} : memref<1x8x16x128xf32, #tpu.memory_space<vmem>>, vector<1x8x16x128xf32>,
    return
  }
  func.func @transform_0(%arg0: i32, %arg1: i32) -> (i32, i32, i32, i32) {
    %c0_i32 = arith.constant 0 : i32
    %c0_i32_0 = arith.constant 0 : i32
    %c0_i32_1 = arith.constant 0 : i32
    return %arg0, %arg1, %c0_i32, %c0_i32_0 : i32, i32, i32, i32
  }
  func.func @transform_1(%arg0: i32, %arg1: i32) -> (i32, i32, i32, i32) {
    %c1_i32 = arith.constant 1 : i32
    %0 = arith.addi %arg1, %c1_i32 : i32
    %c2_i32 = arith.constant 2 : i32
    %1 = arith.muli %0, %c2_i32 : i32
    %c0_i32 = arith.constant 0 : i32
    %c0_i32_0 = arith.constant 0 : i32
    %c0_i32_1 = arith.constant 0 : i32
    return %arg0, %1, %c0_i32, %c0_i32_0 : i32, i32, i32, i32
  }
  func.func @transform_2(%arg0: i32, %arg1: i32) -> (i32, i32, i32, i32) {
    %c0_i32 = arith.constant 0 : i32
    %c0_i32_0 = arith.constant 0 : i32
    %c0_i32_1 = arith.constant 0 : i32
    return %arg0, %arg1, %c0_i32, %c0_i32_0 : i32, i32, i32, i32
  }
  func.func @transform_3(%arg0: i32, %arg1: i32) -> (i32, i32, i32, i32) {
    %c0_i32 = arith.constant 0 : i32
    %c0_i32_0 = arith.constant 0 : i32
    %c0_i32_1 = arith.constant 0 : i32
    %c0_i32_2 = arith.constant 0 : i32
    %c0_i32_3 = arith.constant 0 : i32
    return %c0_i32, %c0_i32_0, %c0_i32_1, %c0_i32_2 : i32, i32, i32, i32
  }
  func.func @transform_4(%arg0: i32, %arg1: i32) -> (i32, i32, i32, i32) {
    %c0_i32 = arith.constant 0 : i32
    %c0_i32_0 = arith.constant 0 : i32
    %c0_i32_1 = arith.constant 0 : i32
    %c0_i32_2 = arith.constant 0 : i32
    %c0_i32_3 = arith.constant 0 : i32
    return %c0_i32, %c0_i32_0, %c0_i32_1, %c0_i32_2 : i32, i32, i32, i32
  }
  func.func @transform_5(%arg0: i32, %arg1: i32) -> (i32, i32) {
    %c0_i32 = arith.constant 0 : i32
    %c0_i32_0 = arith.constant 0 : i32
    %c0_i32_1 = arith.constant 0 : i32
    return %c0_i32, %c0_i32_0 : i32, i32
  }
  func.func @transform_6(%arg0: i32, %arg1: i32) -> (i32, i32) {
    %c0_i32 = arith.constant 0 : i32
    %c0_i32_0 = arith.constant 0 : i32
    %c0_i32_1 = arith.constant 0 : i32
    return %c0_i32, %c0_i32_0 : i32, i32
  }
  func.func @transform_7(%arg0: i32, %arg1: i32) -> (i32, i32, i32, i32) {
    %c0_i32 = arith.constant 0 : i32
    %c0_i32_0 = arith.constant 0 : i32
    %c0_i32_1 = arith.constant 0 : i32
    return %arg0, %arg1, %c0_i32, %c0_i32_0 : i32, i32, i32, i32
  }
}

</mosaic_0001>

<llo_original>
// kernel: tpu_custom_call.1
$region0: #{tpu_custom_call.1}
  #allocation0 [shape = 'u32[]', space=smem, size = 0x4, offset = 0x4, fixed_abs, tag = 'smem constant byte address 0x4 - core index']
  #allocation1 [shape = 'u32[72,128]{1,0:T(1,128)}', space=vmem, size = 0x9000, scoped, tag = 'internal scratch']
  #allocation2 [shape = 'bf16[12,18,128]{2,1,0:T(8,128)(2,1)}', space=vmem, size = 0x12000, scoped, tag = 'scratch operand']
  #allocation3 [shape = 'bf16[10,18,128]{2,1,0:T(8,128)(2,1)}', space=vmem, size = 0xf000, scoped, tag = 'scratch operand']
  %s0 = inlined_call_operand.vmem [shape: bf16[2,20,18,128], index: 0, kind: input, shape index: {}]
  %s1 = inlined_call_operand.vmem [shape: bf16[2,20,18,128], index: 1, kind: input, shape index: {}]
  %s2 = inlined_call_operand.hbm [shape: f32[2,16,16,128], index: 2, kind: input, shape index: {}]
  %s3 = inlined_call_operand.vmem [shape: bf16[3,3,128,128], index: 3, kind: input, shape index: {}]
  %s4 = inlined_call_operand.vmem [shape: bf16[3,3,128,128], index: 4, kind: input, shape index: {}]
  %s5 = inlined_call_operand.vmem [shape: f32[1,128], index: 5, kind: input, shape index: {}]
  %s6 = inlined_call_operand.vmem [shape: f32[1,128], index: 6, kind: input, shape index: {}]
  %s7 = inlined_call_operand.hbm [shape: f32[2,16,16,128], index: 7, kind: output, shape index: {}]
  %s8 = sld [smem:[#allocation0]]
  $region73: #{tpu_custom_call.1} parent=0
    _
  %s10 = ssub.s32 1, %s8
  %s11 = scalar_select 0, %s10, %s8
  $region1: #{tpu_custom_call.1} parent=0
    #allocation4 [shape = 'u8[131072]{0}', space=vmem, size = 0x20000, scoped, tag = 'input window, operand 2']
    #allocation5 [shape = 's32[2]{0}', space=sflag, size = 0x8, scoped, tag = 'scoped memory for tpu_custom_call.1']
    #allocation6 [shape = 's32[2]{0}', space=sflag, size = 0x8, scoped, tag = 'scoped memory for tpu_custom_call.1']
    #allocation7 [shape = 'u8[131072]{0}', space=vmem, size = 0x20000, scoped, tag = 'output window, operand 0']
    %12 = vsyncpa [#allocation5], 0
    %s13 = scalar_lea.sflag [#allocation5], 1
    %14 = vsyncpa %s13, 0
    %15 = vsyncpa [#allocation6], 0
    %s16 = scalar_lea.sflag [#allocation6], 1
    %17 = vsyncpa %s16, 0
    loop: start=0, step=1, limit=6
    $region2: #{tpu_custom_call.1} parent=1 // loop_pre_header
      _
    $region3: #{tpu_custom_call.1} parent=1 // loop_header
      %s19 = sphi 0, %s23
      %p20 = scmp.ge.s32.totalorder %s19, 6
      %s26 = sphi 0, %s38
      %s27 = sphi 0, %s34
      %s28 = sphi 0, %s26
      %s29 = sphi 0, %s27
      %s30 = sphi 0, %s28
      %s31 = sphi 0, %s29
      %s43 = sphi 0, %s45
      %s46 = sphi 0, %s43
      %s47 = sphi 0, %s46
      %s63 = sphi 0, %s47
      %s75 = sphi 0, %s77
      %s78 = sphi 0, %s75
      %s79 = sphi 0, %s78
      %s95 = sphi 0, %s79
      %s103 = sphi 0, %s105
      %s106 = sphi 0, %s103
      %s107 = sphi 0, %s106
      %s123 = sphi 0, %s107
      %s127 = sphi 0, %s127
      %s129 = sphi 0, %s127
      %s130 = sphi 0, %s129
      %s144 = sphi 0, %s130
      %s148 = sphi 0, %s148
      %s150 = sphi 0, %s148
      %s151 = sphi 0, %s150
      %s165 = sphi 0, %s151
      %s169 = sphi 0, %s169
      %s171 = sphi 0, %s169
      %s172 = sphi 0, %s171
      %s186 = sphi 0, %s172
      %s190 = sphi 0, %s190
      %s192 = sphi 0, %s190
      %s193 = sphi 0, %s192
      %s207 = sphi 0, %s193
      %s215 = sphi 0, %s217
      %s218 = sphi 0, %s215
      %s219 = sphi 0, %s218
      %s235 = sphi 0, %s219
    $region4: #{tpu_custom_call.1} parent=1 // loop_header_branch
      %22 = sbr.rel (%p20) target = $region8
    $region5: #{tpu_custom_call.1} parent=1 // loop_body
      %s24 = ssub.s32 %s19, 1
      %s25 = ssub.s32 %s19, 2
      %s32 = sadd.s32 1, %s27
      %p33 = scmp.ge.s32.totalorder %s32, 2
      %s34 = scalar_select %p33, 0, %s32
      %s35 = sadd.s32 1, %s26
      %s36 = scalar_select %p33, %s35, %s26
      %p37 = scmp.ge.s32.totalorder %s36, 2
      %s38 = scalar_select %p37, 0, %s36
      %s39 = ssub.s32 %s26, %s38
      %s40 = ssub.s32 %s27, %s34
      %s41 = sor.u32 %s39, %s40
      %p42 = scmp.eq.s32.totalorder %s41, 0
      %s44 = sadd.s32 %s43, 1
      %s45 = scalar_select %p42, %s43, %s44
      %p48 = pneg %p42
      %p49 = scmp.eq.s32.totalorder %s19, 3
      %p50 = por %p48, %p49
      %p51 = scmp.ne.s32.totalorder %s43, %s46
      %p52 = scmp.eq.s32.totalorder %s19, 0
      %p53 = por %p51, %p52
      %p54 = scmp.ne.s32.totalorder %s43, %s46
      %p55 = scmp.eq.s32.totalorder %s24, 3
      %p56 = por %p54, %p55
      %p57 = scmp.ne.s32.totalorder %s46, %s47
      %p58 = scmp.eq.s32.totalorder %s24, 0
      %p59 = por %p57, %p58
      %p60 = scmp.ne.s32.totalorder %s46, %s47
      %p61 = scmp.eq.s32.totalorder %s25, 3
      %p62 = por %p60, %p61
      %p64 = scmp.ne.s32.totalorder %s47, %s63
      %p65 = scmp.eq.s32.totalorder %s25, 0
      %p66 = por %p64, %p65
      %s67 = sadd.s32 %s27, 1
      %s68 = smul.u32 %s67, 2
      %s69 = sadd.s32 %s34, 1
      %s70 = smul.u32 %s69, 2
      %s71 = ssub.s32 %s26, %s38
      %s72 = ssub.s32 %s68, %s70
      %s73 = sor.u32 %s71, %s72
      %p74 = scmp.eq.s32.totalorder %s73, 0
      %s76 = sadd.s32 %s75, 1
      %s77 = scalar_select %p74, %s75, %s76
      %p80 = pneg %p74
      %p81 = scmp.eq.s32.totalorder %s19, 3
      %p82 = por %p80, %p81
      %p83 = scmp.ne.s32.totalorder %s75, %s78
      %p84 = scmp.eq.s32.totalorder %s19, 0
      %p85 = por %p83, %p84
      %p86 = scmp.ne.s32.totalorder %s75, %s78
      %p87 = scmp.eq.s32.totalorder %s24, 3
      %p88 = por %p86, %p87
      %p89 = scmp.ne.s32.totalorder %s78, %s79
      %p90 = scmp.eq.s32.totalorder %s24, 0
      %p91 = por %p89, %p90
      %p92 = scmp.ne.s32.totalorder %s78, %s79
      %p93 = scmp.eq.s32.totalorder %s25, 3
      %p94 = por %p92, %p93
      %p96 = scmp.ne.s32.totalorder %s79, %s95
      %p97 = scmp.eq.s32.totalorder %s25, 0
      %p98 = por %p96, %p97
      %s99 = ssub.s32 %s26, %s38
      %s100 = ssub.s32 %s27, %s34
      %s101 = sor.u32 %s99, %s100
      %p102 = scmp.eq.s32.totalorder %s101, 0
      %s104 = sadd.s32 %s103, 1
      %s105 = scalar_select %p102, %s103, %s104
      %p108 = pneg %p102
      %p109 = scmp.eq.s32.totalorder %s19, 3
      %p110 = por %p108, %p109
      %p111 = scmp.ne.s32.totalorder %s103, %s106
      %p112 = scmp.eq.s32.totalorder %s19, 0
      %p113 = por %p111, %p112
      %p114 = scmp.ne.s32.totalorder %s103, %s106
      %p115 = scmp.eq.s32.totalorder %s24, 3
      %p116 = por %p114, %p115
      %p117 = scmp.ne.s32.totalorder %s106, %s107
      %p118 = scmp.eq.s32.totalorder %s24, 0
      %p119 = por %p117, %p118
      %p120 = scmp.ne.s32.totalorder %s106, %s107
      %p121 = scmp.eq.s32.totalorder %s25, 3
      %p122 = por %p120, %p121
      %p124 = scmp.ne.s32.totalorder %s107, %s123
      %p125 = scmp.eq.s32.totalorder %s25, 0
      %p126 = por %p124, %p125
      %s128 = sadd.s32 %s127, 1
      %p131 = scmp.eq.s32.totalorder %s19, 3
      %p132 = scmp.ne.s32.totalorder %s127, %s129
      %p133 = scmp.eq.s32.totalorder %s19, 0
      %p134 = por %p132, %p133
      %p135 = scmp.ne.s32.totalorder %s127, %s129
      %p136 = scmp.eq.s32.totalorder %s24, 3
      %p137 = por %p135, %p136
      %p138 = scmp.ne.s32.totalorder %s129, %s130
      %p139 = scmp.eq.s32.totalorder %s24, 0
      %p140 = por %p138, %p139
      %p141 = scmp.ne.s32.totalorder %s129, %s130
      %p142 = scmp.eq.s32.totalorder %s25, 3
      %p143 = por %p141, %p142
      %p145 = scmp.ne.s32.totalorder %s130, %s144
      %p146 = scmp.eq.s32.totalorder %s25, 0
      %p147 = por %p145, %p146
      %s149 = sadd.s32 %s148, 1
      %p152 = scmp.eq.s32.totalorder %s19, 3
      %p153 = scmp.ne.s32.totalorder %s148, %s150
      %p154 = scmp.eq.s32.totalorder %s19, 0
      %p155 = por %p153, %p154
      %p156 = scmp.ne.s32.totalorder %s148, %s150
      %p157 = scmp.eq.s32.totalorder %s24, 3
      %p158 = por %p156, %p157
      %p159 = scmp.ne.s32.totalorder %s150, %s151
      %p160 = scmp.eq.s32.totalorder %s24, 0
      %p161 = por %p159, %p160
      %p162 = scmp.ne.s32.totalorder %s150, %s151
      %p163 = scmp.eq.s32.totalorder %s25, 3
      %p164 = por %p162, %p163
      %p166 = scmp.ne.s32.totalorder %s151, %s165
      %p167 = scmp.eq.s32.totalorder %s25, 0
      %p168 = por %p166, %p167
      %s170 = sadd.s32 %s169, 1
      %p173 = scmp.eq.s32.totalorder %s19, 3
      %p174 = scmp.ne.s32.totalorder %s169, %s171
      %p175 = scmp.eq.s32.totalorder %s19, 0
      %p176 = por %p174, %p175
      %p177 = scmp.ne.s32.totalorder %s169, %s171
      %p178 = scmp.eq.s32.totalorder %s24, 3
      %p179 = por %p177, %p178
      %p180 = scmp.ne.s32.totalorder %s171, %s172
      %p181 = scmp.eq.s32.totalorder %s24, 0
      %p182 = por %p180, %p181
      %p183 = scmp.ne.s32.totalorder %s171, %s172
      %p184 = scmp.eq.s32.totalorder %s25, 3
      %p185 = por %p183, %p184
      %p187 = scmp.ne.s32.totalorder %s172, %s186
      %p188 = scmp.eq.s32.totalorder %s25, 0
      %p189 = por %p187, %p188
      %s191 = sadd.s32 %s190, 1
      %p194 = scmp.eq.s32.totalorder %s19, 3
      %p195 = scmp.ne.s32.totalorder %s190, %s192
      %p196 = scmp.eq.s32.totalorder %s19, 0
      %p197 = por %p195, %p196
      %p198 = scmp.ne.s32.totalorder %s190, %s192
      %p199 = scmp.eq.s32.totalorder %s24, 3
      %p200 = por %p198, %p199
      %p201 = scmp.ne.s32.totalorder %s192, %s193
      %p202 = scmp.eq.s32.totalorder %s24, 0
      %p203 = por %p201, %p202
      %p204 = scmp.ne.s32.totalorder %s192, %s193
      %p205 = scmp.eq.s32.totalorder %s25, 3
      %p206 = por %p204, %p205
      %p208 = scmp.ne.s32.totalorder %s193, %s207
      %p209 = scmp.eq.s32.totalorder %s25, 0
      %p210 = por %p208, %p209
      %s211 = ssub.s32 %s26, %s38
      %s212 = ssub.s32 %s27, %s34
      %s213 = sor.u32 %s211, %s212
      %p214 = scmp.eq.s32.totalorder %s213, 0
      %s216 = sadd.s32 %s215, 1
      %s217 = scalar_select %p214, %s215, %s216
      %p220 = pneg %p214
      %p221 = scmp.eq.s32.totalorder %s19, 3
      %p222 = por %p220, %p221
      %p223 = scmp.ne.s32.totalorder %s215, %s218
      %p224 = scmp.eq.s32.totalorder %s19, 0
      %p225 = por %p223, %p224
      %p226 = scmp.ne.s32.totalorder %s215, %s218
      %p227 = scmp.eq.s32.totalorder %s24, 3
      %p228 = por %p226, %p227
      %p229 = scmp.ne.s32.totalorder %s218, %s219
      %p230 = scmp.eq.s32.totalorder %s24, 0
      %p231 = por %p229, %p230
      %p232 = scmp.ne.s32.totalorder %s218, %s219
      %p233 = scmp.eq.s32.totalorder %s25, 3
      %p234 = por %p232, %p233
      %p236 = scmp.ne.s32.totalorder %s219, %s235
      %p237 = scmp.eq.s32.totalorder %s25, 0
      %p238 = por %p236, %p237
      %p239 = scmp.le.s32.totalorder 1, %s19
      %p240 = scmp.lt.s32.totalorder %s19, 5
      %p241 = pnand %p239, %p240
      %p242 = pneg %p241
      // Predicated region
      $region9: #{tpu_custom_call.1} parent=5 // pred_check
        _
      $region10: #{tpu_custom_call.1} parent=5 // pred_check_branch
        %244 = sbr.rel (%p241) target = $region12
      $region11: #{tpu_custom_call.1} parent=5 // pred_region
        %s245 = ssub.s32 %s19, 1
        // Predicated region
        $region13: #{tpu_custom_call.1} parent=11 // pred_check
          %p246 = pneg %p140
        $region14: #{tpu_custom_call.1} parent=11 // pred_check_branch
          %248 = sbr.rel (%p246) target = $region16
        $region15: #{tpu_custom_call.1} parent=11 // pred_region
          _
        $region16: #{tpu_custom_call.1} parent=11 // pred_fallthru
          _
        // Predicated region
        $region17: #{tpu_custom_call.1} parent=11 // pred_check
          %p249 = pneg %p161
        $region18: #{tpu_custom_call.1} parent=11 // pred_check_branch
          %251 = sbr.rel (%p249) target = $region20
        $region19: #{tpu_custom_call.1} parent=11 // pred_region
          _
        $region20: #{tpu_custom_call.1} parent=11 // pred_fallthru
          _
        // Predicated region
        $region21: #{tpu_custom_call.1} parent=11 // pred_check
          %p252 = pneg %p182
        $region22: #{tpu_custom_call.1} parent=11 // pred_check_branch
          %254 = sbr.rel (%p252) target = $region24
        $region23: #{tpu_custom_call.1} parent=11 // pred_region
          _
        $region24: #{tpu_custom_call.1} parent=11 // pred_fallthru
          _
        // Predicated region
        $region25: #{tpu_custom_call.1} parent=11 // pred_check
          %p255 = pneg %p203
        $region26: #{tpu_custom_call.1} parent=11 // pred_check_branch
          %257 = sbr.rel (%p255) target = $region28
        $region27: #{tpu_custom_call.1} parent=11 // pred_region
          _
        $region28: #{tpu_custom_call.1} parent=11 // pred_fallthru
          _
      $region12: #{tpu_custom_call.1} parent=5 // pred_fallthru
        _
      %p258 = scmp.lt.s32.totalorder %s19, 4
      // Predicated region
      $region29: #{tpu_custom_call.1} parent=5 // pred_check
        %p259 = pneg %p258
      $region30: #{tpu_custom_call.1} parent=5 // pred_check_branch
        %261 = sbr.rel (%p259) target = $region32
      $region31: #{tpu_custom_call.1} parent=5 // pred_region
        // Predicated region
        $region33: #{tpu_custom_call.1} parent=31 // pred_check
          %p262 = pneg %p53
        $region34: #{tpu_custom_call.1} parent=31 // pred_check_branch
          %264 = sbr.rel (%p262) target = $region36
        $region35: #{tpu_custom_call.1} parent=31 // pred_region
          %s265 = smul.u32 8, %s27
          %s266 = ssub.s32 20, %s265
          %p267 = scmp.lt.s32.totalorder %s266, 8
          %s268 = scalar_select %p267, %s266, 8
          %s269 = smul.u32 4, %s268
          %s270 = smul.u32 %s269, 3
          %p271 = scmp.lt.s32.totalorder %s26, 1
          %s272 = scalar_select %p271, %s26, 1
          %p273 = scmp.lt.s32.totalorder %s265, 19
          %s274 = scalar_select %p273, %s265, 19
          %s275 = smul.addr %s274, 3
          %s276 = smul.addr %s272, 60
          %s277 = sadd.s32 %s275, %s276
          %s278 = smul.addr %s277, 4
          %s279 = scalar_lea.vmem %s0, %s278
          %s280 = smul.u32 8, %s27
          %s281 = ssub.s32 20, %s280
          %p282 = scmp.lt.s32.totalorder %s281, 8
          %s283 = scalar_select %p282, %s281, 8
          %s284 = smul.u32 4, %s283
          %s285 = smul.u32 %s284, 3
        $region36: #{tpu_custom_call.1} parent=31 // pred_fallthru
          _
        // Predicated region
        $region37: #{tpu_custom_call.1} parent=31 // pred_check
          %p286 = pneg %p85
        $region38: #{tpu_custom_call.1} parent=31 // pred_check_branch
          %288 = sbr.rel (%p286) target = $region40
        $region39: #{tpu_custom_call.1} parent=31 // pred_region
          %s289 = sadd.s32 %s27, 1
          %s290 = smul.u32 %s289, 2
          %s291 = smul.u32 4, %s290
          %p292 = scmp.lt.s32.totalorder %s26, 1
          %s293 = scalar_select %p292, %s26, 1
          %p294 = scmp.lt.s32.totalorder %s291, 19
          %s295 = scalar_select %p294, %s291, 19
          %s296 = smul.addr %s295, 3
          %s297 = smul.addr %s293, 60
          %s298 = sadd.s32 %s296, %s297
          %s299 = smul.addr %s298, 4
          %s300 = scalar_lea.vmem %s1, %s299
          %s301 = sadd.s32 %s27, 1
          %s302 = smul.u32 %s301, 2
          %s303 = smul.u32 4, %s302
        $region40: #{tpu_custom_call.1} parent=31 // pred_fallthru
          _
        // Predicated region
        $region41: #{tpu_custom_call.1} parent=31 // pred_check
          %p304 = pneg %p113
        $region42: #{tpu_custom_call.1} parent=31 // pred_check_branch
          %306 = sbr.rel (%p304) target = $region44
        $region43: #{tpu_custom_call.1} parent=31 // pred_region
          %s307 = sand.u32 %s103, 1
          %s308 = scalar_lea.sflag [#allocation5], %s307
          %s309 = sand.u32 %s103, 1
          %s310 = smul.addr %s309, 128
          %s311 = scalar_lea.vmem [#allocation4], %s310
          %s312 = smul.u32 8, %s27
          %314 = vsyncadd %s308, 0
          %s315 = smul.addr %s312, 2
          %s316 = smul.addr %s26, 32
          %s317 = sadd.s32 %s315, %s316
          %s318 = smul.addr %s317, 8
          %s319 = scalar_lea.hbm %s2, %s318
          %s320 = sshll.u32 %s319, 4
          %s321 = int_to_ptr.hbm [resolvable:$true] %s320
          %s322 = sshll.u32 %s311, 4
          %s323 = int_to_ptr.vmem [resolvable:$true] %s322
          %328 = dma.hbm_to_vmem [thread:$0]  %s321, 2048, %s323, %s308, 128, 128, 8
        $region44: #{tpu_custom_call.1} parent=31 // pred_fallthru
          _
      $region32: #{tpu_custom_call.1} parent=5 // pred_fallthru
        _
      %p329 = scmp.le.s32.totalorder 1, %s19
      %p330 = scmp.lt.s32.totalorder %s19, 5
      %p331 = pnand %p329, %p330
      %p332 = pneg %p331
      // Predicated region
      $region45: #{tpu_custom_call.1} parent=5 // pred_check
        _
      $region46: #{tpu_custom_call.1} parent=5 // pred_check_branch
        %334 = sbr.rel (%p331) target = $region48
      $region47: #{tpu_custom_call.1} parent=5 // pred_region
        %s335 = ssub.s32 %s19, 1
        %s336 = sand.u32 %s106, 1
        %s337 = scalar_lea.sflag [#allocation5], %s336
        %s338 = sand.u32 %s106, 1
        %s339 = smul.addr %s338, 128
        %s340 = scalar_lea.vmem [#allocation4], %s339
        // Predicated region
        $region49: #{tpu_custom_call.1} parent=47 // pred_check
          %p341 = pneg %p119
        $region50: #{tpu_custom_call.1} parent=47 // pred_check_branch
          %343 = sbr.rel (%p341) target = $region52
        $region51: #{tpu_custom_call.1} parent=47 // pred_region
          %345 = dma.done %s337, 2048
        $region52: #{tpu_custom_call.1} parent=47 // pred_fallthru
          _
        %s346 = smul.u32 8, %s29
        %s347 = ssub.s32 20, %s346
        %p348 = scmp.lt.s32.totalorder %s347, 8
        %s349 = scalar_select %p348, %s347, 8
        %s350 = smul.u32 4, %s349
        %s351 = smul.u32 %s350, 3
        %p352 = scmp.lt.s32.totalorder %s28, 1
        %s353 = scalar_select %p352, %s28, 1
        %p354 = scmp.lt.s32.totalorder %s346, 19
        %s355 = scalar_select %p354, %s346, 19
        %s356 = smul.addr %s355, 3
        %s357 = smul.addr %s353, 60
        %s358 = sadd.s32 %s356, %s357
        %s359 = smul.addr %s358, 4
        %s360 = scalar_lea.vmem %s0, %s359
        %p361 = pneg %p59
        %p362 = pneg %p56
        %s363 = sadd.s32 %s29, 1
        %s364 = smul.u32 %s363, 2
        %s365 = smul.u32 4, %s364
        %p366 = scmp.lt.s32.totalorder %s28, 1
        %s367 = scalar_select %p366, %s28, 1
        %p368 = scmp.lt.s32.totalorder %s365, 19
        %s369 = scalar_select %p368, %s365, 19
        %s370 = smul.addr %s369, 3
        %s371 = smul.addr %s367, 60
        %s372 = sadd.s32 %s370, %s371
        %s373 = smul.addr %s372, 4
        %s374 = scalar_lea.vmem %s1, %s373
        %p375 = pneg %p91
        %p376 = pneg %p88
        %s377 = sand.u32 %s106, 1
        %s378 = scalar_lea.sflag [#allocation5], %s377
        %s379 = sand.u32 %s106, 1
        %s380 = smul.addr %s379, 128
        %s381 = scalar_lea.vmem [#allocation4], %s380
        %p382 = pneg %p119
        %p383 = pneg %p116
        %p384 = pneg %p140
        %p385 = pneg %p137
        %p386 = pneg %p161
        %p387 = pneg %p158
        %p388 = pneg %p182
        %p389 = pneg %p179
        %p390 = pneg %p203
        %p391 = pneg %p200
        %p392 = pneg %p231
        %p393 = pneg %p228
        %s394 = sand.u32 %s218, 1
        %s395 = scalar_lea.sflag [#allocation6], %s394
        %s396 = sand.u32 %s218, 1
        %s397 = smul.addr %s396, 128
        %s398 = scalar_lea.vmem [#allocation7], %s397
        %s399 = smul.u32 8, %s29
        %s400 = ssub.s32 20, %s399
        %p401 = scmp.lt.s32.totalorder %s400, 8
        %s402 = scalar_select %p401, %s400, 8
        %s403 = smul.u32 4, %s402
        %s404 = smul.u32 %s403, 3
        %p405 = scmp.lt.s32.totalorder %s28, 1
        %s406 = scalar_select %p405, %s28, 1
        %p407 = scmp.lt.s32.totalorder %s399, 19
        %s408 = scalar_select %p407, %s399, 19
        %s409 = smul.addr %s408, 3
        %s410 = smul.addr %s406, 60
        %s411 = sadd.s32 %s409, %s410
        %s412 = smul.addr %s411, 4
        %s413 = scalar_lea.vmem %s0, %s412
        %s414 = smul.u32 8, %s29
        %s415 = ssub.s32 20, %s414
        %p416 = scmp.lt.s32.totalorder %s415, 8
        %s417 = scalar_select %p416, %s415, 8
        %s418 = smul.u32 4, %s417
        %s419 = smul.u32 %s418, 3
        %s420 = sadd.s32 %s29, 1
        %s421 = smul.u32 %s420, 2
        %s422 = smul.u32 4, %s421
        %p423 = scmp.lt.s32.totalorder %s28, 1
        %s424 = scalar_select %p423, %s28, 1
        %p425 = scmp.lt.s32.totalorder %s422, 19
        %s426 = scalar_select %p425, %s422, 19
        %s427 = smul.addr %s426, 3
        %s428 = smul.addr %s424, 60
        %s429 = sadd.s32 %s427, %s428
        %s430 = smul.addr %s429, 4
        %s431 = scalar_lea.vmem %s1, %s430
        %s432 = sadd.s32 %s29, 1
        %s433 = smul.u32 %s432, 2
        %s434 = smul.u32 4, %s433
        %s435 = smul.u32 8, %s29
        %s436 = smul.u32 8, %s29
        %v438 = vld [vmem:[%s413] sm:$0xf]
        %v439 = vld [vmem:[%s413 + $0x4] sm:$0xf]
        %v440 = vld [vmem:[%s413 + $0x8] sm:$0x1]
        %v441 = vld [vmem:[%s413 + $0xc] sm:$0xf]
        %v442 = vld [vmem:[%s413 + $0x10] sm:$0xf]
        %v443 = vld [vmem:[%s413 + $0x14] sm:$0x1]
        %v444 = vld [vmem:[%s413 + $0x18] sm:$0xf]
        %v445 = vld [vmem:[%s413 + $0x1c] sm:$0xf]
        %v446 = vld [vmem:[%s413 + $0x20] sm:$0x1]
        %v447 = vld [vmem:[%s413 + $0x24] sm:$0xf]
        %v448 = vld [vmem:[%s413 + $0x28] sm:$0xf]
        %v449 = vld [vmem:[%s413 + $0x2c] sm:$0x1]
        %v450 = vld [vmem:[%s413 + $0x30] sm:$0xf]
        %v451 = vld [vmem:[%s413 + $0x34] sm:$0xf]
        %v452 = vld [vmem:[%s413 + $0x38] sm:$0x1]
        %v453 = vld [vmem:[%s413 + $0x3c] sm:$0xf]
        %v454 = vld [vmem:[%s413 + $0x40] sm:$0xf]
        %v455 = vld [vmem:[%s413 + $0x44] sm:$0x1]
        %v456 = vld [vmem:[%s413 + $0x48] sm:$0xf]
        %v457 = vld [vmem:[%s413 + $0x4c] sm:$0xf]
        %v458 = vld [vmem:[%s413 + $0x50] sm:$0x1]
        %v459 = vld [vmem:[%s413 + $0x54] sm:$0xf]
        %v460 = vld [vmem:[%s413 + $0x58] sm:$0xf]
        %v461 = vld [vmem:[%s413 + $0x5c] sm:$0x1]
        %462 = vst [vmem:[#allocation2] sm:$0xf] %v438
        %463 = vst [vmem:[#allocation2 + $0x4] sm:$0xf] %v439
        %464 = vst [vmem:[#allocation2 + $0x8] sm:$0x1] %v440
        %465 = vst [vmem:[#allocation2 + $0xc] sm:$0xf] %v441
        %466 = vst [vmem:[#allocation2 + $0x10] sm:$0xf] %v442
        %467 = vst [vmem:[#allocation2 + $0x14] sm:$0x1] %v443
        %468 = vst [vmem:[#allocation2 + $0x18] sm:$0xf] %v444
        %469 = vst [vmem:[#allocation2 + $0x1c] sm:$0xf] %v445
        %470 = vst [vmem:[#allocation2 + $0x20] sm:$0x1] %v446
        %471 = vst [vmem:[#allocation2 + $0x24] sm:$0xf] %v447
        %472 = vst [vmem:[#allocation2 + $0x28] sm:$0xf] %v448
        %473 = vst [vmem:[#allocation2 + $0x2c] sm:$0x1] %v449
        %474 = vst [vmem:[#allocation2 + $0x30] sm:$0xf] %v450
        %475 = vst [vmem:[#allocation2 + $0x34] sm:$0xf] %v451
        %476 = vst [vmem:[#allocation2 + $0x38] sm:$0x1] %v452
        %477 = vst [vmem:[#allocation2 + $0x3c] sm:$0xf] %v453
        %478 = vst [vmem:[#allocation2 + $0x40] sm:$0xf] %v454
        %479 = vst [vmem:[#allocation2 + $0x44] sm:$0x1] %v455
        %480 = vst [vmem:[#allocation2 + $0x48] sm:$0xf] %v456
        %481 = vst [vmem:[#allocation2 + $0x4c] sm:$0xf] %v457
        %482 = vst [vmem:[#allocation2 + $0x50] sm:$0x1] %v458
        %483 = vst [vmem:[#allocation2 + $0x54] sm:$0xf] %v459
        %484 = vst [vmem:[#allocation2 + $0x58] sm:$0xf] %v460
        %485 = vst [vmem:[#allocation2 + $0x5c] sm:$0x1] %v461
        %v486 = vld [vmem:[%s431] sm:$0xf]
        %v487 = vld [vmem:[%s431 + $0x4] sm:$0xf]
        %v488 = vld [vmem:[%s431 + $0x8] sm:$0x1]
        %v489 = vld [vmem:[%s431 + $0xc] sm:$0xf]
        %v490 = vld [vmem:[%s431 + $0x10] sm:$0xf]
        %v491 = vld [vmem:[%s431 + $0x14] sm:$0x1]
        %v492 = vld [vmem:[%s431 + $0x18] sm:$0xf]
        %v493 = vld [vmem:[%s431 + $0x1c] sm:$0xf]
        %v494 = vld [vmem:[%s431 + $0x20] sm:$0x1]
        %v495 = vld [vmem:[%s431 + $0x24] sm:$0xf]
        %v496 = vld [vmem:[%s431 + $0x28] sm:$0xf]
        %v497 = vld [vmem:[%s431 + $0x2c] sm:$0x1]
        %s498 = scalar_lea.vmem [#allocation2], 96
        %499 = vst [vmem:[%s498] sm:$0xf] %v486
        %500 = vst [vmem:[%s498 + $0x4] sm:$0xf] %v487
        %501 = vst [vmem:[%s498 + $0x8] sm:$0x1] %v488
        %502 = vst [vmem:[%s498 + $0xc] sm:$0xf] %v489
        %503 = vst [vmem:[%s498 + $0x10] sm:$0xf] %v490
        %504 = vst [vmem:[%s498 + $0x14] sm:$0x1] %v491
        %505 = vst [vmem:[%s498 + $0x18] sm:$0xf] %v492
        %506 = vst [vmem:[%s498 + $0x1c] sm:$0xf] %v493
        %507 = vst [vmem:[%s498 + $0x20] sm:$0x1] %v494
        %508 = vst [vmem:[%s498 + $0x24] sm:$0xf] %v495
        %509 = vst [vmem:[%s498 + $0x28] sm:$0xf] %v496
        %510 = vst [vmem:[%s498 + $0x2c] sm:$0x1] %v497
        %v511 = vld [vmem:[#allocation2] sm:$0xf]
        %v512 = vld [vmem:[#allocation2 + $0x4] sm:$0xf]
        %v513 = vld [vmem:[#allocation2 + $0xc] sm:$0xf]
        %v514 = vld [vmem:[#allocation2 + $0x10] sm:$0xf]
        %v515 = vld [vmem:[#allocation2 + $0x18] sm:$0xf]
        %v516 = vld [vmem:[#allocation2 + $0x1c] sm:$0xf]
        %v517 = vld [vmem:[#allocation2 + $0x24] sm:$0xf]
        %v518 = vld [vmem:[#allocation2 + $0x28] sm:$0xf]
        %v519 = vld [vmem:[#allocation2 + $0x30] sm:$0xf]
        %v520 = vld [vmem:[#allocation2 + $0x34] sm:$0xf]
        %v521 = vld [vmem:[#allocation2 + $0x3c] sm:$0xf]
        %v522 = vld [vmem:[#allocation2 + $0x40] sm:$0xf]
        %v523 = vld [vmem:[#allocation2 + $0x48] sm:$0xf]
        %v524 = vld [vmem:[#allocation2 + $0x4c] sm:$0xf]
        %v525 = vld [vmem:[#allocation2 + $0x54] sm:$0xf]
        %v526 = vld [vmem:[#allocation2 + $0x58] sm:$0xf]
        %v527 = vld [vmem:[#allocation2 + $0x60] sm:$0xf]
        %v528 = vld [vmem:[#allocation2 + $0x64] sm:$0xf]
        %v529 = vld [vmem:[#allocation2 + $0x6c] sm:$0xf]
        %v530 = vld [vmem:[#allocation2 + $0x70] sm:$0xf]
        %v531 = vld [vmem:[%s3] sm:$0xf]
        %v532 = vld [vmem:[%s3 + $0x4] sm:$0xf]
        %v533 = vld [vmem:[%s3 + $0x8] sm:$0xf]
        %v534 = vld [vmem:[%s3 + $0xc] sm:$0xf]
        %v535 = vld [vmem:[%s3 + $0x10] sm:$0xf]
        %v536 = vld [vmem:[%s3 + $0x14] sm:$0xf]
        %v537 = vld [vmem:[%s3 + $0x18] sm:$0xf]
        %v538 = vld [vmem:[%s3 + $0x1c] sm:$0xf]
        %v539 = vld [vmem:[%s3 + $0x20] sm:$0xf]
        %v540 = vld [vmem:[%s3 + $0x24] sm:$0xf]
        %v541 = vld [vmem:[%s3 + $0x28] sm:$0xf]
        %v542 = vld [vmem:[%s3 + $0x2c] sm:$0xf]
        %v543 = vld [vmem:[%s3 + $0x30] sm:$0xf]
        %v544 = vld [vmem:[%s3 + $0x34] sm:$0xf]
        %v545 = vld [vmem:[%s3 + $0x38] sm:$0xf]
        %v546 = vld [vmem:[%s3 + $0x3c] sm:$0xf]
        %v547 = vld [vmem:[#allocation2 + $0x8] sm:$0x1]
        %v548 = vld [vmem:[#allocation2 + $0x14] sm:$0x1]
        %v549 = vld [vmem:[#allocation2 + $0x20] sm:$0x1]
        %v550 = vld [vmem:[#allocation2 + $0x2c] sm:$0x1]
        %v551 = vld [vmem:[#allocation2 + $0x38] sm:$0x1]
        %v552 = vld [vmem:[#allocation2 + $0x44] sm:$0x1]
        %v553 = vld [vmem:[#allocation2 + $0x50] sm:$0x1]
        %v554 = vld [vmem:[#allocation2 + $0x5c] sm:$0x1]
        %v555 = vld [vmem:[#allocation2 + $0x68] sm:$0x1]
        %v556 = vld [vmem:[#allocation2 + $0x74] sm:$0x1]
        %vm557 = vsmask.f32 3328
        %vm558 = vsmask.f32 7440
        %vm559 = vmor %vm557, %vm558
        %v561 = vshrl.u32 %v511, 16
        %v563 = vrot.slane %v561, 4
        %v564 = vshll.u32 %v511, 16
        %v566 = vrot.slane %v564, 5
        %v567 = vor.u32 %v563, %v566
        %v568 = vrot.slane %v567, 4
        %v570 = vshll.u32 %v512, 16
        %v572 = vrot.slane %v570, 5
        %v573 = vsel %vm559, %v568, %v572
        %v574 = vshrl.u32 %v512, 16
        %v576 = vrot.slane %v574, 4
        %v577 = vor.u32 %v576, %v572
        %v578 = vrot.slane %v577, 4
        %v580 = vshll.u32 %v547, 16
        %v582 = vrot.slane %v580, 5
        %v583 = vsel %vm559, %v578, %v582
        %v585 = vshrl.u32 %v513, 16
        %v587 = vrot.slane %v585, 4
        %v588 = vshll.u32 %v513, 16
        %v590 = vrot.slane %v588, 5
        %v591 = vor.u32 %v587, %v590
        %v592 = vrot.slane %v591, 4
        %v594 = vshll.u32 %v514, 16
        %v596 = vrot.slane %v594, 5
        %v597 = vsel %vm559, %v592, %v596
        %v598 = vshrl.u32 %v514, 16
        %v600 = vrot.slane %v598, 4
        %v601 = vor.u32 %v600, %v596
        %v602 = vrot.slane %v601, 4
        %v604 = vshll.u32 %v548, 16
        %v606 = vrot.slane %v604, 5
        %v607 = vsel %vm559, %v602, %v606
        %v609 = vshrl.u32 %v515, 16
        %v611 = vrot.slane %v609, 4
        %v612 = vshll.u32 %v515, 16
        %v614 = vrot.slane %v612, 5
        %v615 = vor.u32 %v611, %v614
        %v616 = vrot.slane %v615, 4
        %v618 = vshll.u32 %v516, 16
        %v620 = vrot.slane %v618, 5
        %v621 = vsel %vm559, %v616, %v620
        %v622 = vshrl.u32 %v516, 16
        %v624 = vrot.slane %v622, 4
        %v625 = vor.u32 %v624, %v620
        %v626 = vrot.slane %v625, 4
        %v628 = vshll.u32 %v549, 16
        %v630 = vrot.slane %v628, 5
        %v631 = vsel %vm559, %v626, %v630
        %v633 = vshrl.u32 %v517, 16
        %v635 = vrot.slane %v633, 4
        %v636 = vshll.u32 %v517, 16
        %v638 = vrot.slane %v636, 5
        %v639 = vor.u32 %v635, %v638
        %v640 = vrot.slane %v639, 4
        %v642 = vshll.u32 %v518, 16
        %v644 = vrot.slane %v642, 5
        %v645 = vsel %vm559, %v640, %v644
        %v646 = vshrl.u32 %v518, 16
        %v648 = vrot.slane %v646, 4
        %v649 = vor.u32 %v648, %v644
        %v650 = vrot.slane %v649, 4
        %v652 = vshll.u32 %v550, 16
        %v654 = vrot.slane %v652, 5
        %v655 = vsel %vm559, %v650, %v654
        %v657 = vshrl.u32 %v519, 16
        %v659 = vrot.slane %v657, 4
        %v660 = vshll.u32 %v519, 16
        %v662 = vrot.slane %v660, 5
        %v663 = vor.u32 %v659, %v662
        %v664 = vrot.slane %v663, 4
        %v666 = vshll.u32 %v520, 16
        %v668 = vrot.slane %v666, 5
        %v669 = vsel %vm559, %v664, %v668
        %v670 = vshrl.u32 %v520, 16
        %v672 = vrot.slane %v670, 4
        %v673 = vor.u32 %v672, %v668
        %v674 = vrot.slane %v673, 4
        %v676 = vshll.u32 %v551, 16
        %v678 = vrot.slane %v676, 5
        %v679 = vsel %vm559, %v674, %v678
        %v681 = vshrl.u32 %v521, 16
        %v683 = vrot.slane %v681, 4
        %v684 = vshll.u32 %v521, 16
        %v686 = vrot.slane %v684, 5
        %v687 = vor.u32 %v683, %v686
        %v688 = vrot.slane %v687, 4
        %v690 = vshll.u32 %v522, 16
        %v692 = vrot.slane %v690, 5
        %v693 = vsel %vm559, %v688, %v692
        %v694 = vshrl.u32 %v522, 16
        %v696 = vrot.slane %v694, 4
        %v697 = vor.u32 %v696, %v692
        %v698 = vrot.slane %v697, 4
        %v700 = vshll.u32 %v552, 16
        %v702 = vrot.slane %v700, 5
        %v703 = vsel %vm559, %v698, %v702
        %v705 = vshrl.u32 %v523, 16
        %v707 = vrot.slane %v705, 4
        %v708 = vshll.u32 %v523, 16
        %v710 = vrot.slane %v708, 5
        %v711 = vor.u32 %v707, %v710
        %v712 = vrot.slane %v711, 4
        %v714 = vshll.u32 %v524, 16
        %v716 = vrot.slane %v714, 5
        %v717 = vsel %vm559, %v712, %v716
        %v718 = vshrl.u32 %v524, 16
        %v720 = vrot.slane %v718, 4
        %v721 = vor.u32 %v720, %v716
        %v722 = vrot.slane %v721, 4
        %v724 = vshll.u32 %v553, 16
        %v726 = vrot.slane %v724, 5
        %v727 = vsel %vm559, %v722, %v726
        %v729 = vshrl.u32 %v525, 16
        %v731 = vrot.slane %v729, 4
        %v732 = vshll.u32 %v525, 16
        %v734 = vrot.slane %v732, 5
        %v735 = vor.u32 %v731, %v734
        %v736 = vrot.slane %v735, 4
        %v738 = vshll.u32 %v526, 16
        %v740 = vrot.slane %v738, 5
        %v741 = vsel %vm559, %v736, %v740
        %v742 = vshrl.u32 %v526, 16
        %v744 = vrot.slane %v742, 4
        %v745 = vor.u32 %v744, %v740
        %v746 = vrot.slane %v745, 4
        %v748 = vshll.u32 %v554, 16
        %v750 = vrot.slane %v748, 5
        %v751 = vsel %vm559, %v746, %v750
        %v753 = vshrl.u32 %v527, 16
        %v755 = vrot.slane %v753, 4
        %v756 = vshll.u32 %v527, 16
        %v758 = vrot.slane %v756, 5
        %v759 = vor.u32 %v755, %v758
        %v760 = vrot.slane %v759, 4
        %v762 = vshll.u32 %v528, 16
        %v764 = vrot.slane %v762, 5
        %v765 = vsel %vm559, %v760, %v764
        %v766 = vshrl.u32 %v528, 16
        %v768 = vrot.slane %v766, 4
        %v769 = vor.u32 %v768, %v764
        %v770 = vrot.slane %v769, 4
        %v772 = vshll.u32 %v555, 16
        %v774 = vrot.slane %v772, 5
        %v775 = vsel %vm559, %v770, %v774
        %v777 = vshrl.u32 %v529, 16
        %v779 = vrot.slane %v777, 4
        %v780 = vshll.u32 %v529, 16
        %v782 = vrot.slane %v780, 5
        %v783 = vor.u32 %v779, %v782
        %v784 = vrot.slane %v783, 4
        %v786 = vshll.u32 %v530, 16
        %v788 = vrot.slane %v786, 5
        %v789 = vsel %vm559, %v784, %v788
        %v790 = vshrl.u32 %v530, 16
        %v792 = vrot.slane %v790, 4
        %v793 = vor.u32 %v792, %v788
        %v794 = vrot.slane %v793, 4
        %v796 = vshll.u32 %v556, 16
        %v798 = vrot.slane %v796, 5
        %v799 = vsel %vm559, %v794, %v798
        %s800 = scalar_lea.vmem %s3, 64
        %v801 = vld [vmem:[%s800] sm:$0xf]
        %v802 = vld [vmem:[%s800 + $0x4] sm:$0xf]
        %v803 = vld [vmem:[%s800 + $0x8] sm:$0xf]
        %v804 = vld [vmem:[%s800 + $0xc] sm:$0xf]
        %v805 = vld [vmem:[%s800 + $0x10] sm:$0xf]
        %v806 = vld [vmem:[%s800 + $0x14] sm:$0xf]
        %v807 = vld [vmem:[%s800 + $0x18] sm:$0xf]
        %v808 = vld [vmem:[%s800 + $0x1c] sm:$0xf]
        %v809 = vld [vmem:[%s800 + $0x20] sm:$0xf]
        %v810 = vld [vmem:[%s800 + $0x24] sm:$0xf]
        %v811 = vld [vmem:[%s800 + $0x28] sm:$0xf]
        %v812 = vld [vmem:[%s800 + $0x2c] sm:$0xf]
        %v813 = vld [vmem:[%s800 + $0x30] sm:$0xf]
        %v814 = vld [vmem:[%s800 + $0x34] sm:$0xf]
        %v815 = vld [vmem:[%s800 + $0x38] sm:$0xf]
        %v816 = vld [vmem:[%s800 + $0x3c] sm:$0xf]
        %v817 = vunpack.c.l.b16 %v573
        %v818 = vunpack.c.l.b16 %v583
        %v819 = vunpack.c.l.b16 %v597
        %v820 = vunpack.c.l.b16 %v607
        %v821 = vunpack.c.l.b16 %v621
        %v822 = vunpack.c.l.b16 %v631
        %v823 = vunpack.c.l.b16 %v645
        %v824 = vunpack.c.l.b16 %v655
        %v825 = vunpack.c.l.b16 %v669
        %v826 = vunpack.c.l.b16 %v679
        %v827 = vunpack.c.l.b16 %v693
        %v828 = vunpack.c.l.b16 %v703
        %v829 = vunpack.c.l.b16 %v717
        %v830 = vunpack.c.l.b16 %v727
        %v831 = vunpack.c.l.b16 %v741
        %v832 = vunpack.c.l.b16 %v751
        %v833 = vunpack.c.l.b16 %v765
        %v834 = vunpack.c.l.b16 %v775
        %v835 = vunpack.c.l.b16 %v789
        %v836 = vunpack.c.l.b16 %v799
        %v837 = vpack.c.b16 %v818, %v817
        %v838 = vpack.c.b16 %v820, %v819
        %v839 = vpack.c.b16 %v822, %v821
        %v840 = vpack.c.b16 %v824, %v823
        %v841 = vpack.c.b16 %v826, %v825
        %v842 = vpack.c.b16 %v828, %v827
        %v843 = vpack.c.b16 %v830, %v829
        %v844 = vpack.c.b16 %v832, %v831
        %v845 = vpack.c.b16 %v834, %v833
        %v846 = vpack.c.b16 %v836, %v835
        %v873 = vunpack.c.l.b16 %v801
        %v874 = vunpack.c.l.b16 %v802
        %v875 = vunpack.c.l.b16 %v803
        %v876 = vunpack.c.l.b16 %v804
        %v877 = vunpack.c.l.b16 %v805
        %v878 = vunpack.c.l.b16 %v806
        %v879 = vunpack.c.l.b16 %v807
        %v880 = vunpack.c.l.b16 %v808
        %v881 = vunpack.c.l.b16 %v809
        %v882 = vunpack.c.l.b16 %v810
        %v883 = vunpack.c.l.b16 %v811
        %v884 = vunpack.c.l.b16 %v812
        %v885 = vunpack.c.l.b16 %v813
        %v886 = vunpack.c.l.b16 %v814
        %v887 = vunpack.c.l.b16 %v815
        %v888 = vunpack.c.l.b16 %v816
        %v889 = vpack.c.b16 %v874, %v873
        %v890 = vpack.c.b16 %v876, %v875
        %v891 = vpack.c.b16 %v878, %v877
        %v892 = vpack.c.b16 %v880, %v879
        %v893 = vpack.c.b16 %v882, %v881
        %v894 = vpack.c.b16 %v884, %v883
        %v895 = vpack.c.b16 %v886, %v885
        %v896 = vpack.c.b16 %v888, %v887
        %905 = vmatpush.bf16.msra.mxu0 %v896
        %906 = vmatpush.bf16.msra.mxu0 %v895
        %907 = vmatpush.bf16.msra.mxu0 %v894
        %908 = vmatpush.bf16.msra.mxu0 %v893
        %909 = vmatpush.bf16.msra.mxu0 %v892
        %910 = vmatpush.bf16.msra.mxu0 %v891
        %911 = vmatpush.bf16.msra.mxu0 %v890
        %912 = vmatpush.bf16.msra.mxu0 %v889
        %913 = vmatmul.bf16.gmra.mxu0 %v837
        %v914 = vpop.f32.mrf.mxu0
        %v915 = vadd.f32 0.0, %v914
        %v916 = vpop.f32.mrf.mxu0
        %v917 = vadd.f32 0.0, %v916
        %918 = vmatmul.bf16.gmra.mxu0 %v838
        %v919 = vpop.f32.mrf.mxu0
        %v920 = vadd.f32 0.0, %v919
        %v921 = vpop.f32.mrf.mxu0
        %v922 = vadd.f32 0.0, %v921
        %923 = vmatmul.bf16.gmra.mxu0 %v839
        %v924 = vpop.f32.mrf.mxu0
        %v925 = vadd.f32 0.0, %v924
        %v926 = vpop.f32.mrf.mxu0
        %v927 = vadd.f32 0.0, %v926
        %928 = vmatmul.bf16.gmra.mxu0 %v840
        %v929 = vpop.f32.mrf.mxu0
        %v930 = vadd.f32 0.0, %v929
        %v931 = vpop.f32.mrf.mxu0
        %v932 = vadd.f32 0.0, %v931
        %933 = vmatmul.bf16.gmra.mxu0 %v841
        %v934 = vpop.f32.mrf.mxu0
        %v935 = vadd.f32 0.0, %v934
        %v936 = vpop.f32.mrf.mxu0
        %v937 = vadd.f32 0.0, %v936
        %938 = vmatmul.bf16.gmra.mxu0 %v842
        %v939 = vpop.f32.mrf.mxu0
        %v940 = vadd.f32 0.0, %v939
        %v941 = vpop.f32.mrf.mxu0
        %v942 = vadd.f32 0.0, %v941
        %943 = vmatmul.bf16.gmra.mxu0 %v843
        %v944 = vpop.f32.mrf.mxu0
        %v945 = vadd.f32 0.0, %v944
        %v946 = vpop.f32.mrf.mxu0
        %v947 = vadd.f32 0.0, %v946
        %948 = vmatmul.bf16.gmra.mxu0 %v844
        %v949 = vpop.f32.mrf.mxu0
        %v950 = vadd.f32 0.0, %v949
        %v951 = vpop.f32.mrf.mxu0
        %v952 = vadd.f32 0.0, %v951
        %953 = vmatmul.bf16.gmra.mxu0 %v845
        %v954 = vpop.f32.mrf.mxu0
        %v955 = vadd.f32 0.0, %v954
        %v956 = vpop.f32.mrf.mxu0
        %v957 = vadd.f32 0.0, %v956
        %958 = vmatmul.bf16.gmra.mxu0 %v846
        %v959 = vpop.f32.mrf.mxu0
        %v960 = vadd.f32 0.0, %v959
        %v961 = vpop.f32.mrf.mxu0
        %v962 = vadd.f32 0.0, %v961
        %963 = vdwg.mxu0
        %v984 = vunpack.c.l.b16 %v511
        %v985 = vunpack.c.l.b16 %v512
        %v986 = vunpack.c.l.b16 %v513
        %v987 = vunpack.c.l.b16 %v514
        %v988 = vunpack.c.l.b16 %v515
        %v989 = vunpack.c.l.b16 %v516
        %v990 = vunpack.c.l.b16 %v517
        %v991 = vunpack.c.l.b16 %v518
        %v992 = vunpack.c.l.b16 %v519
        %v993 = vunpack.c.l.b16 %v520
        %v994 = vunpack.c.l.b16 %v521
        %v995 = vunpack.c.l.b16 %v522
        %v996 = vunpack.c.l.b16 %v523
        %v997 = vunpack.c.l.b16 %v524
        %v998 = vunpack.c.l.b16 %v525
        %v999 = vunpack.c.l.b16 %v526
        %v1000 = vunpack.c.l.b16 %v527
        %v1001 = vunpack.c.l.b16 %v528
        %v1002 = vunpack.c.l.b16 %v529
        %v1003 = vunpack.c.l.b16 %v530
        %v1004 = vpack.c.b16 %v985, %v984
        %v1005 = vpack.c.b16 %v987, %v986
        %v1006 = vpack.c.b16 %v989, %v988
        %v1007 = vpack.c.b16 %v991, %v990
        %v1008 = vpack.c.b16 %v993, %v992
        %v1009 = vpack.c.b16 %v995, %v994
        %v1010 = vpack.c.b16 %v997, %v996
        %v1011 = vpack.c.b16 %v999, %v998
        %v1012 = vpack.c.b16 %v1001, %v1000
        %v1013 = vpack.c.b16 %v1003, %v1002
        %v1040 = vunpack.c.l.b16 %v531
        %v1041 = vunpack.c.l.b16 %v532
        %v1042 = vunpack.c.l.b16 %v533
        %v1043 = vunpack.c.l.b16 %v534
        %v1044 = vunpack.c.l.b16 %v535
        %v1045 = vunpack.c.l.b16 %v536
        %v1046 = vunpack.c.l.b16 %v537
        %v1047 = vunpack.c.l.b16 %v538
        %v1048 = vunpack.c.l.b16 %v539
        %v1049 = vunpack.c.l.b16 %v540
        %v1050 = vunpack.c.l.b16 %v541
        %v1051 = vunpack.c.l.b16 %v542
        %v1052 = vunpack.c.l.b16 %v543
        %v1053 = vunpack.c.l.b16 %v544
        %v1054 = vunpack.c.l.b16 %v545
        %v1055 = vunpack.c.l.b16 %v546
        %v1056 = vpack.c.b16 %v1041, %v1040
        %v1057 = vpack.c.b16 %v1043, %v1042
        %v1058 = vpack.c.b16 %v1045, %v1044
        %v1059 = vpack.c.b16 %v1047, %v1046
        %v1060 = vpack.c.b16 %v1049, %v1048
        %v1061 = vpack.c.b16 %v1051, %v1050
        %v1062 = vpack.c.b16 %v1053, %v1052
        %v1063 = vpack.c.b16 %v1055, %v1054
        %1072 = vmatpush.bf16.msra.mxu0 %v1063
        %1073 = vmatpush.bf16.msra.mxu0 %v1062
        %1074 = vmatpush.bf16.msra.mxu0 %v1061
        %1075 = vmatpush.bf16.msra.mxu0 %v1060
        %1076 = vmatpush.bf16.msra.mxu0 %v1059
        %1077 = vmatpush.bf16.msra.mxu0 %v1058
        %1078 = vmatpush.bf16.msra.mxu0 %v1057
        %1079 = vmatpush.bf16.msra.mxu0 %v1056
        %1080 = vmatmul.bf16.gmra.mxu0 %v1004
        %v1081 = vpop.f32.mrf.mxu0
        %v1082 = vadd.f32 %v915, %v1081
        %v1083 = vpop.f32.mrf.mxu0
        %v1084 = vadd.f32 %v917, %v1083
        %1085 = vmatmul.bf16.gmra.mxu0 %v1005
        %v1086 = vpop.f32.mrf.mxu0
        %v1087 = vadd.f32 %v920, %v1086
        %v1088 = vpop.f32.mrf.mxu0
        %v1089 = vadd.f32 %v922, %v1088
        %1090 = vmatmul.bf16.gmra.mxu0 %v1006
        %v1091 = vpop.f32.mrf.mxu0
        %v1092 = vadd.f32 %v925, %v1091
        %v1093 = vpop.f32.mrf.mxu0
        %v1094 = vadd.f32 %v927, %v1093
        %1095 = vmatmul.bf16.gmra.mxu0 %v1007
        %v1096 = vpop.f32.mrf.mxu0
        %v1097 = vadd.f32 %v930, %v1096
        %v1098 = vpop.f32.mrf.mxu0
        %v1099 = vadd.f32 %v932, %v1098
        %1100 = vmatmul.bf16.gmra.mxu0 %v1008
        %v1101 = vpop.f32.mrf.mxu0
        %v1102 = vadd.f32 %v935, %v1101
        %v1103 = vpop.f32.mrf.mxu0
        %v1104 = vadd.f32 %v937, %v1103
        %1105 = vmatmul.bf16.gmra.mxu0 %v1009
        %v1106 = vpop.f32.mrf.mxu0
        %v1107 = vadd.f32 %v940, %v1106
        %v1108 = vpop.f32.mrf.mxu0
        %v1109 = vadd.f32 %v942, %v1108
        %1110 = vmatmul.bf16.gmra.mxu0 %v1010
        %v1111 = vpop.f32.mrf.mxu0
        %v1112 = vadd.f32 %v945, %v1111
        %v1113 = vpop.f32.mrf.mxu0
        %v1114 = vadd.f32 %v947, %v1113
        %1115 = vmatmul.bf16.gmra.mxu0 %v1011
        %v1116 = vpop.f32.mrf.mxu0
        %v1117 = vadd.f32 %v950, %v1116
        %v1118 = vpop.f32.mrf.mxu0
        %v1119 = vadd.f32 %v952, %v1118
        %1120 = vmatmul.bf16.gmra.mxu0 %v1012
        %v1121 = vpop.f32.mrf.mxu0
        %v1122 = vadd.f32 %v955, %v1121
        %v1123 = vpop.f32.mrf.mxu0
        %v1124 = vadd.f32 %v957, %v1123
        %1125 = vmatmul.bf16.gmra.mxu0 %v1013
        %v1126 = vpop.f32.mrf.mxu0
        %v1127 = vadd.f32 %v960, %v1126
        %v1128 = vpop.f32.mrf.mxu0
        %v1129 = vadd.f32 %v962, %v1128
        %1130 = vdwg.mxu0
        %v1131 = vld [vmem:[#allocation2] sm:$0xe]
        %v1132 = vld [vmem:[#allocation2 + $0xc] sm:$0xe]
        %v1133 = vld [vmem:[#allocation2 + $0x18] sm:$0xe]
        %v1134 = vld [vmem:[#allocation2 + $0x24] sm:$0xe]
        %v1135 = vld [vmem:[#allocation2 + $0x30] sm:$0xe]
        %v1136 = vld [vmem:[#allocation2 + $0x3c] sm:$0xe]
        %v1137 = vld [vmem:[#allocation2 + $0x48] sm:$0xe]
        %v1138 = vld [vmem:[#allocation2 + $0x54] sm:$0xe]
        %v1139 = vld [vmem:[#allocation2 + $0x60] sm:$0xe]
        %v1140 = vld [vmem:[#allocation2 + $0x6c] sm:$0xe]
        %vm1161 = vcmask 1042432
        %vm1162 = vcmask 1046532
        %vm1163 = vmor %vm1161, %vm1162
        %v1164 = vrot.slane %v1131, 5
        %v1165 = vrot.slane %v1164, 4
        %v1166 = vrot.slane %v512, 5
        %v1167 = vsel %vm1163, %v1165, %v1166
        %v1168 = vrot.slane %v1166, 4
        %v1169 = vrot.slane %v547, 5
        %v1170 = vsel %vm1163, %v1168, %v1169
        %v1171 = vrot.slane %v1132, 5
        %v1172 = vrot.slane %v1171, 4
        %v1173 = vrot.slane %v514, 5
        %v1174 = vsel %vm1163, %v1172, %v1173
        %v1175 = vrot.slane %v1173, 4
        %v1176 = vrot.slane %v548, 5
        %v1177 = vsel %vm1163, %v1175, %v1176
        %v1178 = vrot.slane %v1133, 5
        %v1179 = vrot.slane %v1178, 4
        %v1180 = vrot.slane %v516, 5
        %v1181 = vsel %vm1163, %v1179, %v1180
        %v1182 = vrot.slane %v1180, 4
        %v1183 = vrot.slane %v549, 5
        %v1184 = vsel %vm1163, %v1182, %v1183
        %v1185 = vrot.slane %v1134, 5
        %v1186 = vrot.slane %v1185, 4
        %v1187 = vrot.slane %v518, 5
        %v1188 = vsel %vm1163, %v1186, %v1187
        %v1189 = vrot.slane %v1187, 4
        %v1190 = vrot.slane %v550, 5
        %v1191 = vsel %vm1163, %v1189, %v1190
        %v1192 = vrot.slane %v1135, 5
        %v1193 = vrot.slane %v1192, 4
        %v1194 = vrot.slane %v520, 5
        %v1195 = vsel %vm1163, %v1193, %v1194
        %v1196 = vrot.slane %v1194, 4
        %v1197 = vrot.slane %v551, 5
        %v1198 = vsel %vm1163, %v1196, %v1197
        %v1199 = vrot.slane %v1136, 5
        %v1200 = vrot.slane %v1199, 4
        %v1201 = vrot.slane %v522, 5
        %v1202 = vsel %vm1163, %v1200, %v1201
        %v1203 = vrot.slane %v1201, 4
        %v1204 = vrot.slane %v552, 5
        %v1205 = vsel %vm1163, %v1203, %v1204
        %v1206 = vrot.slane %v1137, 5
        %v1207 = vrot.slane %v1206, 4
        %v1208 = vrot.slane %v524, 5
        %v1209 = vsel %vm1163, %v1207, %v1208
        %v1210 = vrot.slane %v1208, 4
        %v1211 = vrot.slane %v553, 5
        %v1212 = vsel %vm1163, %v1210, %v1211
        %v1213 = vrot.slane %v1138, 5
        %v1214 = vrot.slane %v1213, 4
        %v1215 = vrot.slane %v526, 5
        %v1216 = vsel %vm1163, %v1214, %v1215
        %v1217 = vrot.slane %v1215, 4
        %v1218 = vrot.slane %v554, 5
        %v1219 = vsel %vm1163, %v1217, %v1218
        %v1220 = vrot.slane %v1139, 5
        %v1221 = vrot.slane %v1220, 4
        %v1222 = vrot.slane %v528, 5
        %v1223 = vsel %vm1163, %v1221, %v1222
        %v1224 = vrot.slane %v1222, 4
        %v1225 = vrot.slane %v555, 5
        %v1226 = vsel %vm1163, %v1224, %v1225
        %v1227 = vrot.slane %v1140, 5
        %v1228 = vrot.slane %v1227, 4
        %v1229 = vrot.slane %v530, 5
        %v1230 = vsel %vm1163, %v1228, %v1229
        %v1231 = vrot.slane %v1229, 4
        %v1232 = vrot.slane %v556, 5
        %v1233 = vsel %vm1163, %v1231, %v1232
        %s1234 = scalar_lea.vmem %s3, 128
        %v1235 = vld [vmem:[%s1234] sm:$0xf]
        %v1236 = vld [vmem:[%s1234 + $0x4] sm:$0xf]
        %v1237 = vld [vmem:[%s1234 + $0x8] sm:$0xf]
        %v1238 = vld [vmem:[%s1234 + $0xc] sm:$0xf]
        %v1239 = vld [vmem:[%s1234 + $0x10] sm:$0xf]
        %v1240 = vld [vmem:[%s1234 + $0x14] sm:$0xf]
        %v1241 = vld [vmem:[%s1234 + $0x18] sm:$0xf]
        %v1242 = vld [vmem:[%s1234 + $0x1c] sm:$0xf]
        %v1243 = vld [vmem:[%s1234 + $0x20] sm:$0xf]
        %v1244 = vld [vmem:[%s1234 + $0x24] sm:$0xf]
        %v1245 = vld [vmem:[%s1234 + $0x28] sm:$0xf]
        %v1246 = vld [vmem:[%s1234 + $0x2c] sm:$0xf]
        %v1247 = vld [vmem:[%s1234 + $0x30] sm:$0xf]
        %v1248 = vld [vmem:[%s1234 + $0x34] sm:$0xf]
        %v1249 = vld [vmem:[%s1234 + $0x38] sm:$0xf]
        %v1250 = vld [vmem:[%s1234 + $0x3c] sm:$0xf]
        %v1251 = vunpack.c.l.b16 %v1167
        %v1252 = vunpack.c.l.b16 %v1170
        %v1253 = vunpack.c.l.b16 %v1174
        %v1254 = vunpack.c.l.b16 %v1177
        %v1255 = vunpack.c.l.b16 %v1181
        %v1256 = vunpack.c.l.b16 %v1184
        %v1257 = vunpack.c.l.b16 %v1188
        %v1258 = vunpack.c.l.b16 %v1191
        %v1259 = vunpack.c.l.b16 %v1195
        %v1260 = vunpack.c.l.b16 %v1198
        %v1261 = vunpack.c.l.b16 %v1202
        %v1262 = vunpack.c.l.b16 %v1205
        %v1263 = vunpack.c.l.b16 %v1209
        %v1264 = vunpack.c.l.b16 %v1212
        %v1265 = vunpack.c.l.b16 %v1216
        %v1266 = vunpack.c.l.b16 %v1219
        %v1267 = vunpack.c.l.b16 %v1223
        %v1268 = vunpack.c.l.b16 %v1226
        %v1269 = vunpack.c.l.b16 %v1230
        %v1270 = vunpack.c.l.b16 %v1233
        %v1271 = vpack.c.b16 %v1252, %v1251
        %v1272 = vpack.c.b16 %v1254, %v1253
        %v1273 = vpack.c.b16 %v1256, %v1255
        %v1274 = vpack.c.b16 %v1258, %v1257
        %v1275 = vpack.c.b16 %v1260, %v1259
        %v1276 = vpack.c.b16 %v1262, %v1261
        %v1277 = vpack.c.b16 %v1264, %v1263
        %v1278 = vpack.c.b16 %v1266, %v1265
        %v1279 = vpack.c.b16 %v1268, %v1267
        %v1280 = vpack.c.b16 %v1270, %v1269
        %v1307 = vunpack.c.l.b16 %v1235
        %v1308 = vunpack.c.l.b16 %v1236
        %v1309 = vunpack.c.l.b16 %v1237
        %v1310 = vunpack.c.l.b16 %v1238
        %v1311 = vunpack.c.l.b16 %v1239
        %v1312 = vunpack.c.l.b16 %v1240
        %v1313 = vunpack.c.l.b16 %v1241
        %v1314 = vunpack.c.l.b16 %v1242
        %v1315 = vunpack.c.l.b16 %v1243
        %v1316 = vunpack.c.l.b16 %v1244
        %v1317 = vunpack.c.l.b16 %v1245
        %v1318 = vunpack.c.l.b16 %v1246
        %v1319 = vunpack.c.l.b16 %v1247
        %v1320 = vunpack.c.l.b16 %v1248
        %v1321 = vunpack.c.l.b16 %v1249
        %v1322 = vunpack.c.l.b16 %v1250
        %v1323 = vpack.c.b16 %v1308, %v1307
        %v1324 = vpack.c.b16 %v1310, %v1309
        %v1325 = vpack.c.b16 %v1312, %v1311
        %v1326 = vpack.c.b16 %v1314, %v1313
        %v1327 = vpack.c.b16 %v1316, %v1315
        %v1328 = vpack.c.b16 %v1318, %v1317
        %v1329 = vpack.c.b16 %v1320, %v1319
        %v1330 = vpack.c.b16 %v1322, %v1321
        %1339 = vmatpush.bf16.msra.mxu0 %v1330
        %1340 = vmatpush.bf16.msra.mxu0 %v1329
        %1341 = vmatpush.bf16.msra.mxu0 %v1328
        %1342 = vmatpush.bf16.msra.mxu0 %v1327
        %1343 = vmatpush.bf16.msra.mxu0 %v1326
        %1344 = vmatpush.bf16.msra.mxu0 %v1325
        %1345 = vmatpush.bf16.msra.mxu0 %v1324
        %1346 = vmatpush.bf16.msra.mxu0 %v1323
        %1347 = vmatmul.bf16.gmra.mxu0 %v1271
        %v1348 = vpop.f32.mrf.mxu0
        %v1349 = vadd.f32 0.0, %v1348
        %v1350 = vpop.f32.mrf.mxu0
        %v1351 = vadd.f32 0.0, %v1350
        %1352 = vmatmul.bf16.gmra.mxu0 %v1272
        %v1353 = vpop.f32.mrf.mxu0
        %v1354 = vadd.f32 0.0, %v1353
        %v1355 = vpop.f32.mrf.mxu0
        %v1356 = vadd.f32 0.0, %v1355
        %1357 = vmatmul.bf16.gmra.mxu0 %v1273
        %v1358 = vpop.f32.mrf.mxu0
        %v1359 = vadd.f32 0.0, %v1358
        %v1360 = vpop.f32.mrf.mxu0
        %v1361 = vadd.f32 0.0, %v1360
        %1362 = vmatmul.bf16.gmra.mxu0 %v1274
        %v1363 = vpop.f32.mrf.mxu0
        %v1364 = vadd.f32 0.0, %v1363
        %v1365 = vpop.f32.mrf.mxu0
        %v1366 = vadd.f32 0.0, %v1365
        %1367 = vmatmul.bf16.gmra.mxu0 %v1275
        %v1368 = vpop.f32.mrf.mxu0
        %v1369 = vadd.f32 0.0, %v1368
        %v1370 = vpop.f32.mrf.mxu0
        %v1371 = vadd.f32 0.0, %v1370
        %1372 = vmatmul.bf16.gmra.mxu0 %v1276
        %v1373 = vpop.f32.mrf.mxu0
        %v1374 = vadd.f32 0.0, %v1373
        %v1375 = vpop.f32.mrf.mxu0
        %v1376 = vadd.f32 0.0, %v1375
        %1377 = vmatmul.bf16.gmra.mxu0 %v1277
        %v1378 = vpop.f32.mrf.mxu0
        %v1379 = vadd.f32 0.0, %v1378
        %v1380 = vpop.f32.mrf.mxu0
        %v1381 = vadd.f32 0.0, %v1380
        %1382 = vmatmul.bf16.gmra.mxu0 %v1278
        %v1383 = vpop.f32.mrf.mxu0
        %v1384 = vadd.f32 0.0, %v1383
        %v1385 = vpop.f32.mrf.mxu0
        %v1386 = vadd.f32 0.0, %v1385
        %1387 = vmatmul.bf16.gmra.mxu0 %v1279
        %v1388 = vpop.f32.mrf.mxu0
        %v1389 = vadd.f32 0.0, %v1388
        %v1390 = vpop.f32.mrf.mxu0
        %v1391 = vadd.f32 0.0, %v1390
        %1392 = vmatmul.bf16.gmra.mxu0 %v1280
        %v1393 = vpop.f32.mrf.mxu0
        %v1394 = vadd.f32 0.0, %v1393
        %v1395 = vpop.f32.mrf.mxu0
        %v1396 = vadd.f32 0.0, %v1395
        %1397 = vdwg.mxu0
        %v1398 = vadd.f32 %v1082, %v1349
        %v1399 = vadd.f32 %v1084, %v1351
        %v1400 = vadd.f32 %v1087, %v1354
        %v1401 = vadd.f32 %v1089, %v1356
        %v1402 = vadd.f32 %v1092, %v1359
        %v1403 = vadd.f32 %v1094, %v1361
        %v1404 = vadd.f32 %v1097, %v1364
        %v1405 = vadd.f32 %v1099, %v1366
        %v1406 = vadd.f32 %v1102, %v1369
        %v1407 = vadd.f32 %v1104, %v1371
        %v1408 = vadd.f32 %v1107, %v1374
        %v1409 = vadd.f32 %v1109, %v1376
        %v1410 = vadd.f32 %v1112, %v1379
        %v1411 = vadd.f32 %v1114, %v1381
        %v1412 = vadd.f32 %v1117, %v1384
        %v1413 = vadd.f32 %v1119, %v1386
        %v1414 = vadd.f32 %v1122, %v1389
        %v1415 = vadd.f32 %v1124, %v1391
        %v1416 = vadd.f32 %v1127, %v1394
        %v1417 = vadd.f32 %v1129, %v1396
        %s1418 = scalar_lea.vmem [#allocation2], 12
        %v1419 = vld [vmem:[%s1418] sm:$0xf]
        %v1420 = vld [vmem:[%s1418 + $0x4] sm:$0xf]
        %v1421 = vld [vmem:[%s1418 + $0xc] sm:$0xf]
        %v1422 = vld [vmem:[%s1418 + $0x10] sm:$0xf]
        %v1423 = vld [vmem:[%s1418 + $0x18] sm:$0xf]
        %v1424 = vld [vmem:[%s1418 + $0x1c] sm:$0xf]
        %v1425 = vld [vmem:[%s1418 + $0x24] sm:$0xf]
        %v1426 = vld [vmem:[%s1418 + $0x28] sm:$0xf]
        %v1427 = vld [vmem:[%s1418 + $0x30] sm:$0xf]
        %v1428 = vld [vmem:[%s1418 + $0x34] sm:$0xf]
        %v1429 = vld [vmem:[%s1418 + $0x3c] sm:$0xf]
        %v1430 = vld [vmem:[%s1418 + $0x40] sm:$0xf]
        %v1431 = vld [vmem:[%s1418 + $0x48] sm:$0xf]
        %v1432 = vld [vmem:[%s1418 + $0x4c] sm:$0xf]
        %v1433 = vld [vmem:[%s1418 + $0x54] sm:$0xf]
        %v1434 = vld [vmem:[%s1418 + $0x58] sm:$0xf]
        %v1435 = vld [vmem:[%s1418 + $0x60] sm:$0xf]
        %v1436 = vld [vmem:[%s1418 + $0x64] sm:$0xf]
        %v1437 = vld [vmem:[%s1418 + $0x6c] sm:$0xf]
        %v1438 = vld [vmem:[%s1418 + $0x70] sm:$0xf]
        %s1439 = scalar_lea.vmem %s3, 192
        %v1440 = vld [vmem:[%s1439] sm:$0xf]
        %v1441 = vld [vmem:[%s1439 + $0x4] sm:$0xf]
        %v1442 = vld [vmem:[%s1439 + $0x8] sm:$0xf]
        %v1443 = vld [vmem:[%s1439 + $0xc] sm:$0xf]
        %v1444 = vld [vmem:[%s1439 + $0x10] sm:$0xf]
        %v1445 = vld [vmem:[%s1439 + $0x14] sm:$0xf]
        %v1446 = vld [vmem:[%s1439 + $0x18] sm:$0xf]
        %v1447 = vld [vmem:[%s1439 + $0x1c] sm:$0xf]
        %v1448 = vld [vmem:[%s1439 + $0x20] sm:$0xf]
        %v1449 = vld [vmem:[%s1439 + $0x24] sm:$0xf]
        %v1450 = vld [vmem:[%s1439 + $0x28] sm:$0xf]
        %v1451 = vld [vmem:[%s1439 + $0x2c] sm:$0xf]
        %v1452 = vld [vmem:[%s1439 + $0x30] sm:$0xf]
        %v1453 = vld [vmem:[%s1439 + $0x34] sm:$0xf]
        %v1454 = vld [vmem:[%s1439 + $0x38] sm:$0xf]
        %v1455 = vld [vmem:[%s1439 + $0x3c] sm:$0xf]
        %v1476 = vunpack.c.l.b16 %v1419
        %v1477 = vunpack.c.l.b16 %v1420
        %v1478 = vunpack.c.l.b16 %v1421
        %v1479 = vunpack.c.l.b16 %v1422
        %v1480 = vunpack.c.l.b16 %v1423
        %v1481 = vunpack.c.l.b16 %v1424
        %v1482 = vunpack.c.l.b16 %v1425
        %v1483 = vunpack.c.l.b16 %v1426
        %v1484 = vunpack.c.l.b16 %v1427
        %v1485 = vunpack.c.l.b16 %v1428
        %v1486 = vunpack.c.l.b16 %v1429
        %v1487 = vunpack.c.l.b16 %v1430
        %v1488 = vunpack.c.l.b16 %v1431
        %v1489 = vunpack.c.l.b16 %v1432
        %v1490 = vunpack.c.l.b16 %v1433
        %v1491 = vunpack.c.l.b16 %v1434
        %v1492 = vunpack.c.l.b16 %v1435
        %v1493 = vunpack.c.l.b16 %v1436
        %v1494 = vunpack.c.l.b16 %v1437
        %v1495 = vunpack.c.l.b16 %v1438
        %v1496 = vpack.c.b16 %v1477, %v1476
        %v1497 = vpack.c.b16 %v1479, %v1478
        %v1498 = vpack.c.b16 %v1481, %v1480
        %v1499 = vpack.c.b16 %v1483, %v1482
        %v1500 = vpack.c.b16 %v1485, %v1484
        %v1501 = vpack.c.b16 %v1487, %v1486
        %v1502 = vpack.c.b16 %v1489, %v1488
        %v1503 = vpack.c.b16 %v1491, %v1490
        %v1504 = vpack.c.b16 %v1493, %v1492
        %v1505 = vpack.c.b16 %v1495, %v1494
        %v1532 = vunpack.c.l.b16 %v1440
        %v1533 = vunpack.c.l.b16 %v1441
        %v1534 = vunpack.c.l.b16 %v1442
        %v1535 = vunpack.c.l.b16 %v1443
        %v1536 = vunpack.c.l.b16 %v1444
        %v1537 = vunpack.c.l.b16 %v1445
        %v1538 = vunpack.c.l.b16 %v1446
        %v1539 = vunpack.c.l.b16 %v1447
        %v1540 = vunpack.c.l.b16 %v1448
        %v1541 = vunpack.c.l.b16 %v1449
        %v1542 = vunpack.c.l.b16 %v1450
        %v1543 = vunpack.c.l.b16 %v1451
        %v1544 = vunpack.c.l.b16 %v1452
        %v1545 = vunpack.c.l.b16 %v1453
        %v1546 = vunpack.c.l.b16 %v1454
        %v1547 = vunpack.c.l.b16 %v1455
        %v1548 = vpack.c.b16 %v1533, %v1532
        %v1549 = vpack.c.b16 %v1535, %v1534
        %v1550 = vpack.c.b16 %v1537, %v1536
        %v1551 = vpack.c.b16 %v1539, %v1538
        %v1552 = vpack.c.b16 %v1541, %v1540
        %v1553 = vpack.c.b16 %v1543, %v1542
        %v1554 = vpack.c.b16 %v1545, %v1544
        %v1555 = vpack.c.b16 %v1547, %v1546
        %1564 = vmatpush.bf16.msra.mxu0 %v1555
        %1565 = vmatpush.bf16.msra.mxu0 %v1554
        %1566 = vmatpush.bf16.msra.mxu0 %v1553
        %1567 = vmatpush.bf16.msra.mxu0 %v1552
        %1568 = vmatpush.bf16.msra.mxu0 %v1551
        %1569 = vmatpush.bf16.msra.mxu0 %v1550
        %1570 = vmatpush.bf16.msra.mxu0 %v1549
        %1571 = vmatpush.bf16.msra.mxu0 %v1548
        %1572 = vmatmul.bf16.gmra.mxu0 %v1496
        %v1573 = vpop.f32.mrf.mxu0
        %v1574 = vadd.f32 0.0, %v1573
        %v1575 = vpop.f32.mrf.mxu0
        %v1576 = vadd.f32 0.0, %v1575
        %1577 = vmatmul.bf16.gmra.mxu0 %v1497
        %v1578 = vpop.f32.mrf.mxu0
        %v1579 = vadd.f32 0.0, %v1578
        %v1580 = vpop.f32.mrf.mxu0
        %v1581 = vadd.f32 0.0, %v1580
        %1582 = vmatmul.bf16.gmra.mxu0 %v1498
        %v1583 = vpop.f32.mrf.mxu0
        %v1584 = vadd.f32 0.0, %v1583
        %v1585 = vpop.f32.mrf.mxu0
        %v1586 = vadd.f32 0.0, %v1585
        %1587 = vmatmul.bf16.gmra.mxu0 %v1499
        %v1588 = vpop.f32.mrf.mxu0
        %v1589 = vadd.f32 0.0, %v1588
        %v1590 = vpop.f32.mrf.mxu0
        %v1591 = vadd.f32 0.0, %v1590
        %1592 = vmatmul.bf16.gmra.mxu0 %v1500
        %v1593 = vpop.f32.mrf.mxu0
        %v1594 = vadd.f32 0.0, %v1593
        %v1595 = vpop.f32.mrf.mxu0
        %v1596 = vadd.f32 0.0, %v1595
        %1597 = vmatmul.bf16.gmra.mxu0 %v1501
        %v1598 = vpop.f32.mrf.mxu0
        %v1599 = vadd.f32 0.0, %v1598
        %v1600 = vpop.f32.mrf.mxu0
        %v1601 = vadd.f32 0.0, %v1600
        %1602 = vmatmul.bf16.gmra.mxu0 %v1502
        %v1603 = vpop.f32.mrf.mxu0
        %v1604 = vadd.f32 0.0, %v1603
        %v1605 = vpop.f32.mrf.mxu0
        %v1606 = vadd.f32 0.0, %v1605
        %1607 = vmatmul.bf16.gmra.mxu0 %v1503
        %v1608 = vpop.f32.mrf.mxu0
        %v1609 = vadd.f32 0.0, %v1608
        %v1610 = vpop.f32.mrf.mxu0
        %v1611 = vadd.f32 0.0, %v1610
        %1612 = vmatmul.bf16.gmra.mxu0 %v1504
        %v1613 = vpop.f32.mrf.mxu0
        %v1614 = vadd.f32 0.0, %v1613
        %v1615 = vpop.f32.mrf.mxu0
        %v1616 = vadd.f32 0.0, %v1615
        %1617 = vmatmul.bf16.gmra.mxu0 %v1505
        %v1618 = vpop.f32.mrf.mxu0
        %v1619 = vadd.f32 0.0, %v1618
        %v1620 = vpop.f32.mrf.mxu0
        %v1621 = vadd.f32 0.0, %v1620
        %1622 = vdwg.mxu0
        %v1623 = vadd.f32 %v1398, %v1574
        %v1624 = vadd.f32 %v1399, %v1576
        %v1625 = vadd.f32 %v1400, %v1579
        %v1626 = vadd.f32 %v1401, %v1581
        %v1627 = vadd.f32 %v1402, %v1584
        %v1628 = vadd.f32 %v1403, %v1586
        %v1629 = vadd.f32 %v1404, %v1589
        %v1630 = vadd.f32 %v1405, %v1591
        %v1631 = vadd.f32 %v1406, %v1594
        %v1632 = vadd.f32 %v1407, %v1596
        %v1633 = vadd.f32 %v1408, %v1599
        %v1634 = vadd.f32 %v1409, %v1601
        %v1635 = vadd.f32 %v1410, %v1604
        %v1636 = vadd.f32 %v1411, %v1606
        %v1637 = vadd.f32 %v1412, %v1609
        %v1638 = vadd.f32 %v1413, %v1611
        %v1639 = vadd.f32 %v1414, %v1614
        %v1640 = vadd.f32 %v1415, %v1616
        %v1641 = vadd.f32 %v1416, %v1619
        %v1642 = vadd.f32 %v1417, %v1621
        %v1643 = vld [vmem:[%s1418] sm:$0xf]
        %v1644 = vld [vmem:[%s1418 + $0x4] sm:$0xf]
        %v1645 = vld [vmem:[%s1418 + $0x8] sm:$0x1]
        %v1646 = vld [vmem:[%s1418 + $0xc] sm:$0xf]
        %v1647 = vld [vmem:[%s1418 + $0x10] sm:$0xf]
        %v1648 = vld [vmem:[%s1418 + $0x14] sm:$0x1]
        %v1649 = vld [vmem:[%s1418 + $0x18] sm:$0xf]
        %v1650 = vld [vmem:[%s1418 + $0x1c] sm:$0xf]
        %v1651 = vld [vmem:[%s1418 + $0x20] sm:$0x1]
        %v1652 = vld [vmem:[%s1418 + $0x24] sm:$0xf]
        %v1653 = vld [vmem:[%s1418 + $0x28] sm:$0xf]
        %v1654 = vld [vmem:[%s1418 + $0x2c] sm:$0x1]
        %v1655 = vld [vmem:[%s1418 + $0x30] sm:$0xf]
        %v1656 = vld [vmem:[%s1418 + $0x34] sm:$0xf]
        %v1657 = vld [vmem:[%s1418 + $0x38] sm:$0x1]
        %v1658 = vld [vmem:[%s1418 + $0x3c] sm:$0xf]
        %v1659 = vld [vmem:[%s1418 + $0x40] sm:$0xf]
        %v1660 = vld [vmem:[%s1418 + $0x44] sm:$0x1]
        %v1661 = vld [vmem:[%s1418 + $0x48] sm:$0xf]
        %v1662 = vld [vmem:[%s1418 + $0x4c] sm:$0xf]
        %v1663 = vld [vmem:[%s1418 + $0x50] sm:$0x1]
        %v1664 = vld [vmem:[%s1418 + $0x54] sm:$0xf]
        %v1665 = vld [vmem:[%s1418 + $0x58] sm:$0xf]
        %v1666 = vld [vmem:[%s1418 + $0x5c] sm:$0x1]
        %v1667 = vld [vmem:[%s1418 + $0x60] sm:$0xf]
        %v1668 = vld [vmem:[%s1418 + $0x64] sm:$0xf]
        %v1669 = vld [vmem:[%s1418 + $0x68] sm:$0x1]
        %v1670 = vld [vmem:[%s1418 + $0x6c] sm:$0xf]
        %v1671 = vld [vmem:[%s1418 + $0x70] sm:$0xf]
        %v1672 = vld [vmem:[%s1418 + $0x74] sm:$0x1]
        %v1674 = vshrl.u32 %v1643, 16
        %v1676 = vrot.slane %v1674, 4
        %v1677 = vshll.u32 %v1643, 16
        %v1679 = vrot.slane %v1677, 5
        %v1680 = vor.u32 %v1676, %v1679
        %v1681 = vrot.slane %v1680, 4
        %v1683 = vshll.u32 %v1644, 16
        %v1685 = vrot.slane %v1683, 5
        %v1686 = vsel %vm559, %v1681, %v1685
        %v1687 = vshrl.u32 %v1644, 16
        %v1689 = vrot.slane %v1687, 4
        %v1690 = vor.u32 %v1689, %v1685
        %v1691 = vrot.slane %v1690, 4
        %v1693 = vshll.u32 %v1645, 16
        %v1695 = vrot.slane %v1693, 5
        %v1696 = vsel %vm559, %v1691, %v1695
        %v1698 = vshrl.u32 %v1646, 16
        %v1700 = vrot.slane %v1698, 4
        %v1701 = vshll.u32 %v1646, 16
        %v1703 = vrot.slane %v1701, 5
        %v1704 = vor.u32 %v1700, %v1703
        %v1705 = vrot.slane %v1704, 4
        %v1707 = vshll.u32 %v1647, 16
        %v1709 = vrot.slane %v1707, 5
        %v1710 = vsel %vm559, %v1705, %v1709
        %v1711 = vshrl.u32 %v1647, 16
        %v1713 = vrot.slane %v1711, 4
        %v1714 = vor.u32 %v1713, %v1709
        %v1715 = vrot.slane %v1714, 4
        %v1717 = vshll.u32 %v1648, 16
        %v1719 = vrot.slane %v1717, 5
        %v1720 = vsel %vm559, %v1715, %v1719
        %v1722 = vshrl.u32 %v1649, 16
        %v1724 = vrot.slane %v1722, 4
        %v1725 = vshll.u32 %v1649, 16
        %v1727 = vrot.slane %v1725, 5
        %v1728 = vor.u32 %v1724, %v1727
        %v1729 = vrot.slane %v1728, 4
        %v1731 = vshll.u32 %v1650, 16
        %v1733 = vrot.slane %v1731, 5
        %v1734 = vsel %vm559, %v1729, %v1733
        %v1735 = vshrl.u32 %v1650, 16
        %v1737 = vrot.slane %v1735, 4
        %v1738 = vor.u32 %v1737, %v1733
        %v1739 = vrot.slane %v1738, 4
        %v1741 = vshll.u32 %v1651, 16
        %v1743 = vrot.slane %v1741, 5
        %v1744 = vsel %vm559, %v1739, %v1743
        %v1746 = vshrl.u32 %v1652, 16
        %v1748 = vrot.slane %v1746, 4
        %v1749 = vshll.u32 %v1652, 16
        %v1751 = vrot.slane %v1749, 5
        %v1752 = vor.u32 %v1748, %v1751
        %v1753 = vrot.slane %v1752, 4
        %v1755 = vshll.u32 %v1653, 16
        %v1757 = vrot.slane %v1755, 5
        %v1758 = vsel %vm559, %v1753, %v1757
        %v1759 = vshrl.u32 %v1653, 16
        %v1761 = vrot.slane %v1759, 4
        %v1762 = vor.u32 %v1761, %v1757
        %v1763 = vrot.slane %v1762, 4
        %v1765 = vshll.u32 %v1654, 16
        %v1767 = vrot.slane %v1765, 5
        %v1768 = vsel %vm559, %v1763, %v1767
        %v1770 = vshrl.u32 %v1655, 16
        %v1772 = vrot.slane %v1770, 4
        %v1773 = vshll.u32 %v1655, 16
        %v1775 = vrot.slane %v1773, 5
        %v1776 = vor.u32 %v1772, %v1775
        %v1777 = vrot.slane %v1776, 4
        %v1779 = vshll.u32 %v1656, 16
        %v1781 = vrot.slane %v1779, 5
        %v1782 = vsel %vm559, %v1777, %v1781
        %v1783 = vshrl.u32 %v1656, 16
        %v1785 = vrot.slane %v1783, 4
        %v1786 = vor.u32 %v1785, %v1781
        %v1787 = vrot.slane %v1786, 4
        %v1789 = vshll.u32 %v1657, 16
        %v1791 = vrot.slane %v1789, 5
        %v1792 = vsel %vm559, %v1787, %v1791
        %v1794 = vshrl.u32 %v1658, 16
        %v1796 = vrot.slane %v1794, 4
        %v1797 = vshll.u32 %v1658, 16
        %v1799 = vrot.slane %v1797, 5
        %v1800 = vor.u32 %v1796, %v1799
        %v1801 = vrot.slane %v1800, 4
        %v1803 = vshll.u32 %v1659, 16
        %v1805 = vrot.slane %v1803, 5
        %v1806 = vsel %vm559, %v1801, %v1805
        %v1807 = vshrl.u32 %v1659, 16
        %v1809 = vrot.slane %v1807, 4
        %v1810 = vor.u32 %v1809, %v1805
        %v1811 = vrot.slane %v1810, 4
        %v1813 = vshll.u32 %v1660, 16
        %v1815 = vrot.slane %v1813, 5
        %v1816 = vsel %vm559, %v1811, %v1815
        %v1818 = vshrl.u32 %v1661, 16
        %v1820 = vrot.slane %v1818, 4
        %v1821 = vshll.u32 %v1661, 16
        %v1823 = vrot.slane %v1821, 5
        %v1824 = vor.u32 %v1820, %v1823
        %v1825 = vrot.slane %v1824, 4
        %v1827 = vshll.u32 %v1662, 16
        %v1829 = vrot.slane %v1827, 5
        %v1830 = vsel %vm559, %v1825, %v1829
        %v1831 = vshrl.u32 %v1662, 16
        %v1833 = vrot.slane %v1831, 4
        %v1834 = vor.u32 %v1833, %v1829
        %v1835 = vrot.slane %v1834, 4
        %v1837 = vshll.u32 %v1663, 16
        %v1839 = vrot.slane %v1837, 5
        %v1840 = vsel %vm559, %v1835, %v1839
        %v1842 = vshrl.u32 %v1664, 16
        %v1844 = vrot.slane %v1842, 4
        %v1845 = vshll.u32 %v1664, 16
        %v1847 = vrot.slane %v1845, 5
        %v1848 = vor.u32 %v1844, %v1847
        %v1849 = vrot.slane %v1848, 4
        %v1851 = vshll.u32 %v1665, 16
        %v1853 = vrot.slane %v1851, 5
        %v1854 = vsel %vm559, %v1849, %v1853
        %v1855 = vshrl.u32 %v1665, 16
        %v1857 = vrot.slane %v1855, 4
        %v1858 = vor.u32 %v1857, %v1853
        %v1859 = vrot.slane %v1858, 4
        %v1861 = vshll.u32 %v1666, 16
        %v1863 = vrot.slane %v1861, 5
        %v1864 = vsel %vm559, %v1859, %v1863
        %v1866 = vshrl.u32 %v1667, 16
        %v1868 = vrot.slane %v1866, 4
        %v1869 = vshll.u32 %v1667, 16
        %v1871 = vrot.slane %v1869, 5
        %v1872 = vor.u32 %v1868, %v1871
        %v1873 = vrot.slane %v1872, 4
        %v1875 = vshll.u32 %v1668, 16
        %v1877 = vrot.slane %v1875, 5
        %v1878 = vsel %vm559, %v1873, %v1877
        %v1879 = vshrl.u32 %v1668, 16
        %v1881 = vrot.slane %v1879, 4
        %v1882 = vor.u32 %v1881, %v1877
        %v1883 = vrot.slane %v1882, 4
        %v1885 = vshll.u32 %v1669, 16
        %v1887 = vrot.slane %v1885, 5
        %v1888 = vsel %vm559, %v1883, %v1887
        %v1890 = vshrl.u32 %v1670, 16
        %v1892 = vrot.slane %v1890, 4
        %v1893 = vshll.u32 %v1670, 16
        %v1895 = vrot.slane %v1893, 5
        %v1896 = vor.u32 %v1892, %v1895
        %v1897 = vrot.slane %v1896, 4
        %v1899 = vshll.u32 %v1671, 16
        %v1901 = vrot.slane %v1899, 5
        %v1902 = vsel %vm559, %v1897, %v1901
        %v1903 = vshrl.u32 %v1671, 16
        %v1905 = vrot.slane %v1903, 4
        %v1906 = vor.u32 %v1905, %v1901
        %v1907 = vrot.slane %v1906, 4
        %v1909 = vshll.u32 %v1672, 16
        %v1911 = vrot.slane %v1909, 5
        %v1912 = vsel %vm559, %v1907, %v1911
        %s1913 = scalar_lea.vmem %s3, 256
        %v1914 = vld [vmem:[%s1913] sm:$0xf]
        %v1915 = vld [vmem:[%s1913 + $0x4] sm:$0xf]
        %v1916 = vld [vmem:[%s1913 + $0x8] sm:$0xf]
        %v1917 = vld [vmem:[%s1913 + $0xc] sm:$0xf]
        %v1918 = vld [vmem:[%s1913 + $0x10] sm:$0xf]
        %v1919 = vld [vmem:[%s1913 + $0x14] sm:$0xf]
        %v1920 = vld [vmem:[%s1913 + $0x18] sm:$0xf]
        %v1921 = vld [vmem:[%s1913 + $0x1c] sm:$0xf]
        %v1922 = vld [vmem:[%s1913 + $0x20] sm:$0xf]
        %v1923 = vld [vmem:[%s1913 + $0x24] sm:$0xf]
        %v1924 = vld [vmem:[%s1913 + $0x28] sm:$0xf]
        %v1925 = vld [vmem:[%s1913 + $0x2c] sm:$0xf]
        %v1926 = vld [vmem:[%s1913 + $0x30] sm:$0xf]
        %v1927 = vld [vmem:[%s1913 + $0x34] sm:$0xf]
        %v1928 = vld [vmem:[%s1913 + $0x38] sm:$0xf]
        %v1929 = vld [vmem:[%s1913 + $0x3c] sm:$0xf]
        %v1930 = vunpack.c.l.b16 %v1686
        %v1931 = vunpack.c.l.b16 %v1696
        %v1932 = vunpack.c.l.b16 %v1710
        %v1933 = vunpack.c.l.b16 %v1720
        %v1934 = vunpack.c.l.b16 %v1734
        %v1935 = vunpack.c.l.b16 %v1744
        %v1936 = vunpack.c.l.b16 %v1758
        %v1937 = vunpack.c.l.b16 %v1768
        %v1938 = vunpack.c.l.b16 %v1782
        %v1939 = vunpack.c.l.b16 %v1792
        %v1940 = vunpack.c.l.b16 %v1806
        %v1941 = vunpack.c.l.b16 %v1816
        %v1942 = vunpack.c.l.b16 %v1830
        %v1943 = vunpack.c.l.b16 %v1840
        %v1944 = vunpack.c.l.b16 %v1854
        %v1945 = vunpack.c.l.b16 %v1864
        %v1946 = vunpack.c.l.b16 %v1878
        %v1947 = vunpack.c.l.b16 %v1888
        %v1948 = vunpack.c.l.b16 %v1902
        %v1949 = vunpack.c.l.b16 %v1912
        %v1950 = vpack.c.b16 %v1931, %v1930
        %v1951 = vpack.c.b16 %v1933, %v1932
        %v1952 = vpack.c.b16 %v1935, %v1934
        %v1953 = vpack.c.b16 %v1937, %v1936
        %v1954 = vpack.c.b16 %v1939, %v1938
        %v1955 = vpack.c.b16 %v1941, %v1940
        %v1956 = vpack.c.b16 %v1943, %v1942
        %v1957 = vpack.c.b16 %v1945, %v1944
        %v1958 = vpack.c.b16 %v1947, %v1946
        %v1959 = vpack.c.b16 %v1949, %v1948
        %v1986 = vunpack.c.l.b16 %v1914
        %v1987 = vunpack.c.l.b16 %v1915
        %v1988 = vunpack.c.l.b16 %v1916
        %v1989 = vunpack.c.l.b16 %v1917
        %v1990 = vunpack.c.l.b16 %v1918
        %v1991 = vunpack.c.l.b16 %v1919
        %v1992 = vunpack.c.l.b16 %v1920
        %v1993 = vunpack.c.l.b16 %v1921
        %v1994 = vunpack.c.l.b16 %v1922
        %v1995 = vunpack.c.l.b16 %v1923
        %v1996 = vunpack.c.l.b16 %v1924
        %v1997 = vunpack.c.l.b16 %v1925
        %v1998 = vunpack.c.l.b16 %v1926
        %v1999 = vunpack.c.l.b16 %v1927
        %v2000 = vunpack.c.l.b16 %v1928
        %v2001 = vunpack.c.l.b16 %v1929
        %v2002 = vpack.c.b16 %v1987, %v1986
        %v2003 = vpack.c.b16 %v1989, %v1988
        %v2004 = vpack.c.b16 %v1991, %v1990
        %v2005 = vpack.c.b16 %v1993, %v1992
        %v2006 = vpack.c.b16 %v1995, %v1994
        %v2007 = vpack.c.b16 %v1997, %v1996
        %v2008 = vpack.c.b16 %v1999, %v1998
        %v2009 = vpack.c.b16 %v2001, %v2000
        %2018 = vmatpush.bf16.msra.mxu0 %v2009
        %2019 = vmatpush.bf16.msra.mxu0 %v2008
        %2020 = vmatpush.bf16.msra.mxu0 %v2007
        %2021 = vmatpush.bf16.msra.mxu0 %v2006
        %2022 = vmatpush.bf16.msra.mxu0 %v2005
        %2023 = vmatpush.bf16.msra.mxu0 %v2004
        %2024 = vmatpush.bf16.msra.mxu0 %v2003
        %2025 = vmatpush.bf16.msra.mxu0 %v2002
        %2026 = vmatmul.bf16.gmra.mxu0 %v1950
        %v2027 = vpop.f32.mrf.mxu0
        %v2028 = vadd.f32 0.0, %v2027
        %v2029 = vpop.f32.mrf.mxu0
        %v2030 = vadd.f32 0.0, %v2029
        %2031 = vmatmul.bf16.gmra.mxu0 %v1951
        %v2032 = vpop.f32.mrf.mxu0
        %v2033 = vadd.f32 0.0, %v2032
        %v2034 = vpop.f32.mrf.mxu0
        %v2035 = vadd.f32 0.0, %v2034
        %2036 = vmatmul.bf16.gmra.mxu0 %v1952
        %v2037 = vpop.f32.mrf.mxu0
        %v2038 = vadd.f32 0.0, %v2037
        %v2039 = vpop.f32.mrf.mxu0
        %v2040 = vadd.f32 0.0, %v2039
        %2041 = vmatmul.bf16.gmra.mxu0 %v1953
        %v2042 = vpop.f32.mrf.mxu0
        %v2043 = vadd.f32 0.0, %v2042
        %v2044 = vpop.f32.mrf.mxu0
        %v2045 = vadd.f32 0.0, %v2044
        %2046 = vmatmul.bf16.gmra.mxu0 %v1954
        %v2047 = vpop.f32.mrf.mxu0
        %v2048 = vadd.f32 0.0, %v2047
        %v2049 = vpop.f32.mrf.mxu0
        %v2050 = vadd.f32 0.0, %v2049
        %2051 = vmatmul.bf16.gmra.mxu0 %v1955
        %v2052 = vpop.f32.mrf.mxu0
        %v2053 = vadd.f32 0.0, %v2052
        %v2054 = vpop.f32.mrf.mxu0
        %v2055 = vadd.f32 0.0, %v2054
        %2056 = vmatmul.bf16.gmra.mxu0 %v1956
        %v2057 = vpop.f32.mrf.mxu0
        %v2058 = vadd.f32 0.0, %v2057
        %v2059 = vpop.f32.mrf.mxu0
        %v2060 = vadd.f32 0.0, %v2059
        %2061 = vmatmul.bf16.gmra.mxu0 %v1957
        %v2062 = vpop.f32.mrf.mxu0
        %v2063 = vadd.f32 0.0, %v2062
        %v2064 = vpop.f32.mrf.mxu0
        %v2065 = vadd.f32 0.0, %v2064
        %2066 = vmatmul.bf16.gmra.mxu0 %v1958
        %v2067 = vpop.f32.mrf.mxu0
        %v2068 = vadd.f32 0.0, %v2067
        %v2069 = vpop.f32.mrf.mxu0
        %v2070 = vadd.f32 0.0, %v2069
        %2071 = vmatmul.bf16.gmra.mxu0 %v1959
        %v2072 = vpop.f32.mrf.mxu0
        %v2073 = vadd.f32 0.0, %v2072
        %v2074 = vpop.f32.mrf.mxu0
        %v2075 = vadd.f32 0.0, %v2074
        %2076 = vdwg.mxu0
        %v2077 = vadd.f32 %v1623, %v2028
        %v2078 = vadd.f32 %v1624, %v2030
        %v2079 = vadd.f32 %v1625, %v2033
        %v2080 = vadd.f32 %v1626, %v2035
        %v2081 = vadd.f32 %v1627, %v2038
        %v2082 = vadd.f32 %v1628, %v2040
        %v2083 = vadd.f32 %v1629, %v2043
        %v2084 = vadd.f32 %v1630, %v2045
        %v2085 = vadd.f32 %v1631, %v2048
        %v2086 = vadd.f32 %v1632, %v2050
        %v2087 = vadd.f32 %v1633, %v2053
        %v2088 = vadd.f32 %v1634, %v2055
        %v2089 = vadd.f32 %v1635, %v2058
        %v2090 = vadd.f32 %v1636, %v2060
        %v2091 = vadd.f32 %v1637, %v2063
        %v2092 = vadd.f32 %v1638, %v2065
        %v2093 = vadd.f32 %v1639, %v2068
        %v2094 = vadd.f32 %v1640, %v2070
        %v2095 = vadd.f32 %v1641, %v2073
        %v2096 = vadd.f32 %v1642, %v2075
        %v2097 = vld [vmem:[%s1418] sm:$0xe]
        %v2098 = vld [vmem:[%s1418 + $0xc] sm:$0xe]
        %v2099 = vld [vmem:[%s1418 + $0x18] sm:$0xe]
        %v2100 = vld [vmem:[%s1418 + $0x24] sm:$0xe]
        %v2101 = vld [vmem:[%s1418 + $0x30] sm:$0xe]
        %v2102 = vld [vmem:[%s1418 + $0x3c] sm:$0xe]
        %v2103 = vld [vmem:[%s1418 + $0x48] sm:$0xe]
        %v2104 = vld [vmem:[%s1418 + $0x54] sm:$0xe]
        %v2105 = vld [vmem:[%s1418 + $0x60] sm:$0xe]
        %v2106 = vld [vmem:[%s1418 + $0x6c] sm:$0xe]
        %v2137 = vrot.slane %v2097, 5
        %v2138 = vrot.slane %v2137, 4
        %v2139 = vrot.slane %v1644, 5
        %v2140 = vsel %vm1163, %v2138, %v2139
        %v2141 = vrot.slane %v2139, 4
        %v2142 = vrot.slane %v1645, 5
        %v2143 = vsel %vm1163, %v2141, %v2142
        %v2144 = vrot.slane %v2098, 5
        %v2145 = vrot.slane %v2144, 4
        %v2146 = vrot.slane %v1647, 5
        %v2147 = vsel %vm1163, %v2145, %v2146
        %v2148 = vrot.slane %v2146, 4
        %v2149 = vrot.slane %v1648, 5
        %v2150 = vsel %vm1163, %v2148, %v2149
        %v2151 = vrot.slane %v2099, 5
        %v2152 = vrot.slane %v2151, 4
        %v2153 = vrot.slane %v1650, 5
        %v2154 = vsel %vm1163, %v2152, %v2153
        %v2155 = vrot.slane %v2153, 4
        %v2156 = vrot.slane %v1651, 5
        %v2157 = vsel %vm1163, %v2155, %v2156
        %v2158 = vrot.slane %v2100, 5
        %v2159 = vrot.slane %v2158, 4
        %v2160 = vrot.slane %v1653, 5
        %v2161 = vsel %vm1163, %v2159, %v2160
        %v2162 = vrot.slane %v2160, 4
        %v2163 = vrot.slane %v1654, 5
        %v2164 = vsel %vm1163, %v2162, %v2163
        %v2165 = vrot.slane %v2101, 5
        %v2166 = vrot.slane %v2165, 4
        %v2167 = vrot.slane %v1656, 5
        %v2168 = vsel %vm1163, %v2166, %v2167
        %v2169 = vrot.slane %v2167, 4
        %v2170 = vrot.slane %v1657, 5
        %v2171 = vsel %vm1163, %v2169, %v2170
        %v2172 = vrot.slane %v2102, 5
        %v2173 = vrot.slane %v2172, 4
        %v2174 = vrot.slane %v1659, 5
        %v2175 = vsel %vm1163, %v2173, %v2174
        %v2176 = vrot.slane %v2174, 4
        %v2177 = vrot.slane %v1660, 5
        %v2178 = vsel %vm1163, %v2176, %v2177
        %v2179 = vrot.slane %v2103, 5
        %v2180 = vrot.slane %v2179, 4
        %v2181 = vrot.slane %v1662, 5
        %v2182 = vsel %vm1163, %v2180, %v2181
        %v2183 = vrot.slane %v2181, 4
        %v2184 = vrot.slane %v1663, 5
        %v2185 = vsel %vm1163, %v2183, %v2184
        %v2186 = vrot.slane %v2104, 5
        %v2187 = vrot.slane %v2186, 4
        %v2188 = vrot.slane %v1665, 5
        %v2189 = vsel %vm1163, %v2187, %v2188
        %v2190 = vrot.slane %v2188, 4
        %v2191 = vrot.slane %v1666, 5
        %v2192 = vsel %vm1163, %v2190, %v2191
        %v2193 = vrot.slane %v2105, 5
        %v2194 = vrot.slane %v2193, 4
        %v2195 = vrot.slane %v1668, 5
        %v2196 = vsel %vm1163, %v2194, %v2195
        %v2197 = vrot.slane %v2195, 4
        %v2198 = vrot.slane %v1669, 5
        %v2199 = vsel %vm1163, %v2197, %v2198
        %v2200 = vrot.slane %v2106, 5
        %v2201 = vrot.slane %v2200, 4
        %v2202 = vrot.slane %v1671, 5
        %v2203 = vsel %vm1163, %v2201, %v2202
        %v2204 = vrot.slane %v2202, 4
        %v2205 = vrot.slane %v1672, 5
        %v2206 = vsel %vm1163, %v2204, %v2205
        %s2207 = scalar_lea.vmem %s3, 320
        %v2208 = vld [vmem:[%s2207] sm:$0xf]
        %v2209 = vld [vmem:[%s2207 + $0x4] sm:$0xf]
        %v2210 = vld [vmem:[%s2207 + $0x8] sm:$0xf]
        %v2211 = vld [vmem:[%s2207 + $0xc] sm:$0xf]
        %v2212 = vld [vmem:[%s2207 + $0x10] sm:$0xf]
        %v2213 = vld [vmem:[%s2207 + $0x14] sm:$0xf]
        %v2214 = vld [vmem:[%s2207 + $0x18] sm:$0xf]
        %v2215 = vld [vmem:[%s2207 + $0x1c] sm:$0xf]
        %v2216 = vld [vmem:[%s2207 + $0x20] sm:$0xf]
        %v2217 = vld [vmem:[%s2207 + $0x24] sm:$0xf]
        %v2218 = vld [vmem:[%s2207 + $0x28] sm:$0xf]
        %v2219 = vld [vmem:[%s2207 + $0x2c] sm:$0xf]
        %v2220 = vld [vmem:[%s2207 + $0x30] sm:$0xf]
        %v2221 = vld [vmem:[%s2207 + $0x34] sm:$0xf]
        %v2222 = vld [vmem:[%s2207 + $0x38] sm:$0xf]
        %v2223 = vld [vmem:[%s2207 + $0x3c] sm:$0xf]
        %v2224 = vunpack.c.l.b16 %v2140
        %v2225 = vunpack.c.l.b16 %v2143
        %v2226 = vunpack.c.l.b16 %v2147
        %v2227 = vunpack.c.l.b16 %v2150
        %v2228 = vunpack.c.l.b16 %v2154
        %v2229 = vunpack.c.l.b16 %v2157
        %v2230 = vunpack.c.l.b16 %v2161
        %v2231 = vunpack.c.l.b16 %v2164
        %v2232 = vunpack.c.l.b16 %v2168
        %v2233 = vunpack.c.l.b16 %v2171
        %v2234 = vunpack.c.l.b16 %v2175
        %v2235 = vunpack.c.l.b16 %v2178
        %v2236 = vunpack.c.l.b16 %v2182
        %v2237 = vunpack.c.l.b16 %v2185
        %v2238 = vunpack.c.l.b16 %v2189
        %v2239 = vunpack.c.l.b16 %v2192
        %v2240 = vunpack.c.l.b16 %v2196
        %v2241 = vunpack.c.l.b16 %v2199
        %v2242 = vunpack.c.l.b16 %v2203
        %v2243 = vunpack.c.l.b16 %v2206
        %v2244 = vpack.c.b16 %v2225, %v2224
        %v2245 = vpack.c.b16 %v2227, %v2226
        %v2246 = vpack.c.b16 %v2229, %v2228
        %v2247 = vpack.c.b16 %v2231, %v2230
        %v2248 = vpack.c.b16 %v2233, %v2232
        %v2249 = vpack.c.b16 %v2235, %v2234
        %v2250 = vpack.c.b16 %v2237, %v2236
        %v2251 = vpack.c.b16 %v2239, %v2238
        %v2252 = vpack.c.b16 %v2241, %v2240
        %v2253 = vpack.c.b16 %v2243, %v2242
        %v2280 = vunpack.c.l.b16 %v2208
        %v2281 = vunpack.c.l.b16 %v2209
        %v2282 = vunpack.c.l.b16 %v2210
        %v2283 = vunpack.c.l.b16 %v2211
        %v2284 = vunpack.c.l.b16 %v2212
        %v2285 = vunpack.c.l.b16 %v2213
        %v2286 = vunpack.c.l.b16 %v2214
        %v2287 = vunpack.c.l.b16 %v2215
        %v2288 = vunpack.c.l.b16 %v2216
        %v2289 = vunpack.c.l.b16 %v2217
        %v2290 = vunpack.c.l.b16 %v2218
        %v2291 = vunpack.c.l.b16 %v2219
        %v2292 = vunpack.c.l.b16 %v2220
        %v2293 = vunpack.c.l.b16 %v2221
        %v2294 = vunpack.c.l.b16 %v2222
        %v2295 = vunpack.c.l.b16 %v2223
        %v2296 = vpack.c.b16 %v2281, %v2280
        %v2297 = vpack.c.b16 %v2283, %v2282
        %v2298 = vpack.c.b16 %v2285, %v2284
        %v2299 = vpack.c.b16 %v2287, %v2286
        %v2300 = vpack.c.b16 %v2289, %v2288
        %v2301 = vpack.c.b16 %v2291, %v2290
        %v2302 = vpack.c.b16 %v2293, %v2292
        %v2303 = vpack.c.b16 %v2295, %v2294
        %2312 = vmatpush.bf16.msra.mxu0 %v2303
        %2313 = vmatpush.bf16.msra.mxu0 %v2302
        %2314 = vmatpush.bf16.msra.mxu0 %v2301
        %2315 = vmatpush.bf16.msra.mxu0 %v2300
        %2316 = vmatpush.bf16.msra.mxu0 %v2299
        %2317 = vmatpush.bf16.msra.mxu0 %v2298
        %2318 = vmatpush.bf16.msra.mxu0 %v2297
        %2319 = vmatpush.bf16.msra.mxu0 %v2296
        %2320 = vmatmul.bf16.gmra.mxu0 %v2244
        %v2321 = vpop.f32.mrf.mxu0
        %v2322 = vadd.f32 0.0, %v2321
        %v2323 = vpop.f32.mrf.mxu0
        %v2324 = vadd.f32 0.0, %v2323
        %2325 = vmatmul.bf16.gmra.mxu0 %v2245
        %v2326 = vpop.f32.mrf.mxu0
        %v2327 = vadd.f32 0.0, %v2326
        %v2328 = vpop.f32.mrf.mxu0
        %v2329 = vadd.f32 0.0, %v2328
        %2330 = vmatmul.bf16.gmra.mxu0 %v2246
        %v2331 = vpop.f32.mrf.mxu0
        %v2332 = vadd.f32 0.0, %v2331
        %v2333 = vpop.f32.mrf.mxu0
        %v2334 = vadd.f32 0.0, %v2333
        %2335 = vmatmul.bf16.gmra.mxu0 %v2247
        %v2336 = vpop.f32.mrf.mxu0
        %v2337 = vadd.f32 0.0, %v2336
        %v2338 = vpop.f32.mrf.mxu0
        %v2339 = vadd.f32 0.0, %v2338
        %2340 = vmatmul.bf16.gmra.mxu0 %v2248
        %v2341 = vpop.f32.mrf.mxu0
        %v2342 = vadd.f32 0.0, %v2341
        %v2343 = vpop.f32.mrf.mxu0
        %v2344 = vadd.f32 0.0, %v2343
        %2345 = vmatmul.bf16.gmra.mxu0 %v2249
        %v2346 = vpop.f32.mrf.mxu0
        %v2347 = vadd.f32 0.0, %v2346
        %v2348 = vpop.f32.mrf.mxu0
        %v2349 = vadd.f32 0.0, %v2348
        %2350 = vmatmul.bf16.gmra.mxu0 %v2250
        %v2351 = vpop.f32.mrf.mxu0
        %v2352 = vadd.f32 0.0, %v2351
        %v2353 = vpop.f32.mrf.mxu0
        %v2354 = vadd.f32 0.0, %v2353
        %2355 = vmatmul.bf16.gmra.mxu0 %v2251
        %v2356 = vpop.f32.mrf.mxu0
        %v2357 = vadd.f32 0.0, %v2356
        %v2358 = vpop.f32.mrf.mxu0
        %v2359 = vadd.f32 0.0, %v2358
        %2360 = vmatmul.bf16.gmra.mxu0 %v2252
        %v2361 = vpop.f32.mrf.mxu0
        %v2362 = vadd.f32 0.0, %v2361
        %v2363 = vpop.f32.mrf.mxu0
        %v2364 = vadd.f32 0.0, %v2363
        %2365 = vmatmul.bf16.gmra.mxu0 %v2253
        %v2366 = vpop.f32.mrf.mxu0
        %v2367 = vadd.f32 0.0, %v2366
        %v2368 = vpop.f32.mrf.mxu0
        %v2369 = vadd.f32 0.0, %v2368
        %2370 = vdwg.mxu0
        %v2371 = vadd.f32 %v2077, %v2322
        %v2372 = vadd.f32 %v2078, %v2324
        %v2373 = vadd.f32 %v2079, %v2327
        %v2374 = vadd.f32 %v2080, %v2329
        %v2375 = vadd.f32 %v2081, %v2332
        %v2376 = vadd.f32 %v2082, %v2334
        %v2377 = vadd.f32 %v2083, %v2337
        %v2378 = vadd.f32 %v2084, %v2339
        %v2379 = vadd.f32 %v2085, %v2342
        %v2380 = vadd.f32 %v2086, %v2344
        %v2381 = vadd.f32 %v2087, %v2347
        %v2382 = vadd.f32 %v2088, %v2349
        %v2383 = vadd.f32 %v2089, %v2352
        %v2384 = vadd.f32 %v2090, %v2354
        %v2385 = vadd.f32 %v2091, %v2357
        %v2386 = vadd.f32 %v2092, %v2359
        %v2387 = vadd.f32 %v2093, %v2362
        %v2388 = vadd.f32 %v2094, %v2364
        %v2389 = vadd.f32 %v2095, %v2367
        %v2390 = vadd.f32 %v2096, %v2369
        %s2391 = scalar_lea.vmem [#allocation2], 24
        %v2392 = vld [vmem:[%s2391] sm:$0xf]
        %v2393 = vld [vmem:[%s2391 + $0x4] sm:$0xf]
        %v2394 = vld [vmem:[%s2391 + $0xc] sm:$0xf]
        %v2395 = vld [vmem:[%s2391 + $0x10] sm:$0xf]
        %v2396 = vld [vmem:[%s2391 + $0x18] sm:$0xf]
        %v2397 = vld [vmem:[%s2391 + $0x1c] sm:$0xf]
        %v2398 = vld [vmem:[%s2391 + $0x24] sm:$0xf]
        %v2399 = vld [vmem:[%s2391 + $0x28] sm:$0xf]
        %v2400 = vld [vmem:[%s2391 + $0x30] sm:$0xf]
        %v2401 = vld [vmem:[%s2391 + $0x34] sm:$0xf]
        %v2402 = vld [vmem:[%s2391 + $0x3c] sm:$0xf]
        %v2403 = vld [vmem:[%s2391 + $0x40] sm:$0xf]
        %v2404 = vld [vmem:[%s2391 + $0x48] sm:$0xf]
        %v2405 = vld [vmem:[%s2391 + $0x4c] sm:$0xf]
        %v2406 = vld [vmem:[%s2391 + $0x54] sm:$0xf]
        %v2407 = vld [vmem:[%s2391 + $0x58] sm:$0xf]
        %v2408 = vld [vmem:[%s2391 + $0x60] sm:$0xf]
        %v2409 = vld [vmem:[%s2391 + $0x64] sm:$0xf]
        %v2410 = vld [vmem:[%s2391 + $0x6c] sm:$0xf]
        %v2411 = vld [vmem:[%s2391 + $0x70] sm:$0xf]
        %s2412 = scalar_lea.vmem %s3, 384
        %v2413 = vld [vmem:[%s2412] sm:$0xf]
        %v2414 = vld [vmem:[%s2412 + $0x4] sm:$0xf]
        %v2415 = vld [vmem:[%s2412 + $0x8] sm:$0xf]
        %v2416 = vld [vmem:[%s2412 + $0xc] sm:$0xf]
        %v2417 = vld [vmem:[%s2412 + $0x10] sm:$0xf]
        %v2418 = vld [vmem:[%s2412 + $0x14] sm:$0xf]
        %v2419 = vld [vmem:[%s2412 + $0x18] sm:$0xf]
        %v2420 = vld [vmem:[%s2412 + $0x1c] sm:$0xf]
        %v2421 = vld [vmem:[%s2412 + $0x20] sm:$0xf]
        %v2422 = vld [vmem:[%s2412 + $0x24] sm:$0xf]
        %v2423 = vld [vmem:[%s2412 + $0x28] sm:$0xf]
        %v2424 = vld [vmem:[%s2412 + $0x2c] sm:$0xf]
        %v2425 = vld [vmem:[%s2412 + $0x30] sm:$0xf]
        %v2426 = vld [vmem:[%s2412 + $0x34] sm:$0xf]
        %v2427 = vld [vmem:[%s2412 + $0x38] sm:$0xf]
        %v2428 = vld [vmem:[%s2412 + $0x3c] sm:$0xf]
        %v2449 = vunpack.c.l.b16 %v2392
        %v2450 = vunpack.c.l.b16 %v2393
        %v2451 = vunpack.c.l.b16 %v2394
        %v2452 = vunpack.c.l.b16 %v2395
        %v2453 = vunpack.c.l.b16 %v2396
        %v2454 = vunpack.c.l.b16 %v2397
        %v2455 = vunpack.c.l.b16 %v2398
        %v2456 = vunpack.c.l.b16 %v2399
        %v2457 = vunpack.c.l.b16 %v2400
        %v2458 = vunpack.c.l.b16 %v2401
        %v2459 = vunpack.c.l.b16 %v2402
        %v2460 = vunpack.c.l.b16 %v2403
        %v2461 = vunpack.c.l.b16 %v2404
        %v2462 = vunpack.c.l.b16 %v2405
        %v2463 = vunpack.c.l.b16 %v2406
        %v2464 = vunpack.c.l.b16 %v2407
        %v2465 = vunpack.c.l.b16 %v2408
        %v2466 = vunpack.c.l.b16 %v2409
        %v2467 = vunpack.c.l.b16 %v2410
        %v2468 = vunpack.c.l.b16 %v2411
        %v2469 = vpack.c.b16 %v2450, %v2449
        %v2470 = vpack.c.b16 %v2452, %v2451
        %v2471 = vpack.c.b16 %v2454, %v2453
        %v2472 = vpack.c.b16 %v2456, %v2455
        %v2473 = vpack.c.b16 %v2458, %v2457
        %v2474 = vpack.c.b16 %v2460, %v2459
        %v2475 = vpack.c.b16 %v2462, %v2461
        %v2476 = vpack.c.b16 %v2464, %v2463
        %v2477 = vpack.c.b16 %v2466, %v2465
        %v2478 = vpack.c.b16 %v2468, %v2467
        %v2505 = vunpack.c.l.b16 %v2413
        %v2506 = vunpack.c.l.b16 %v2414
        %v2507 = vunpack.c.l.b16 %v2415
        %v2508 = vunpack.c.l.b16 %v2416
        %v2509 = vunpack.c.l.b16 %v2417
        %v2510 = vunpack.c.l.b16 %v2418
        %v2511 = vunpack.c.l.b16 %v2419
        %v2512 = vunpack.c.l.b16 %v2420
        %v2513 = vunpack.c.l.b16 %v2421
        %v2514 = vunpack.c.l.b16 %v2422
        %v2515 = vunpack.c.l.b16 %v2423
        %v2516 = vunpack.c.l.b16 %v2424
        %v2517 = vunpack.c.l.b16 %v2425
        %v2518 = vunpack.c.l.b16 %v2426
        %v2519 = vunpack.c.l.b16 %v2427
        %v2520 = vunpack.c.l.b16 %v2428
        %v2521 = vpack.c.b16 %v2506, %v2505
        %v2522 = vpack.c.b16 %v2508, %v2507
        %v2523 = vpack.c.b16 %v2510, %v2509
        %v2524 = vpack.c.b16 %v2512, %v2511
        %v2525 = vpack.c.b16 %v2514, %v2513
        %v2526 = vpack.c.b16 %v2516, %v2515
        %v2527 = vpack.c.b16 %v2518, %v2517
        %v2528 = vpack.c.b16 %v2520, %v2519
        %2537 = vmatpush.bf16.msra.mxu0 %v2528
        %2538 = vmatpush.bf16.msra.mxu0 %v2527
        %2539 = vmatpush.bf16.msra.mxu0 %v2526
        %2540 = vmatpush.bf16.msra.mxu0 %v2525
        %2541 = vmatpush.bf16.msra.mxu0 %v2524
        %2542 = vmatpush.bf16.msra.mxu0 %v2523
        %2543 = vmatpush.bf16.msra.mxu0 %v2522
        %2544 = vmatpush.bf16.msra.mxu0 %v2521
        %2545 = vmatmul.bf16.gmra.mxu0 %v2469
        %v2546 = vpop.f32.mrf.mxu0
        %v2547 = vadd.f32 0.0, %v2546
        %v2548 = vpop.f32.mrf.mxu0
        %v2549 = vadd.f32 0.0, %v2548
        %2550 = vmatmul.bf16.gmra.mxu0 %v2470
        %v2551 = vpop.f32.mrf.mxu0
        %v2552 = vadd.f32 0.0, %v2551
        %v2553 = vpop.f32.mrf.mxu0
        %v2554 = vadd.f32 0.0, %v2553
        %2555 = vmatmul.bf16.gmra.mxu0 %v2471
        %v2556 = vpop.f32.mrf.mxu0
        %v2557 = vadd.f32 0.0, %v2556
        %v2558 = vpop.f32.mrf.mxu0
        %v2559 = vadd.f32 0.0, %v2558
        %2560 = vmatmul.bf16.gmra.mxu0 %v2472
        %v2561 = vpop.f32.mrf.mxu0
        %v2562 = vadd.f32 0.0, %v2561
        %v2563 = vpop.f32.mrf.mxu0
        %v2564 = vadd.f32 0.0, %v2563
        %2565 = vmatmul.bf16.gmra.mxu0 %v2473
        %v2566 = vpop.f32.mrf.mxu0
        %v2567 = vadd.f32 0.0, %v2566
        %v2568 = vpop.f32.mrf.mxu0
        %v2569 = vadd.f32 0.0, %v2568
        %2570 = vmatmul.bf16.gmra.mxu0 %v2474
        %v2571 = vpop.f32.mrf.mxu0
        %v2572 = vadd.f32 0.0, %v2571
        %v2573 = vpop.f32.mrf.mxu0
        %v2574 = vadd.f32 0.0, %v2573
        %2575 = vmatmul.bf16.gmra.mxu0 %v2475
        %v2576 = vpop.f32.mrf.mxu0
        %v2577 = vadd.f32 0.0, %v2576
        %v2578 = vpop.f32.mrf.mxu0
        %v2579 = vadd.f32 0.0, %v2578
        %2580 = vmatmul.bf16.gmra.mxu0 %v2476
        %v2581 = vpop.f32.mrf.mxu0
        %v2582 = vadd.f32 0.0, %v2581
        %v2583 = vpop.f32.mrf.mxu0
        %v2584 = vadd.f32 0.0, %v2583
        %2585 = vmatmul.bf16.gmra.mxu0 %v2477
        %v2586 = vpop.f32.mrf.mxu0
        %v2587 = vadd.f32 0.0, %v2586
        %v2588 = vpop.f32.mrf.mxu0
        %v2589 = vadd.f32 0.0, %v2588
        %2590 = vmatmul.bf16.gmra.mxu0 %v2478
        %v2591 = vpop.f32.mrf.mxu0
        %v2592 = vadd.f32 0.0, %v2591
        %v2593 = vpop.f32.mrf.mxu0
        %v2594 = vadd.f32 0.0, %v2593
        %2595 = vdwg.mxu0
        %v2596 = vadd.f32 %v2371, %v2547
        %v2597 = vadd.f32 %v2372, %v2549
        %v2598 = vadd.f32 %v2373, %v2552
        %v2599 = vadd.f32 %v2374, %v2554
        %v2600 = vadd.f32 %v2375, %v2557
        %v2601 = vadd.f32 %v2376, %v2559
        %v2602 = vadd.f32 %v2377, %v2562
        %v2603 = vadd.f32 %v2378, %v2564
        %v2604 = vadd.f32 %v2379, %v2567
        %v2605 = vadd.f32 %v2380, %v2569
        %v2606 = vadd.f32 %v2381, %v2572
        %v2607 = vadd.f32 %v2382, %v2574
        %v2608 = vadd.f32 %v2383, %v2577
        %v2609 = vadd.f32 %v2384, %v2579
        %v2610 = vadd.f32 %v2385, %v2582
        %v2611 = vadd.f32 %v2386, %v2584
        %v2612 = vadd.f32 %v2387, %v2587
        %v2613 = vadd.f32 %v2388, %v2589
        %v2614 = vadd.f32 %v2389, %v2592
        %v2615 = vadd.f32 %v2390, %v2594
        %v2616 = vld [vmem:[%s2391] sm:$0xf]
        %v2617 = vld [vmem:[%s2391 + $0x4] sm:$0xf]
        %v2618 = vld [vmem:[%s2391 + $0x8] sm:$0x1]
        %v2619 = vld [vmem:[%s2391 + $0xc] sm:$0xf]
        %v2620 = vld [vmem:[%s2391 + $0x10] sm:$0xf]
        %v2621 = vld [vmem:[%s2391 + $0x14] sm:$0x1]
        %v2622 = vld [vmem:[%s2391 + $0x18] sm:$0xf]
        %v2623 = vld [vmem:[%s2391 + $0x1c] sm:$0xf]
        %v2624 = vld [vmem:[%s2391 + $0x20] sm:$0x1]
        %v2625 = vld [vmem:[%s2391 + $0x24] sm:$0xf]
        %v2626 = vld [vmem:[%s2391 + $0x28] sm:$0xf]
        %v2627 = vld [vmem:[%s2391 + $0x2c] sm:$0x1]
        %v2628 = vld [vmem:[%s2391 + $0x30] sm:$0xf]
        %v2629 = vld [vmem:[%s2391 + $0x34] sm:$0xf]
        %v2630 = vld [vmem:[%s2391 + $0x38] sm:$0x1]
        %v2631 = vld [vmem:[%s2391 + $0x3c] sm:$0xf]
        %v2632 = vld [vmem:[%s2391 + $0x40] sm:$0xf]
        %v2633 = vld [vmem:[%s2391 + $0x44] sm:$0x1]
        %v2634 = vld [vmem:[%s2391 + $0x48] sm:$0xf]
        %v2635 = vld [vmem:[%s2391 + $0x4c] sm:$0xf]
        %v2636 = vld [vmem:[%s2391 + $0x50] sm:$0x1]
        %v2637 = vld [vmem:[%s2391 + $0x54] sm:$0xf]
        %v2638 = vld [vmem:[%s2391 + $0x58] sm:$0xf]
        %v2639 = vld [vmem:[%s2391 + $0x5c] sm:$0x1]
        %v2640 = vld [vmem:[%s2391 + $0x60] sm:$0xf]
        %v2641 = vld [vmem:[%s2391 + $0x64] sm:$0xf]
        %v2642 = vld [vmem:[%s2391 + $0x68] sm:$0x1]
        %v2643 = vld [vmem:[%s2391 + $0x6c] sm:$0xf]
        %v2644 = vld [vmem:[%s2391 + $0x70] sm:$0xf]
        %v2645 = vld [vmem:[%s2391 + $0x74] sm:$0x1]
        %v2647 = vshrl.u32 %v2616, 16
        %v2649 = vrot.slane %v2647, 4
        %v2650 = vshll.u32 %v2616, 16
        %v2652 = vrot.slane %v2650, 5
        %v2653 = vor.u32 %v2649, %v2652
        %v2654 = vrot.slane %v2653, 4
        %v2656 = vshll.u32 %v2617, 16
        %v2658 = vrot.slane %v2656, 5
        %v2659 = vsel %vm559, %v2654, %v2658
        %v2660 = vshrl.u32 %v2617, 16
        %v2662 = vrot.slane %v2660, 4
        %v2663 = vor.u32 %v2662, %v2658
        %v2664 = vrot.slane %v2663, 4
        %v2666 = vshll.u32 %v2618, 16
        %v2668 = vrot.slane %v2666, 5
        %v2669 = vsel %vm559, %v2664, %v2668
        %v2671 = vshrl.u32 %v2619, 16
        %v2673 = vrot.slane %v2671, 4
        %v2674 = vshll.u32 %v2619, 16
        %v2676 = vrot.slane %v2674, 5
        %v2677 = vor.u32 %v2673, %v2676
        %v2678 = vrot.slane %v2677, 4
        %v2680 = vshll.u32 %v2620, 16
        %v2682 = vrot.slane %v2680, 5
        %v2683 = vsel %vm559, %v2678, %v2682
        %v2684 = vshrl.u32 %v2620, 16
        %v2686 = vrot.slane %v2684, 4
        %v2687 = vor.u32 %v2686, %v2682
        %v2688 = vrot.slane %v2687, 4
        %v2690 = vshll.u32 %v2621, 16
        %v2692 = vrot.slane %v2690, 5
        %v2693 = vsel %vm559, %v2688, %v2692
        %v2695 = vshrl.u32 %v2622, 16
        %v2697 = vrot.slane %v2695, 4
        %v2698 = vshll.u32 %v2622, 16
        %v2700 = vrot.slane %v2698, 5
        %v2701 = vor.u32 %v2697, %v2700
        %v2702 = vrot.slane %v2701, 4
        %v2704 = vshll.u32 %v2623, 16
        %v2706 = vrot.slane %v2704, 5
        %v2707 = vsel %vm559, %v2702, %v2706
        %v2708 = vshrl.u32 %v2623, 16
        %v2710 = vrot.slane %v2708, 4
        %v2711 = vor.u32 %v2710, %v2706
        %v2712 = vrot.slane %v2711, 4
        %v2714 = vshll.u32 %v2624, 16
        %v2716 = vrot.slane %v2714, 5
        %v2717 = vsel %vm559, %v2712, %v2716
        %v2719 = vshrl.u32 %v2625, 16
        %v2721 = vrot.slane %v2719, 4
        %v2722 = vshll.u32 %v2625, 16
        %v2724 = vrot.slane %v2722, 5
        %v2725 = vor.u32 %v2721, %v2724
        %v2726 = vrot.slane %v2725, 4
        %v2728 = vshll.u32 %v2626, 16
        %v2730 = vrot.slane %v2728, 5
        %v2731 = vsel %vm559, %v2726, %v2730
        %v2732 = vshrl.u32 %v2626, 16
        %v2734 = vrot.slane %v2732, 4
        %v2735 = vor.u32 %v2734, %v2730
        %v2736 = vrot.slane %v2735, 4
        %v2738 = vshll.u32 %v2627, 16
        %v2740 = vrot.slane %v2738, 5
        %v2741 = vsel %vm559, %v2736, %v2740
        %v2743 = vshrl.u32 %v2628, 16
        %v2745 = vrot.slane %v2743, 4
        %v2746 = vshll.u32 %v2628, 16
        %v2748 = vrot.slane %v2746, 5
        %v2749 = vor.u32 %v2745, %v2748
        %v2750 = vrot.slane %v2749, 4
        %v2752 = vshll.u32 %v2629, 16
        %v2754 = vrot.slane %v2752, 5
        %v2755 = vsel %vm559, %v2750, %v2754
        %v2756 = vshrl.u32 %v2629, 16
        %v2758 = vrot.slane %v2756, 4
        %v2759 = vor.u32 %v2758, %v2754
        %v2760 = vrot.slane %v2759, 4
        %v2762 = vshll.u32 %v2630, 16
        %v2764 = vrot.slane %v2762, 5
        %v2765 = vsel %vm559, %v2760, %v2764
        %v2767 = vshrl.u32 %v2631, 16
        %v2769 = vrot.slane %v2767, 4
        %v2770 = vshll.u32 %v2631, 16
        %v2772 = vrot.slane %v2770, 5
        %v2773 = vor.u32 %v2769, %v2772
        %v2774 = vrot.slane %v2773, 4
        %v2776 = vshll.u32 %v2632, 16
        %v2778 = vrot.slane %v2776, 5
        %v2779 = vsel %vm559, %v2774, %v2778
        %v2780 = vshrl.u32 %v2632, 16
        %v2782 = vrot.slane %v2780, 4
        %v2783 = vor.u32 %v2782, %v2778
        %v2784 = vrot.slane %v2783, 4
        %v2786 = vshll.u32 %v2633, 16
        %v2788 = vrot.slane %v2786, 5
        %v2789 = vsel %vm559, %v2784, %v2788
        %v2791 = vshrl.u32 %v2634, 16
        %v2793 = vrot.slane %v2791, 4
        %v2794 = vshll.u32 %v2634, 16
        %v2796 = vrot.slane %v2794, 5
        %v2797 = vor.u32 %v2793, %v2796
        %v2798 = vrot.slane %v2797, 4
        %v2800 = vshll.u32 %v2635, 16
        %v2802 = vrot.slane %v2800, 5
        %v2803 = vsel %vm559, %v2798, %v2802
        %v2804 = vshrl.u32 %v2635, 16
        %v2806 = vrot.slane %v2804, 4
        %v2807 = vor.u32 %v2806, %v2802
        %v2808 = vrot.slane %v2807, 4
        %v2810 = vshll.u32 %v2636, 16
        %v2812 = vrot.slane %v2810, 5
        %v2813 = vsel %vm559, %v2808, %v2812
        %v2815 = vshrl.u32 %v2637, 16
        %v2817 = vrot.slane %v2815, 4
        %v2818 = vshll.u32 %v2637, 16
        %v2820 = vrot.slane %v2818, 5
        %v2821 = vor.u32 %v2817, %v2820
        %v2822 = vrot.slane %v2821, 4
        %v2824 = vshll.u32 %v2638, 16
        %v2826 = vrot.slane %v2824, 5
        %v2827 = vsel %vm559, %v2822, %v2826
        %v2828 = vshrl.u32 %v2638, 16
        %v2830 = vrot.slane %v2828, 4
        %v2831 = vor.u32 %v2830, %v2826
        %v2832 = vrot.slane %v2831, 4
        %v2834 = vshll.u32 %v2639, 16
        %v2836 = vrot.slane %v2834, 5
        %v2837 = vsel %vm559, %v2832, %v2836
        %v2839 = vshrl.u32 %v2640, 16
        %v2841 = vrot.slane %v2839, 4
        %v2842 = vshll.u32 %v2640, 16
        %v2844 = vrot.slane %v2842, 5
        %v2845 = vor.u32 %v2841, %v2844
        %v2846 = vrot.slane %v2845, 4
        %v2848 = vshll.u32 %v2641, 16
        %v2850 = vrot.slane %v2848, 5
        %v2851 = vsel %vm559, %v2846, %v2850
        %v2852 = vshrl.u32 %v2641, 16
        %v2854 = vrot.slane %v2852, 4
        %v2855 = vor.u32 %v2854, %v2850
        %v2856 = vrot.slane %v2855, 4
        %v2858 = vshll.u32 %v2642, 16
        %v2860 = vrot.slane %v2858, 5
        %v2861 = vsel %vm559, %v2856, %v2860
        %v2863 = vshrl.u32 %v2643, 16
        %v2865 = vrot.slane %v2863, 4
        %v2866 = vshll.u32 %v2643, 16
        %v2868 = vrot.slane %v2866, 5
        %v2869 = vor.u32 %v2865, %v2868
        %v2870 = vrot.slane %v2869, 4
        %v2872 = vshll.u32 %v2644, 16
        %v2874 = vrot.slane %v2872, 5
        %v2875 = vsel %vm559, %v2870, %v2874
        %v2876 = vshrl.u32 %v2644, 16
        %v2878 = vrot.slane %v2876, 4
        %v2879 = vor.u32 %v2878, %v2874
        %v2880 = vrot.slane %v2879, 4
        %v2882 = vshll.u32 %v2645, 16
        %v2884 = vrot.slane %v2882, 5
        %v2885 = vsel %vm559, %v2880, %v2884
        %s2886 = scalar_lea.vmem %s3, 448
        %v2887 = vld [vmem:[%s2886] sm:$0xf]
        %v2888 = vld [vmem:[%s2886 + $0x4] sm:$0xf]
        %v2889 = vld [vmem:[%s2886 + $0x8] sm:$0xf]
        %v2890 = vld [vmem:[%s2886 + $0xc] sm:$0xf]
        %v2891 = vld [vmem:[%s2886 + $0x10] sm:$0xf]
        %v2892 = vld [vmem:[%s2886 + $0x14] sm:$0xf]
        %v2893 = vld [vmem:[%s2886 + $0x18] sm:$0xf]
        %v2894 = vld [vmem:[%s2886 + $0x1c] sm:$0xf]
        %v2895 = vld [vmem:[%s2886 + $0x20] sm:$0xf]
        %v2896 = vld [vmem:[%s2886 + $0x24] sm:$0xf]
        %v2897 = vld [vmem:[%s2886 + $0x28] sm:$0xf]
        %v2898 = vld [vmem:[%s2886 + $0x2c] sm:$0xf]
        %v2899 = vld [vmem:[%s2886 + $0x30] sm:$0xf]
        %v2900 = vld [vmem:[%s2886 + $0x34] sm:$0xf]
        %v2901 = vld [vmem:[%s2886 + $0x38] sm:$0xf]
        %v2902 = vld [vmem:[%s2886 + $0x3c] sm:$0xf]
        %v2903 = vunpack.c.l.b16 %v2659
        %v2904 = vunpack.c.l.b16 %v2669
        %v2905 = vunpack.c.l.b16 %v2683
        %v2906 = vunpack.c.l.b16 %v2693
        %v2907 = vunpack.c.l.b16 %v2707
        %v2908 = vunpack.c.l.b16 %v2717
        %v2909 = vunpack.c.l.b16 %v2731
        %v2910 = vunpack.c.l.b16 %v2741
        %v2911 = vunpack.c.l.b16 %v2755
        %v2912 = vunpack.c.l.b16 %v2765
        %v2913 = vunpack.c.l.b16 %v2779
        %v2914 = vunpack.c.l.b16 %v2789
        %v2915 = vunpack.c.l.b16 %v2803
        %v2916 = vunpack.c.l.b16 %v2813
        %v2917 = vunpack.c.l.b16 %v2827
        %v2918 = vunpack.c.l.b16 %v2837
        %v2919 = vunpack.c.l.b16 %v2851
        %v2920 = vunpack.c.l.b16 %v2861
        %v2921 = vunpack.c.l.b16 %v2875
        %v2922 = vunpack.c.l.b16 %v2885
        %v2923 = vpack.c.b16 %v2904, %v2903
        %v2924 = vpack.c.b16 %v2906, %v2905
        %v2925 = vpack.c.b16 %v2908, %v2907
        %v2926 = vpack.c.b16 %v2910, %v2909
        %v2927 = vpack.c.b16 %v2912, %v2911
        %v2928 = vpack.c.b16 %v2914, %v2913
        %v2929 = vpack.c.b16 %v2916, %v2915
        %v2930 = vpack.c.b16 %v2918, %v2917
        %v2931 = vpack.c.b16 %v2920, %v2919
        %v2932 = vpack.c.b16 %v2922, %v2921
        %v2959 = vunpack.c.l.b16 %v2887
        %v2960 = vunpack.c.l.b16 %v2888
        %v2961 = vunpack.c.l.b16 %v2889
        %v2962 = vunpack.c.l.b16 %v2890
        %v2963 = vunpack.c.l.b16 %v2891
        %v2964 = vunpack.c.l.b16 %v2892
        %v2965 = vunpack.c.l.b16 %v2893
        %v2966 = vunpack.c.l.b16 %v2894
        %v2967 = vunpack.c.l.b16 %v2895
        %v2968 = vunpack.c.l.b16 %v2896
        %v2969 = vunpack.c.l.b16 %v2897
        %v2970 = vunpack.c.l.b16 %v2898
        %v2971 = vunpack.c.l.b16 %v2899
        %v2972 = vunpack.c.l.b16 %v2900
        %v2973 = vunpack.c.l.b16 %v2901
        %v2974 = vunpack.c.l.b16 %v2902
        %v2975 = vpack.c.b16 %v2960, %v2959
        %v2976 = vpack.c.b16 %v2962, %v2961
        %v2977 = vpack.c.b16 %v2964, %v2963
        %v2978 = vpack.c.b16 %v2966, %v2965
        %v2979 = vpack.c.b16 %v2968, %v2967
        %v2980 = vpack.c.b16 %v2970, %v2969
        %v2981 = vpack.c.b16 %v2972, %v2971
        %v2982 = vpack.c.b16 %v2974, %v2973
        %2991 = vmatpush.bf16.msra.mxu0 %v2982
        %2992 = vmatpush.bf16.msra.mxu0 %v2981
        %2993 = vmatpush.bf16.msra.mxu0 %v2980
        %2994 = vmatpush.bf16.msra.mxu0 %v2979
        %2995 = vmatpush.bf16.msra.mxu0 %v2978
        %2996 = vmatpush.bf16.msra.mxu0 %v2977
        %2997 = vmatpush.bf16.msra.mxu0 %v2976
        %2998 = vmatpush.bf16.msra.mxu0 %v2975
        %2999 = vmatmul.bf16.gmra.mxu0 %v2923
        %v3000 = vpop.f32.mrf.mxu0
        %v3001 = vadd.f32 0.0, %v3000
        %v3002 = vpop.f32.mrf.mxu0
        %v3003 = vadd.f32 0.0, %v3002
        %3004 = vmatmul.bf16.gmra.mxu0 %v2924
        %v3005 = vpop.f32.mrf.mxu0
        %v3006 = vadd.f32 0.0, %v3005
        %v3007 = vpop.f32.mrf.mxu0
        %v3008 = vadd.f32 0.0, %v3007
        %3009 = vmatmul.bf16.gmra.mxu0 %v2925
        %v3010 = vpop.f32.mrf.mxu0
        %v3011 = vadd.f32 0.0, %v3010
        %v3012 = vpop.f32.mrf.mxu0
        %v3013 = vadd.f32 0.0, %v3012
        %3014 = vmatmul.bf16.gmra.mxu0 %v2926
        %v3015 = vpop.f32.mrf.mxu0
        %v3016 = vadd.f32 0.0, %v3015
        %v3017 = vpop.f32.mrf.mxu0
        %v3018 = vadd.f32 0.0, %v3017
        %3019 = vmatmul.bf16.gmra.mxu0 %v2927
        %v3020 = vpop.f32.mrf.mxu0
        %v3021 = vadd.f32 0.0, %v3020
        %v3022 = vpop.f32.mrf.mxu0
        %v3023 = vadd.f32 0.0, %v3022
        %3024 = vmatmul.bf16.gmra.mxu0 %v2928
        %v3025 = vpop.f32.mrf.mxu0
        %v3026 = vadd.f32 0.0, %v3025
        %v3027 = vpop.f32.mrf.mxu0
        %v3028 = vadd.f32 0.0, %v3027
        %3029 = vmatmul.bf16.gmra.mxu0 %v2929
        %v3030 = vpop.f32.mrf.mxu0
        %v3031 = vadd.f32 0.0, %v3030
        %v3032 = vpop.f32.mrf.mxu0
        %v3033 = vadd.f32 0.0, %v3032
        %3034 = vmatmul.bf16.gmra.mxu0 %v2930
        %v3035 = vpop.f32.mrf.mxu0
        %v3036 = vadd.f32 0.0, %v3035
        %v3037 = vpop.f32.mrf.mxu0
        %v3038 = vadd.f32 0.0, %v3037
        %3039 = vmatmul.bf16.gmra.mxu0 %v2931
        %v3040 = vpop.f32.mrf.mxu0
        %v3041 = vadd.f32 0.0, %v3040
        %v3042 = vpop.f32.mrf.mxu0
        %v3043 = vadd.f32 0.0, %v3042
        %3044 = vmatmul.bf16.gmra.mxu0 %v2932
        %v3045 = vpop.f32.mrf.mxu0
        %v3046 = vadd.f32 0.0, %v3045
        %v3047 = vpop.f32.mrf.mxu0
        %v3048 = vadd.f32 0.0, %v3047
        %3049 = vdwg.mxu0
        %v3050 = vadd.f32 %v2596, %v3001
        %v3051 = vadd.f32 %v2597, %v3003
        %v3052 = vadd.f32 %v2598, %v3006
        %v3053 = vadd.f32 %v2599, %v3008
        %v3054 = vadd.f32 %v2600, %v3011
        %v3055 = vadd.f32 %v2601, %v3013
        %v3056 = vadd.f32 %v2602, %v3016
        %v3057 = vadd.f32 %v2603, %v3018
        %v3058 = vadd.f32 %v2604, %v3021
        %v3059 = vadd.f32 %v2605, %v3023
        %v3060 = vadd.f32 %v2606, %v3026
        %v3061 = vadd.f32 %v2607, %v3028
        %v3062 = vadd.f32 %v2608, %v3031
        %v3063 = vadd.f32 %v2609, %v3033
        %v3064 = vadd.f32 %v2610, %v3036
        %v3065 = vadd.f32 %v2611, %v3038
        %v3066 = vadd.f32 %v2612, %v3041
        %v3067 = vadd.f32 %v2613, %v3043
        %v3068 = vadd.f32 %v2614, %v3046
        %v3069 = vadd.f32 %v2615, %v3048
        %v3070 = vld [vmem:[%s2391] sm:$0xe]
        %v3071 = vld [vmem:[%s2391 + $0xc] sm:$0xe]
        %v3072 = vld [vmem:[%s2391 + $0x18] sm:$0xe]
        %v3073 = vld [vmem:[%s2391 + $0x24] sm:$0xe]
        %v3074 = vld [vmem:[%s2391 + $0x30] sm:$0xe]
        %v3075 = vld [vmem:[%s2391 + $0x3c] sm:$0xe]
        %v3076 = vld [vmem:[%s2391 + $0x48] sm:$0xe]
        %v3077 = vld [vmem:[%s2391 + $0x54] sm:$0xe]
        %v3078 = vld [vmem:[%s2391 + $0x60] sm:$0xe]
        %v3079 = vld [vmem:[%s2391 + $0x6c] sm:$0xe]
        %v3110 = vrot.slane %v3070, 5
        %v3111 = vrot.slane %v3110, 4
        %v3112 = vrot.slane %v2617, 5
        %v3113 = vsel %vm1163, %v3111, %v3112
        %v3114 = vrot.slane %v3112, 4
        %v3115 = vrot.slane %v2618, 5
        %v3116 = vsel %vm1163, %v3114, %v3115
        %v3117 = vrot.slane %v3071, 5
        %v3118 = vrot.slane %v3117, 4
        %v3119 = vrot.slane %v2620, 5
        %v3120 = vsel %vm1163, %v3118, %v3119
        %v3121 = vrot.slane %v3119, 4
        %v3122 = vrot.slane %v2621, 5
        %v3123 = vsel %vm1163, %v3121, %v3122
        %v3124 = vrot.slane %v3072, 5
        %v3125 = vrot.slane %v3124, 4
        %v3126 = vrot.slane %v2623, 5
        %v3127 = vsel %vm1163, %v3125, %v3126
        %v3128 = vrot.slane %v3126, 4
        %v3129 = vrot.slane %v2624, 5
        %v3130 = vsel %vm1163, %v3128, %v3129
        %v3131 = vrot.slane %v3073, 5
        %v3132 = vrot.slane %v3131, 4
        %v3133 = vrot.slane %v2626, 5
        %v3134 = vsel %vm1163, %v3132, %v3133
        %v3135 = vrot.slane %v3133, 4
        %v3136 = vrot.slane %v2627, 5
        %v3137 = vsel %vm1163, %v3135, %v3136
        %v3138 = vrot.slane %v3074, 5
        %v3139 = vrot.slane %v3138, 4
        %v3140 = vrot.slane %v2629, 5
        %v3141 = vsel %vm1163, %v3139, %v3140
        %v3142 = vrot.slane %v3140, 4
        %v3143 = vrot.slane %v2630, 5
        %v3144 = vsel %vm1163, %v3142, %v3143
        %v3145 = vrot.slane %v3075, 5
        %v3146 = vrot.slane %v3145, 4
        %v3147 = vrot.slane %v2632, 5
        %v3148 = vsel %vm1163, %v3146, %v3147
        %v3149 = vrot.slane %v3147, 4
        %v3150 = vrot.slane %v2633, 5
        %v3151 = vsel %vm1163, %v3149, %v3150
        %v3152 = vrot.slane %v3076, 5
        %v3153 = vrot.slane %v3152, 4
        %v3154 = vrot.slane %v2635, 5
        %v3155 = vsel %vm1163, %v3153, %v3154
        %v3156 = vrot.slane %v3154, 4
        %v3157 = vrot.slane %v2636, 5
        %v3158 = vsel %vm1163, %v3156, %v3157
        %v3159 = vrot.slane %v3077, 5
        %v3160 = vrot.slane %v3159, 4
        %v3161 = vrot.slane %v2638, 5
        %v3162 = vsel %vm1163, %v3160, %v3161
        %v3163 = vrot.slane %v3161, 4
        %v3164 = vrot.slane %v2639, 5
        %v3165 = vsel %vm1163, %v3163, %v3164
        %v3166 = vrot.slane %v3078, 5
        %v3167 = vrot.slane %v3166, 4
        %v3168 = vrot.slane %v2641, 5
        %v3169 = vsel %vm1163, %v3167, %v3168
        %v3170 = vrot.slane %v3168, 4
        %v3171 = vrot.slane %v2642, 5
        %v3172 = vsel %vm1163, %v3170, %v3171
        %v3173 = vrot.slane %v3079, 5
        %v3174 = vrot.slane %v3173, 4
        %v3175 = vrot.slane %v2644, 5
        %v3176 = vsel %vm1163, %v3174, %v3175
        %v3177 = vrot.slane %v3175, 4
        %v3178 = vrot.slane %v2645, 5
        %v3179 = vsel %vm1163, %v3177, %v3178
        %s3180 = scalar_lea.vmem %s3, 512
        %v3181 = vld [vmem:[%s3180] sm:$0xf]
        %v3182 = vld [vmem:[%s3180 + $0x4] sm:$0xf]
        %v3183 = vld [vmem:[%s3180 + $0x8] sm:$0xf]
        %v3184 = vld [vmem:[%s3180 + $0xc] sm:$0xf]
        %v3185 = vld [vmem:[%s3180 + $0x10] sm:$0xf]
        %v3186 = vld [vmem:[%s3180 + $0x14] sm:$0xf]
        %v3187 = vld [vmem:[%s3180 + $0x18] sm:$0xf]
        %v3188 = vld [vmem:[%s3180 + $0x1c] sm:$0xf]
        %v3189 = vld [vmem:[%s3180 + $0x20] sm:$0xf]
        %v3190 = vld [vmem:[%s3180 + $0x24] sm:$0xf]
        %v3191 = vld [vmem:[%s3180 + $0x28] sm:$0xf]
        %v3192 = vld [vmem:[%s3180 + $0x2c] sm:$0xf]
        %v3193 = vld [vmem:[%s3180 + $0x30] sm:$0xf]
        %v3194 = vld [vmem:[%s3180 + $0x34] sm:$0xf]
        %v3195 = vld [vmem:[%s3180 + $0x38] sm:$0xf]
        %v3196 = vld [vmem:[%s3180 + $0x3c] sm:$0xf]
        %v3197 = vunpack.c.l.b16 %v3113
        %v3198 = vunpack.c.l.b16 %v3116
        %v3199 = vunpack.c.l.b16 %v3120
        %v3200 = vunpack.c.l.b16 %v3123
        %v3201 = vunpack.c.l.b16 %v3127
        %v3202 = vunpack.c.l.b16 %v3130
        %v3203 = vunpack.c.l.b16 %v3134
        %v3204 = vunpack.c.l.b16 %v3137
        %v3205 = vunpack.c.l.b16 %v3141
        %v3206 = vunpack.c.l.b16 %v3144
        %v3207 = vunpack.c.l.b16 %v3148
        %v3208 = vunpack.c.l.b16 %v3151
        %v3209 = vunpack.c.l.b16 %v3155
        %v3210 = vunpack.c.l.b16 %v3158
        %v3211 = vunpack.c.l.b16 %v3162
        %v3212 = vunpack.c.l.b16 %v3165
        %v3213 = vunpack.c.l.b16 %v3169
        %v3214 = vunpack.c.l.b16 %v3172
        %v3215 = vunpack.c.l.b16 %v3176
        %v3216 = vunpack.c.l.b16 %v3179
        %v3217 = vpack.c.b16 %v3198, %v3197
        %v3218 = vpack.c.b16 %v3200, %v3199
        %v3219 = vpack.c.b16 %v3202, %v3201
        %v3220 = vpack.c.b16 %v3204, %v3203
        %v3221 = vpack.c.b16 %v3206, %v3205
        %v3222 = vpack.c.b16 %v3208, %v3207
        %v3223 = vpack.c.b16 %v3210, %v3209
        %v3224 = vpack.c.b16 %v3212, %v3211
        %v3225 = vpack.c.b16 %v3214, %v3213
        %v3226 = vpack.c.b16 %v3216, %v3215
        %v3253 = vunpack.c.l.b16 %v3181
        %v3254 = vunpack.c.l.b16 %v3182
        %v3255 = vunpack.c.l.b16 %v3183
        %v3256 = vunpack.c.l.b16 %v3184
        %v3257 = vunpack.c.l.b16 %v3185
        %v3258 = vunpack.c.l.b16 %v3186
        %v3259 = vunpack.c.l.b16 %v3187
        %v3260 = vunpack.c.l.b16 %v3188
        %v3261 = vunpack.c.l.b16 %v3189
        %v3262 = vunpack.c.l.b16 %v3190
        %v3263 = vunpack.c.l.b16 %v3191
        %v3264 = vunpack.c.l.b16 %v3192
        %v3265 = vunpack.c.l.b16 %v3193
        %v3266 = vunpack.c.l.b16 %v3194
        %v3267 = vunpack.c.l.b16 %v3195
        %v3268 = vunpack.c.l.b16 %v3196
        %v3269 = vpack.c.b16 %v3254, %v3253
        %v3270 = vpack.c.b16 %v3256, %v3255
        %v3271 = vpack.c.b16 %v3258, %v3257
        %v3272 = vpack.c.b16 %v3260, %v3259
        %v3273 = vpack.c.b16 %v3262, %v3261
        %v3274 = vpack.c.b16 %v3264, %v3263
        %v3275 = vpack.c.b16 %v3266, %v3265
        %v3276 = vpack.c.b16 %v3268, %v3267
        %3285 = vmatpush.bf16.msra.mxu0 %v3276
        %3286 = vmatpush.bf16.msra.mxu0 %v3275
        %3287 = vmatpush.bf16.msra.mxu0 %v3274
        %3288 = vmatpush.bf16.msra.mxu0 %v3273
        %3289 = vmatpush.bf16.msra.mxu0 %v3272
        %3290 = vmatpush.bf16.msra.mxu0 %v3271
        %3291 = vmatpush.bf16.msra.mxu0 %v3270
        %3292 = vmatpush.bf16.msra.mxu0 %v3269
        %3293 = vmatmul.bf16.gmra.mxu0 %v3217
        %v3294 = vpop.f32.mrf.mxu0
        %v3295 = vadd.f32 0.0, %v3294
        %v3296 = vpop.f32.mrf.mxu0
        %v3297 = vadd.f32 0.0, %v3296
        %3298 = vmatmul.bf16.gmra.mxu0 %v3218
        %v3299 = vpop.f32.mrf.mxu0
        %v3300 = vadd.f32 0.0, %v3299
        %v3301 = vpop.f32.mrf.mxu0
        %v3302 = vadd.f32 0.0, %v3301
        %3303 = vmatmul.bf16.gmra.mxu0 %v3219
        %v3304 = vpop.f32.mrf.mxu0
        %v3305 = vadd.f32 0.0, %v3304
        %v3306 = vpop.f32.mrf.mxu0
        %v3307 = vadd.f32 0.0, %v3306
        %3308 = vmatmul.bf16.gmra.mxu0 %v3220
        %v3309 = vpop.f32.mrf.mxu0
        %v3310 = vadd.f32 0.0, %v3309
        %v3311 = vpop.f32.mrf.mxu0
        %v3312 = vadd.f32 0.0, %v3311
        %3313 = vmatmul.bf16.gmra.mxu0 %v3221
        %v3314 = vpop.f32.mrf.mxu0
        %v3315 = vadd.f32 0.0, %v3314
        %v3316 = vpop.f32.mrf.mxu0
        %v3317 = vadd.f32 0.0, %v3316
        %3318 = vmatmul.bf16.gmra.mxu0 %v3222
        %v3319 = vpop.f32.mrf.mxu0
        %v3320 = vadd.f32 0.0, %v3319
        %v3321 = vpop.f32.mrf.mxu0
        %v3322 = vadd.f32 0.0, %v3321
        %3323 = vmatmul.bf16.gmra.mxu0 %v3223
        %v3324 = vpop.f32.mrf.mxu0
        %v3325 = vadd.f32 0.0, %v3324
        %v3326 = vpop.f32.mrf.mxu0
        %v3327 = vadd.f32 0.0, %v3326
        %3328 = vmatmul.bf16.gmra.mxu0 %v3224
        %v3329 = vpop.f32.mrf.mxu0
        %v3330 = vadd.f32 0.0, %v3329
        %v3331 = vpop.f32.mrf.mxu0
        %v3332 = vadd.f32 0.0, %v3331
        %3333 = vmatmul.bf16.gmra.mxu0 %v3225
        %v3334 = vpop.f32.mrf.mxu0
        %v3335 = vadd.f32 0.0, %v3334
        %v3336 = vpop.f32.mrf.mxu0
        %v3337 = vadd.f32 0.0, %v3336
        %3338 = vmatmul.bf16.gmra.mxu0 %v3226
        %v3339 = vpop.f32.mrf.mxu0
        %v3340 = vadd.f32 0.0, %v3339
        %v3341 = vpop.f32.mrf.mxu0
        %v3342 = vadd.f32 0.0, %v3341
        %3343 = vdwg.mxu0
        %v3344 = vadd.f32 %v3050, %v3295
        %v3345 = vadd.f32 %v3051, %v3297
        %v3346 = vadd.f32 %v3052, %v3300
        %v3347 = vadd.f32 %v3053, %v3302
        %v3348 = vadd.f32 %v3054, %v3305
        %v3349 = vadd.f32 %v3055, %v3307
        %v3350 = vadd.f32 %v3056, %v3310
        %v3351 = vadd.f32 %v3057, %v3312
        %v3352 = vadd.f32 %v3058, %v3315
        %v3353 = vadd.f32 %v3059, %v3317
        %v3354 = vadd.f32 %v3060, %v3320
        %v3355 = vadd.f32 %v3061, %v3322
        %v3356 = vadd.f32 %v3062, %v3325
        %v3357 = vadd.f32 %v3063, %v3327
        %v3358 = vadd.f32 %v3064, %v3330
        %v3359 = vadd.f32 %v3065, %v3332
        %v3360 = vadd.f32 %v3066, %v3335
        %v3361 = vadd.f32 %v3067, %v3337
        %v3362 = vadd.f32 %v3068, %v3340
        %v3363 = vadd.f32 %v3069, %v3342
        %v3364 = vld [vmem:[%s5] sm:$0x1]
        %v3366 = vperm.slane %v3364, 0
        %v3368 = vadd.f32 %v3344, %v3366
        %v3369 = vadd.f32 %v3345, %v3366
        %v3370 = vadd.f32 %v3346, %v3366
        %v3371 = vadd.f32 %v3347, %v3366
        %v3372 = vadd.f32 %v3348, %v3366
        %v3373 = vadd.f32 %v3349, %v3366
        %v3374 = vadd.f32 %v3350, %v3366
        %v3375 = vadd.f32 %v3351, %v3366
        %v3376 = vadd.f32 %v3352, %v3366
        %v3377 = vadd.f32 %v3353, %v3366
        %v3378 = vadd.f32 %v3354, %v3366
        %v3379 = vadd.f32 %v3355, %v3366
        %v3380 = vadd.f32 %v3356, %v3366
        %v3381 = vadd.f32 %v3357, %v3366
        %v3382 = vadd.f32 %v3358, %v3366
        %v3383 = vadd.f32 %v3359, %v3366
        %v3384 = vadd.f32 %v3360, %v3366
        %v3385 = vadd.f32 %v3361, %v3366
        %v3386 = vadd.f32 %v3362, %v3366
        %v3387 = vadd.f32 %v3363, %v3366
        %v3388 = vmax.f32 %v3368, 0.0
        %v3389 = vmax.f32 %v3369, 0.0
        %v3390 = vmax.f32 %v3370, 0.0
        %v3391 = vmax.f32 %v3371, 0.0
        %v3392 = vmax.f32 %v3372, 0.0
        %v3393 = vmax.f32 %v3373, 0.0
        %v3394 = vmax.f32 %v3374, 0.0
        %v3395 = vmax.f32 %v3375, 0.0
        %v3396 = vmax.f32 %v3376, 0.0
        %v3397 = vmax.f32 %v3377, 0.0
        %v3398 = vmax.f32 %v3378, 0.0
        %v3399 = vmax.f32 %v3379, 0.0
        %v3400 = vmax.f32 %v3380, 0.0
        %v3401 = vmax.f32 %v3381, 0.0
        %v3402 = vmax.f32 %v3382, 0.0
        %v3403 = vmax.f32 %v3383, 0.0
        %v3404 = vmax.f32 %v3384, 0.0
        %v3405 = vmax.f32 %v3385, 0.0
        %v3406 = vmax.f32 %v3386, 0.0
        %v3407 = vmax.f32 %v3387, 0.0
        %v3408 = vpack.c.bf16 %v3388, %v3388
        %v3409 = vpack.c.bf16 %v3389, %v3389
        %v3410 = vpack.c.bf16 %v3390, %v3390
        %v3411 = vpack.c.bf16 %v3391, %v3391
        %v3412 = vpack.c.bf16 %v3392, %v3392
        %v3413 = vpack.c.bf16 %v3393, %v3393
        %v3414 = vpack.c.bf16 %v3394, %v3394
        %v3415 = vpack.c.bf16 %v3395, %v3395
        %v3416 = vpack.c.bf16 %v3396, %v3396
        %v3417 = vpack.c.bf16 %v3397, %v3397
        %v3418 = vpack.c.bf16 %v3398, %v3398
        %v3419 = vpack.c.bf16 %v3399, %v3399
        %v3420 = vpack.c.bf16 %v3400, %v3400
        %v3421 = vpack.c.bf16 %v3401, %v3401
        %v3422 = vpack.c.bf16 %v3402, %v3402
        %v3423 = vpack.c.bf16 %v3403, %v3403
        %v3424 = vpack.c.bf16 %v3404, %v3404
        %v3425 = vpack.c.bf16 %v3405, %v3405
        %v3426 = vpack.c.bf16 %v3406, %v3406
        %v3427 = vpack.c.bf16 %v3407, %v3407
        %vm3428 = vsmask.f32 256
        %vm3429 = vsmask.f32 4368
        %vm3430 = vmor %vm3428, %vm3429
        %v3432 = vshrl.u32 %v3408, 16
        %v3434 = vrot.slane %v3432, 7
        %v3435 = vshll.u32 %v3408, 16
        %v3437 = vor.u32 %v3434, %v3435
        %v3438 = vrot.slane %v3434, 4
        %v3440 = vshrl.u32 %v3409, 16
        %v3442 = vrot.slane %v3440, 7
        %v3443 = vshll.u32 %v3409, 16
        %v3445 = vor.u32 %v3442, %v3443
        %v3446 = vsel %vm3430, %v3438, %v3445
        %v3447 = vrot.slane %v3442, 4
        %v3449 = vshrl.u32 %v3410, 16
        %v3451 = vrot.slane %v3449, 7
        %v3452 = vshll.u32 %v3410, 16
        %v3454 = vor.u32 %v3451, %v3452
        %v3455 = vrot.slane %v3451, 4
        %v3457 = vshrl.u32 %v3411, 16
        %v3459 = vrot.slane %v3457, 7
        %v3460 = vshll.u32 %v3411, 16
        %v3462 = vor.u32 %v3459, %v3460
        %v3463 = vsel %vm3430, %v3455, %v3462
        %v3464 = vrot.slane %v3459, 4
        %v3466 = vshrl.u32 %v3412, 16
        %v3468 = vrot.slane %v3466, 7
        %v3469 = vshll.u32 %v3412, 16
        %v3471 = vor.u32 %v3468, %v3469
        %v3472 = vrot.slane %v3468, 4
        %v3474 = vshrl.u32 %v3413, 16
        %v3476 = vrot.slane %v3474, 7
        %v3477 = vshll.u32 %v3413, 16
        %v3479 = vor.u32 %v3476, %v3477
        %v3480 = vsel %vm3430, %v3472, %v3479
        %v3481 = vrot.slane %v3476, 4
        %v3483 = vshrl.u32 %v3414, 16
        %v3485 = vrot.slane %v3483, 7
        %v3486 = vshll.u32 %v3414, 16
        %v3488 = vor.u32 %v3485, %v3486
        %v3489 = vrot.slane %v3485, 4
        %v3491 = vshrl.u32 %v3415, 16
        %v3493 = vrot.slane %v3491, 7
        %v3494 = vshll.u32 %v3415, 16
        %v3496 = vor.u32 %v3493, %v3494
        %v3497 = vsel %vm3430, %v3489, %v3496
        %v3498 = vrot.slane %v3493, 4
        %v3500 = vshrl.u32 %v3416, 16
        %v3502 = vrot.slane %v3500, 7
        %v3503 = vshll.u32 %v3416, 16
        %v3505 = vor.u32 %v3502, %v3503
        %v3506 = vrot.slane %v3502, 4
        %v3508 = vshrl.u32 %v3417, 16
        %v3510 = vrot.slane %v3508, 7
        %v3511 = vshll.u32 %v3417, 16
        %v3513 = vor.u32 %v3510, %v3511
        %v3514 = vsel %vm3430, %v3506, %v3513
        %v3515 = vrot.slane %v3510, 4
        %v3517 = vshrl.u32 %v3418, 16
        %v3519 = vrot.slane %v3517, 7
        %v3520 = vshll.u32 %v3418, 16
        %v3522 = vor.u32 %v3519, %v3520
        %v3523 = vrot.slane %v3519, 4
        %v3525 = vshrl.u32 %v3419, 16
        %v3527 = vrot.slane %v3525, 7
        %v3528 = vshll.u32 %v3419, 16
        %v3530 = vor.u32 %v3527, %v3528
        %v3531 = vsel %vm3430, %v3523, %v3530
        %v3532 = vrot.slane %v3527, 4
        %v3534 = vshrl.u32 %v3420, 16
        %v3536 = vrot.slane %v3534, 7
        %v3537 = vshll.u32 %v3420, 16
        %v3539 = vor.u32 %v3536, %v3537
        %v3540 = vrot.slane %v3536, 4
        %v3542 = vshrl.u32 %v3421, 16
        %v3544 = vrot.slane %v3542, 7
        %v3545 = vshll.u32 %v3421, 16
        %v3547 = vor.u32 %v3544, %v3545
        %v3548 = vsel %vm3430, %v3540, %v3547
        %v3549 = vrot.slane %v3544, 4
        %v3551 = vshrl.u32 %v3422, 16
        %v3553 = vrot.slane %v3551, 7
        %v3554 = vshll.u32 %v3422, 16
        %v3556 = vor.u32 %v3553, %v3554
        %v3557 = vrot.slane %v3553, 4
        %v3559 = vshrl.u32 %v3423, 16
        %v3561 = vrot.slane %v3559, 7
        %v3562 = vshll.u32 %v3423, 16
        %v3564 = vor.u32 %v3561, %v3562
        %v3565 = vsel %vm3430, %v3557, %v3564
        %v3566 = vrot.slane %v3561, 4
        %v3568 = vshrl.u32 %v3424, 16
        %v3570 = vrot.slane %v3568, 7
        %v3571 = vshll.u32 %v3424, 16
        %v3573 = vor.u32 %v3570, %v3571
        %v3574 = vrot.slane %v3570, 4
        %v3576 = vshrl.u32 %v3425, 16
        %v3578 = vrot.slane %v3576, 7
        %v3579 = vshll.u32 %v3425, 16
        %v3581 = vor.u32 %v3578, %v3579
        %v3582 = vsel %vm3430, %v3574, %v3581
        %v3583 = vrot.slane %v3578, 4
        %v3585 = vshrl.u32 %v3426, 16
        %v3587 = vrot.slane %v3585, 7
        %v3588 = vshll.u32 %v3426, 16
        %v3590 = vor.u32 %v3587, %v3588
        %v3591 = vrot.slane %v3587, 4
        %v3593 = vshrl.u32 %v3427, 16
        %v3595 = vrot.slane %v3593, 7
        %v3596 = vshll.u32 %v3427, 16
        %v3598 = vor.u32 %v3595, %v3596
        %v3599 = vsel %vm3430, %v3591, %v3598
        %v3600 = vrot.slane %v3595, 4
        %vm3631 = vcmask 1043456
        %vm3632 = vsmask.f32 7938
        %vm3633 = vmand %vm3631, %vm3632
        %v3634 = vld [vmem:[#allocation3] sm:$0xf]
        %v3635 = vsel %vm3633, %v3437, %v3634
        %3636 = vst [vmem:[#allocation3] sm:$0xf] %v3635
        %3637 = vst [vmem:[#allocation3 + $0x4] sm:$0xf] %v3446
        %vm3638 = vcmask 1040384
        %vm3639 = vmand %vm3638, %vm3428
        %v3640 = vld [vmem:[#allocation3 + $0x8] sm:$0x1]
        %v3641 = vsel %vm3639, %v3447, %v3640
        %3642 = vst [vmem:[#allocation3 + $0x8] sm:$0x1] %v3641
        %v3643 = vld [vmem:[#allocation3 + $0xc] sm:$0xf]
        %v3644 = vsel %vm3633, %v3454, %v3643
        %3645 = vst [vmem:[#allocation3 + $0xc] sm:$0xf] %v3644
        %3646 = vst [vmem:[#allocation3 + $0x10] sm:$0xf] %v3463
        %v3647 = vld [vmem:[#allocation3 + $0x14] sm:$0x1]
        %v3648 = vsel %vm3639, %v3464, %v3647
        %3649 = vst [vmem:[#allocation3 + $0x14] sm:$0x1] %v3648
        %v3650 = vld [vmem:[#allocation3 + $0x18] sm:$0xf]
        %v3651 = vsel %vm3633, %v3471, %v3650
        %3652 = vst [vmem:[#allocation3 + $0x18] sm:$0xf] %v3651
        %3653 = vst [vmem:[#allocation3 + $0x1c] sm:$0xf] %v3480
        %v3654 = vld [vmem:[#allocation3 + $0x20] sm:$0x1]
        %v3655 = vsel %vm3639, %v3481, %v3654
        %3656 = vst [vmem:[#allocation3 + $0x20] sm:$0x1] %v3655
        %v3657 = vld [vmem:[#allocation3 + $0x24] sm:$0xf]
        %v3658 = vsel %vm3633, %v3488, %v3657
        %3659 = vst [vmem:[#allocation3 + $0x24] sm:$0xf] %v3658
        %3660 = vst [vmem:[#allocation3 + $0x28] sm:$0xf] %v3497
        %v3661 = vld [vmem:[#allocation3 + $0x2c] sm:$0x1]
        %v3662 = vsel %vm3639, %v3498, %v3661
        %3663 = vst [vmem:[#allocation3 + $0x2c] sm:$0x1] %v3662
        %v3664 = vld [vmem:[#allocation3 + $0x30] sm:$0xf]
        %v3665 = vsel %vm3633, %v3505, %v3664
        %3666 = vst [vmem:[#allocation3 + $0x30] sm:$0xf] %v3665
        %3667 = vst [vmem:[#allocation3 + $0x34] sm:$0xf] %v3514
        %v3668 = vld [vmem:[#allocation3 + $0x38] sm:$0x1]
        %v3669 = vsel %vm3639, %v3515, %v3668
        %3670 = vst [vmem:[#allocation3 + $0x38] sm:$0x1] %v3669
        %v3671 = vld [vmem:[#allocation3 + $0x3c] sm:$0xf]
        %v3672 = vsel %vm3633, %v3522, %v3671
        %3673 = vst [vmem:[#allocation3 + $0x3c] sm:$0xf] %v3672
        %3674 = vst [vmem:[#allocation3 + $0x40] sm:$0xf] %v3531
        %v3675 = vld [vmem:[#allocation3 + $0x44] sm:$0x1]
        %v3676 = vsel %vm3639, %v3532, %v3675
        %3677 = vst [vmem:[#allocation3 + $0x44] sm:$0x1] %v3676
        %v3678 = vld [vmem:[#allocation3 + $0x48] sm:$0xf]
        %v3679 = vsel %vm3633, %v3539, %v3678
        %3680 = vst [vmem:[#allocation3 + $0x48] sm:$0xf] %v3679
        %3681 = vst [vmem:[#allocation3 + $0x4c] sm:$0xf] %v3548
        %v3682 = vld [vmem:[#allocation3 + $0x50] sm:$0x1]
        %v3683 = vsel %vm3639, %v3549, %v3682
        %3684 = vst [vmem:[#allocation3 + $0x50] sm:$0x1] %v3683
        %v3685 = vld [vmem:[#allocation3 + $0x54] sm:$0xf]
        %v3686 = vsel %vm3633, %v3556, %v3685
        %3687 = vst [vmem:[#allocation3 + $0x54] sm:$0xf] %v3686
        %3688 = vst [vmem:[#allocation3 + $0x58] sm:$0xf] %v3565
        %v3689 = vld [vmem:[#allocation3 + $0x5c] sm:$0x1]
        %v3690 = vsel %vm3639, %v3566, %v3689
        %3691 = vst [vmem:[#allocation3 + $0x5c] sm:$0x1] %v3690
        %v3692 = vld [vmem:[#allocation3 + $0x60] sm:$0xf]
        %v3693 = vsel %vm3633, %v3573, %v3692
        %3694 = vst [vmem:[#allocation3 + $0x60] sm:$0xf] %v3693
        %3695 = vst [vmem:[#allocation3 + $0x64] sm:$0xf] %v3582
        %v3696 = vld [vmem:[#allocation3 + $0x68] sm:$0x1]
        %v3697 = vsel %vm3639, %v3583, %v3696
        %3698 = vst [vmem:[#allocation3 + $0x68] sm:$0x1] %v3697
        %v3699 = vld [vmem:[#allocation3 + $0x6c] sm:$0xf]
        %v3700 = vsel %vm3633, %v3590, %v3699
        %3701 = vst [vmem:[#allocation3 + $0x6c] sm:$0xf] %v3700
        %3702 = vst [vmem:[#allocation3 + $0x70] sm:$0xf] %v3599
        %v3703 = vld [vmem:[#allocation3 + $0x74] sm:$0x1]
        %v3704 = vsel %vm3639, %v3600, %v3703
        %3705 = vst [vmem:[#allocation3 + $0x74] sm:$0x1] %v3704
        %v3706 = vld [vmem:[#allocation3] sm:$0x1]
        %v3707 = vsel %vm3639, 0, %v3706
        %3708 = vst [vmem:[#allocation3] sm:$0x1] %v3707
        %v3709 = vld [vmem:[#allocation3 + $0xc] sm:$0x1]
        %v3710 = vsel %vm3639, 0, %v3709
        %3711 = vst [vmem:[#allocation3 + $0xc] sm:$0x1] %v3710
        %v3712 = vld [vmem:[#allocation3 + $0x18] sm:$0x1]
        %v3713 = vsel %vm3639, 0, %v3712
        %3714 = vst [vmem:[#allocation3 + $0x18] sm:$0x1] %v3713
        %v3715 = vld [vmem:[#allocation3 + $0x24] sm:$0x1]
        %v3716 = vsel %vm3639, 0, %v3715
        %3717 = vst [vmem:[#allocation3 + $0x24] sm:$0x1] %v3716
        %v3718 = vld [vmem:[#allocation3 + $0x30] sm:$0x1]
        %v3719 = vsel %vm3639, 0, %v3718
        %3720 = vst [vmem:[#allocation3 + $0x30] sm:$0x1] %v3719
        %v3721 = vld [vmem:[#allocation3 + $0x3c] sm:$0x1]
        %v3722 = vsel %vm3639, 0, %v3721
        %3723 = vst [vmem:[#allocation3 + $0x3c] sm:$0x1] %v3722
        %v3724 = vld [vmem:[#allocation3 + $0x48] sm:$0x1]
        %v3725 = vsel %vm3639, 0, %v3724
        %3726 = vst [vmem:[#allocation3 + $0x48] sm:$0x1] %v3725
        %v3727 = vld [vmem:[#allocation3 + $0x54] sm:$0x1]
        %v3728 = vsel %vm3639, 0, %v3727
        %3729 = vst [vmem:[#allocation3 + $0x54] sm:$0x1] %v3728
        %v3730 = vld [vmem:[#allocation3 + $0x60] sm:$0x1]
        %v3731 = vsel %vm3639, 0, %v3730
        %3732 = vst [vmem:[#allocation3 + $0x60] sm:$0x1] %v3731
        %v3733 = vld [vmem:[#allocation3 + $0x6c] sm:$0x1]
        %v3734 = vsel %vm3639, 0, %v3733
        %3735 = vst [vmem:[#allocation3 + $0x6c] sm:$0x1] %v3734
        %vm3736 = vmand %vm3638, %vm3632
        %v3737 = vld [vmem:[#allocation3 + $0x8] sm:$0x1]
        %v3738 = vsel %vm3736, 0, %v3737
        %3739 = vst [vmem:[#allocation3 + $0x8] sm:$0x1] %v3738
        %v3740 = vld [vmem:[#allocation3 + $0x14] sm:$0x1]
        %v3741 = vsel %vm3736, 0, %v3740
        %3742 = vst [vmem:[#allocation3 + $0x14] sm:$0x1] %v3741
        %v3743 = vld [vmem:[#allocation3 + $0x20] sm:$0x1]
        %v3744 = vsel %vm3736, 0, %v3743
        %3745 = vst [vmem:[#allocation3 + $0x20] sm:$0x1] %v3744
        %v3746 = vld [vmem:[#allocation3 + $0x2c] sm:$0x1]
        %v3747 = vsel %vm3736, 0, %v3746
        %3748 = vst [vmem:[#allocation3 + $0x2c] sm:$0x1] %v3747
        %v3749 = vld [vmem:[#allocation3 + $0x38] sm:$0x1]
        %v3750 = vsel %vm3736, 0, %v3749
        %3751 = vst [vmem:[#allocation3 + $0x38] sm:$0x1] %v3750
        %v3752 = vld [vmem:[#allocation3 + $0x44] sm:$0x1]
        %v3753 = vsel %vm3736, 0, %v3752
        %3754 = vst [vmem:[#allocation3 + $0x44] sm:$0x1] %v3753
        %v3755 = vld [vmem:[#allocation3 + $0x50] sm:$0x1]
        %v3756 = vsel %vm3736, 0, %v3755
        %3757 = vst [vmem:[#allocation3 + $0x50] sm:$0x1] %v3756
        %v3758 = vld [vmem:[#allocation3 + $0x5c] sm:$0x1]
        %v3759 = vsel %vm3736, 0, %v3758
        %3760 = vst [vmem:[#allocation3 + $0x5c] sm:$0x1] %v3759
        %v3761 = vld [vmem:[#allocation3 + $0x68] sm:$0x1]
        %v3762 = vsel %vm3736, 0, %v3761
        %3763 = vst [vmem:[#allocation3 + $0x68] sm:$0x1] %v3762
        %v3764 = vld [vmem:[#allocation3 + $0x74] sm:$0x1]
        %v3765 = vsel %vm3736, 0, %v3764
        %3766 = vst [vmem:[#allocation3 + $0x74] sm:$0x1] %v3765
        %p3767 = scmp.eq.s32.totalorder %s29, 0
        // Predicated region
        $region53: #{tpu_custom_call.1} parent=47 // pred_check
          %p3768 = pneg %p3767
        $region54: #{tpu_custom_call.1} parent=47 // pred_check_branch
          %3770 = sbr.rel (%p3768) target = $region56
        $region55: #{tpu_custom_call.1} parent=47 // pred_region
          %3771 = vst [vmem:[#allocation3] sm:$0xf] 0
          %3772 = vst [vmem:[#allocation3 + $0x4] sm:$0xf] 0
          %3773 = vst [vmem:[#allocation3 + $0x8] sm:$0x1] 0
        $region56: #{tpu_custom_call.1} parent=47 // pred_fallthru
          _
        %p3774 = scmp.eq.s32.totalorder %s29, 1
        // Predicated region
        $region57: #{tpu_custom_call.1} parent=47 // pred_check
          %p3775 = pneg %p3774
        $region58: #{tpu_custom_call.1} parent=47 // pred_check_branch
          %3777 = sbr.rel (%p3775) target = $region60
        $region59: #{tpu_custom_call.1} parent=47 // pred_region
          %s3778 = scalar_lea.vmem [#allocation3], 108
          %3779 = vst [vmem:[%s3778] sm:$0xf] 0
          %3780 = vst [vmem:[%s3778 + $0x4] sm:$0xf] 0
          %3781 = vst [vmem:[%s3778 + $0x8] sm:$0x1] 0
        $region60: #{tpu_custom_call.1} parent=47 // pred_fallthru
          _
        %v3782 = vld [vmem:[#allocation3] sm:$0xf]
        %v3783 = vld [vmem:[#allocation3 + $0x4] sm:$0xf]
        %v3784 = vld [vmem:[#allocation3 + $0xc] sm:$0xf]
        %v3785 = vld [vmem:[#allocation3 + $0x10] sm:$0xf]
        %v3786 = vld [vmem:[#allocation3 + $0x18] sm:$0xf]
        %v3787 = vld [vmem:[#allocation3 + $0x1c] sm:$0xf]
        %v3788 = vld [vmem:[#allocation3 + $0x24] sm:$0xf]
        %v3789 = vld [vmem:[#allocation3 + $0x28] sm:$0xf]
        %v3790 = vld [vmem:[#allocation3 + $0x30] sm:$0xf]
        %v3791 = vld [vmem:[#allocation3 + $0x34] sm:$0xf]
        %v3792 = vld [vmem:[#allocation3 + $0x3c] sm:$0xf]
        %v3793 = vld [vmem:[#allocation3 + $0x40] sm:$0xf]
        %v3794 = vld [vmem:[#allocation3 + $0x48] sm:$0xf]
        %v3795 = vld [vmem:[#allocation3 + $0x4c] sm:$0xf]
        %v3796 = vld [vmem:[#allocation3 + $0x54] sm:$0xf]
        %v3797 = vld [vmem:[#allocation3 + $0x58] sm:$0xf]
        %v3798 = vld [vmem:[%s4] sm:$0xf]
        %v3799 = vld [vmem:[%s4 + $0x4] sm:$0xf]
        %v3800 = vld [vmem:[%s4 + $0x8] sm:$0xf]
        %v3801 = vld [vmem:[%s4 + $0xc] sm:$0xf]
        %v3802 = vld [vmem:[%s4 + $0x10] sm:$0xf]
        %v3803 = vld [vmem:[%s4 + $0x14] sm:$0xf]
        %v3804 = vld [vmem:[%s4 + $0x18] sm:$0xf]
        %v3805 = vld [vmem:[%s4 + $0x1c] sm:$0xf]
        %v3806 = vld [vmem:[%s4 + $0x20] sm:$0xf]
        %v3807 = vld [vmem:[%s4 + $0x24] sm:$0xf]
        %v3808 = vld [vmem:[%s4 + $0x28] sm:$0xf]
        %v3809 = vld [vmem:[%s4 + $0x2c] sm:$0xf]
        %v3810 = vld [vmem:[%s4 + $0x30] sm:$0xf]
        %v3811 = vld [vmem:[%s4 + $0x34] sm:$0xf]
        %v3812 = vld [vmem:[%s4 + $0x38] sm:$0xf]
        %v3813 = vld [vmem:[%s4 + $0x3c] sm:$0xf]
        %v3814 = vld [vmem:[#allocation3 + $0x8] sm:$0x1]
        %v3815 = vld [vmem:[#allocation3 + $0x14] sm:$0x1]
        %v3816 = vld [vmem:[#allocation3 + $0x20] sm:$0x1]
        %v3817 = vld [vmem:[#allocation3 + $0x2c] sm:$0x1]
        %v3818 = vld [vmem:[#allocation3 + $0x38] sm:$0x1]
        %v3819 = vld [vmem:[#allocation3 + $0x44] sm:$0x1]
        %v3820 = vld [vmem:[#allocation3 + $0x50] sm:$0x1]
        %v3821 = vld [vmem:[#allocation3 + $0x5c] sm:$0x1]
        %v3823 = vshrl.u32 %v3782, 16
        %v3825 = vrot.slane %v3823, 4
        %v3826 = vshll.u32 %v3782, 16
        %v3828 = vrot.slane %v3826, 5
        %v3829 = vor.u32 %v3825, %v3828
        %v3830 = vrot.slane %v3829, 4
        %v3832 = vshll.u32 %v3783, 16
        %v3834 = vrot.slane %v3832, 5
        %v3835 = vsel %vm559, %v3830, %v3834
        %v3836 = vshrl.u32 %v3783, 16
        %v3838 = vrot.slane %v3836, 4
        %v3839 = vor.u32 %v3838, %v3834
        %v3840 = vrot.slane %v3839, 4
        %v3842 = vshll.u32 %v3814, 16
        %v3844 = vrot.slane %v3842, 5
        %v3845 = vsel %vm559, %v3840, %v3844
        %v3847 = vshrl.u32 %v3784, 16
        %v3849 = vrot.slane %v3847, 4
        %v3850 = vshll.u32 %v3784, 16
        %v3852 = vrot.slane %v3850, 5
        %v3853 = vor.u32 %v3849, %v3852
        %v3854 = vrot.slane %v3853, 4
        %v3856 = vshll.u32 %v3785, 16
        %v3858 = vrot.slane %v3856, 5
        %v3859 = vsel %vm559, %v3854, %v3858
        %v3860 = vshrl.u32 %v3785, 16
        %v3862 = vrot.slane %v3860, 4
        %v3863 = vor.u32 %v3862, %v3858
        %v3864 = vrot.slane %v3863, 4
        %v3866 = vshll.u32 %v3815, 16
        %v3868 = vrot.slane %v3866, 5
        %v3869 = vsel %vm559, %v3864, %v3868
        %v3871 = vshrl.u32 %v3786, 16
        %v3873 = vrot.slane %v3871, 4
        %v3874 = vshll.u32 %v3786, 16
        %v3876 = vrot.slane %v3874, 5
        %v3877 = vor.u32 %v3873, %v3876
        %v3878 = vrot.slane %v3877, 4
        %v3880 = vshll.u32 %v3787, 16
        %v3882 = vrot.slane %v3880, 5
        %v3883 = vsel %vm559, %v3878, %v3882
        %v3884 = vshrl.u32 %v3787, 16
        %v3886 = vrot.slane %v3884, 4
        %v3887 = vor.u32 %v3886, %v3882
        %v3888 = vrot.slane %v3887, 4
        %v3890 = vshll.u32 %v3816, 16
        %v3892 = vrot.slane %v3890, 5
        %v3893 = vsel %vm559, %v3888, %v3892
        %v3895 = vshrl.u32 %v3788, 16
        %v3897 = vrot.slane %v3895, 4
        %v3898 = vshll.u32 %v3788, 16
        %v3900 = vrot.slane %v3898, 5
        %v3901 = vor.u32 %v3897, %v3900
        %v3902 = vrot.slane %v3901, 4
        %v3904 = vshll.u32 %v3789, 16
        %v3906 = vrot.slane %v3904, 5
        %v3907 = vsel %vm559, %v3902, %v3906
        %v3908 = vshrl.u32 %v3789, 16
        %v3910 = vrot.slane %v3908, 4
        %v3911 = vor.u32 %v3910, %v3906
        %v3912 = vrot.slane %v3911, 4
        %v3914 = vshll.u32 %v3817, 16
        %v3916 = vrot.slane %v3914, 5
        %v3917 = vsel %vm559, %v3912, %v3916
        %v3919 = vshrl.u32 %v3790, 16
        %v3921 = vrot.slane %v3919, 4
        %v3922 = vshll.u32 %v3790, 16
        %v3924 = vrot.slane %v3922, 5
        %v3925 = vor.u32 %v3921, %v3924
        %v3926 = vrot.slane %v3925, 4
        %v3928 = vshll.u32 %v3791, 16
        %v3930 = vrot.slane %v3928, 5
        %v3931 = vsel %vm559, %v3926, %v3930
        %v3932 = vshrl.u32 %v3791, 16
        %v3934 = vrot.slane %v3932, 4
        %v3935 = vor.u32 %v3934, %v3930
        %v3936 = vrot.slane %v3935, 4
        %v3938 = vshll.u32 %v3818, 16
        %v3940 = vrot.slane %v3938, 5
        %v3941 = vsel %vm559, %v3936, %v3940
        %v3943 = vshrl.u32 %v3792, 16
        %v3945 = vrot.slane %v3943, 4
        %v3946 = vshll.u32 %v3792, 16
        %v3948 = vrot.slane %v3946, 5
        %v3949 = vor.u32 %v3945, %v3948
        %v3950 = vrot.slane %v3949, 4
        %v3952 = vshll.u32 %v3793, 16
        %v3954 = vrot.slane %v3952, 5
        %v3955 = vsel %vm559, %v3950, %v3954
        %v3956 = vshrl.u32 %v3793, 16
        %v3958 = vrot.slane %v3956, 4
        %v3959 = vor.u32 %v3958, %v3954
        %v3960 = vrot.slane %v3959, 4
        %v3962 = vshll.u32 %v3819, 16
        %v3964 = vrot.slane %v3962, 5
        %v3965 = vsel %vm559, %v3960, %v3964
        %v3967 = vshrl.u32 %v3794, 16
        %v3969 = vrot.slane %v3967, 4
        %v3970 = vshll.u32 %v3794, 16
        %v3972 = vrot.slane %v3970, 5
        %v3973 = vor.u32 %v3969, %v3972
        %v3974 = vrot.slane %v3973, 4
        %v3976 = vshll.u32 %v3795, 16
        %v3978 = vrot.slane %v3976, 5
        %v3979 = vsel %vm559, %v3974, %v3978
        %v3980 = vshrl.u32 %v3795, 16
        %v3982 = vrot.slane %v3980, 4
        %v3983 = vor.u32 %v3982, %v3978
        %v3984 = vrot.slane %v3983, 4
        %v3986 = vshll.u32 %v3820, 16
        %v3988 = vrot.slane %v3986, 5
        %v3989 = vsel %vm559, %v3984, %v3988
        %v3991 = vshrl.u32 %v3796, 16
        %v3993 = vrot.slane %v3991, 4
        %v3994 = vshll.u32 %v3796, 16
        %v3996 = vrot.slane %v3994, 5
        %v3997 = vor.u32 %v3993, %v3996
        %v3998 = vrot.slane %v3997, 4
        %v4000 = vshll.u32 %v3797, 16
        %v4002 = vrot.slane %v4000, 5
        %v4003 = vsel %vm559, %v3998, %v4002
        %v4004 = vshrl.u32 %v3797, 16
        %v4006 = vrot.slane %v4004, 4
        %v4007 = vor.u32 %v4006, %v4002
        %v4008 = vrot.slane %v4007, 4
        %v4010 = vshll.u32 %v3821, 16
        %v4012 = vrot.slane %v4010, 5
        %v4013 = vsel %vm559, %v4008, %v4012
        %s4014 = scalar_lea.vmem %s4, 64
        %v4015 = vld [vmem:[%s4014] sm:$0xf]
        %v4016 = vld [vmem:[%s4014 + $0x4] sm:$0xf]
        %v4017 = vld [vmem:[%s4014 + $0x8] sm:$0xf]
        %v4018 = vld [vmem:[%s4014 + $0xc] sm:$0xf]
        %v4019 = vld [vmem:[%s4014 + $0x10] sm:$0xf]
        %v4020 = vld [vmem:[%s4014 + $0x14] sm:$0xf]
        %v4021 = vld [vmem:[%s4014 + $0x18] sm:$0xf]
        %v4022 = vld [vmem:[%s4014 + $0x1c] sm:$0xf]
        %v4023 = vld [vmem:[%s4014 + $0x20] sm:$0xf]
        %v4024 = vld [vmem:[%s4014 + $0x24] sm:$0xf]
        %v4025 = vld [vmem:[%s4014 + $0x28] sm:$0xf]
        %v4026 = vld [vmem:[%s4014 + $0x2c] sm:$0xf]
        %v4027 = vld [vmem:[%s4014 + $0x30] sm:$0xf]
        %v4028 = vld [vmem:[%s4014 + $0x34] sm:$0xf]
        %v4029 = vld [vmem:[%s4014 + $0x38] sm:$0xf]
        %v4030 = vld [vmem:[%s4014 + $0x3c] sm:$0xf]
        %v4031 = vunpack.c.l.b16 %v3835
        %v4032 = vunpack.c.l.b16 %v3845
        %v4033 = vunpack.c.l.b16 %v3859
        %v4034 = vunpack.c.l.b16 %v3869
        %v4035 = vunpack.c.l.b16 %v3883
        %v4036 = vunpack.c.l.b16 %v3893
        %v4037 = vunpack.c.l.b16 %v3907
        %v4038 = vunpack.c.l.b16 %v3917
        %v4039 = vunpack.c.l.b16 %v3931
        %v4040 = vunpack.c.l.b16 %v3941
        %v4041 = vunpack.c.l.b16 %v3955
        %v4042 = vunpack.c.l.b16 %v3965
        %v4043 = vunpack.c.l.b16 %v3979
        %v4044 = vunpack.c.l.b16 %v3989
        %v4045 = vunpack.c.l.b16 %v4003
        %v4046 = vunpack.c.l.b16 %v4013
        %v4047 = vpack.c.b16 %v4032, %v4031
        %v4048 = vpack.c.b16 %v4034, %v4033
        %v4049 = vpack.c.b16 %v4036, %v4035
        %v4050 = vpack.c.b16 %v4038, %v4037
        %v4051 = vpack.c.b16 %v4040, %v4039
        %v4052 = vpack.c.b16 %v4042, %v4041
        %v4053 = vpack.c.b16 %v4044, %v4043
        %v4054 = vpack.c.b16 %v4046, %v4045
        %v4079 = vunpack.c.l.b16 %v4015
        %v4080 = vunpack.c.l.b16 %v4016
        %v4081 = vunpack.c.l.b16 %v4017
        %v4082 = vunpack.c.l.b16 %v4018
        %v4083 = vunpack.c.l.b16 %v4019
        %v4084 = vunpack.c.l.b16 %v4020
        %v4085 = vunpack.c.l.b16 %v4021
        %v4086 = vunpack.c.l.b16 %v4022
        %v4087 = vunpack.c.l.b16 %v4023
        %v4088 = vunpack.c.l.b16 %v4024
        %v4089 = vunpack.c.l.b16 %v4025
        %v4090 = vunpack.c.l.b16 %v4026
        %v4091 = vunpack.c.l.b16 %v4027
        %v4092 = vunpack.c.l.b16 %v4028
        %v4093 = vunpack.c.l.b16 %v4029
        %v4094 = vunpack.c.l.b16 %v4030
        %v4095 = vpack.c.b16 %v4080, %v4079
        %v4096 = vpack.c.b16 %v4082, %v4081
        %v4097 = vpack.c.b16 %v4084, %v4083
        %v4098 = vpack.c.b16 %v4086, %v4085
        %v4099 = vpack.c.b16 %v4088, %v4087
        %v4100 = vpack.c.b16 %v4090, %v4089
        %v4101 = vpack.c.b16 %v4092, %v4091
        %v4102 = vpack.c.b16 %v4094, %v4093
        %4111 = vmatpush.bf16.msra.mxu0 %v4102
        %4112 = vmatpush.bf16.msra.mxu0 %v4101
        %4113 = vmatpush.bf16.msra.mxu0 %v4100
        %4114 = vmatpush.bf16.msra.mxu0 %v4099
        %4115 = vmatpush.bf16.msra.mxu0 %v4098
        %4116 = vmatpush.bf16.msra.mxu0 %v4097
        %4117 = vmatpush.bf16.msra.mxu0 %v4096
        %4118 = vmatpush.bf16.msra.mxu0 %v4095
        %4119 = vmatmul.bf16.gmra.mxu0 %v4047
        %v4120 = vpop.f32.mrf.mxu0
        %v4121 = vadd.f32 0.0, %v4120
        %v4122 = vpop.f32.mrf.mxu0
        %v4123 = vadd.f32 0.0, %v4122
        %4124 = vmatmul.bf16.gmra.mxu0 %v4048
        %v4125 = vpop.f32.mrf.mxu0
        %v4126 = vadd.f32 0.0, %v4125
        %v4127 = vpop.f32.mrf.mxu0
        %v4128 = vadd.f32 0.0, %v4127
        %4129 = vmatmul.bf16.gmra.mxu0 %v4049
        %v4130 = vpop.f32.mrf.mxu0
        %v4131 = vadd.f32 0.0, %v4130
        %v4132 = vpop.f32.mrf.mxu0
        %v4133 = vadd.f32 0.0, %v4132
        %4134 = vmatmul.bf16.gmra.mxu0 %v4050
        %v4135 = vpop.f32.mrf.mxu0
        %v4136 = vadd.f32 0.0, %v4135
        %v4137 = vpop.f32.mrf.mxu0
        %v4138 = vadd.f32 0.0, %v4137
        %4139 = vmatmul.bf16.gmra.mxu0 %v4051
        %v4140 = vpop.f32.mrf.mxu0
        %v4141 = vadd.f32 0.0, %v4140
        %v4142 = vpop.f32.mrf.mxu0
        %v4143 = vadd.f32 0.0, %v4142
        %4144 = vmatmul.bf16.gmra.mxu0 %v4052
        %v4145 = vpop.f32.mrf.mxu0
        %v4146 = vadd.f32 0.0, %v4145
        %v4147 = vpop.f32.mrf.mxu0
        %v4148 = vadd.f32 0.0, %v4147
        %4149 = vmatmul.bf16.gmra.mxu0 %v4053
        %v4150 = vpop.f32.mrf.mxu0
        %v4151 = vadd.f32 0.0, %v4150
        %v4152 = vpop.f32.mrf.mxu0
        %v4153 = vadd.f32 0.0, %v4152
        %4154 = vmatmul.bf16.gmra.mxu0 %v4054
        %v4155 = vpop.f32.mrf.mxu0
        %v4156 = vadd.f32 0.0, %v4155
        %v4157 = vpop.f32.mrf.mxu0
        %v4158 = vadd.f32 0.0, %v4157
        %4159 = vdwg.mxu0
        %v4176 = vunpack.c.l.b16 %v3782
        %v4177 = vunpack.c.l.b16 %v3783
        %v4178 = vunpack.c.l.b16 %v3784
        %v4179 = vunpack.c.l.b16 %v3785
        %v4180 = vunpack.c.l.b16 %v3786
        %v4181 = vunpack.c.l.b16 %v3787
        %v4182 = vunpack.c.l.b16 %v3788
        %v4183 = vunpack.c.l.b16 %v3789
        %v4184 = vunpack.c.l.b16 %v3790
        %v4185 = vunpack.c.l.b16 %v3791
        %v4186 = vunpack.c.l.b16 %v3792
        %v4187 = vunpack.c.l.b16 %v3793
        %v4188 = vunpack.c.l.b16 %v3794
        %v4189 = vunpack.c.l.b16 %v3795
        %v4190 = vunpack.c.l.b16 %v3796
        %v4191 = vunpack.c.l.b16 %v3797
        %v4192 = vpack.c.b16 %v4177, %v4176
        %v4193 = vpack.c.b16 %v4179, %v4178
        %v4194 = vpack.c.b16 %v4181, %v4180
        %v4195 = vpack.c.b16 %v4183, %v4182
        %v4196 = vpack.c.b16 %v4185, %v4184
        %v4197 = vpack.c.b16 %v4187, %v4186
        %v4198 = vpack.c.b16 %v4189, %v4188
        %v4199 = vpack.c.b16 %v4191, %v4190
        %v4224 = vunpack.c.l.b16 %v3798
        %v4225 = vunpack.c.l.b16 %v3799
        %v4226 = vunpack.c.l.b16 %v3800
        %v4227 = vunpack.c.l.b16 %v3801
        %v4228 = vunpack.c.l.b16 %v3802
        %v4229 = vunpack.c.l.b16 %v3803
        %v4230 = vunpack.c.l.b16 %v3804
        %v4231 = vunpack.c.l.b16 %v3805
        %v4232 = vunpack.c.l.b16 %v3806
        %v4233 = vunpack.c.l.b16 %v3807
        %v4234 = vunpack.c.l.b16 %v3808
        %v4235 = vunpack.c.l.b16 %v3809
        %v4236 = vunpack.c.l.b16 %v3810
        %v4237 = vunpack.c.l.b16 %v3811
        %v4238 = vunpack.c.l.b16 %v3812
        %v4239 = vunpack.c.l.b16 %v3813
        %v4240 = vpack.c.b16 %v4225, %v4224
        %v4241 = vpack.c.b16 %v4227, %v4226
        %v4242 = vpack.c.b16 %v4229, %v4228
        %v4243 = vpack.c.b16 %v4231, %v4230
        %v4244 = vpack.c.b16 %v4233, %v4232
        %v4245 = vpack.c.b16 %v4235, %v4234
        %v4246 = vpack.c.b16 %v4237, %v4236
        %v4247 = vpack.c.b16 %v4239, %v4238
        %4256 = vmatpush.bf16.msra.mxu0 %v4247
        %4257 = vmatpush.bf16.msra.mxu0 %v4246
        %4258 = vmatpush.bf16.msra.mxu0 %v4245
        %4259 = vmatpush.bf16.msra.mxu0 %v4244
        %4260 = vmatpush.bf16.msra.mxu0 %v4243
        %4261 = vmatpush.bf16.msra.mxu0 %v4242
        %4262 = vmatpush.bf16.msra.mxu0 %v4241
        %4263 = vmatpush.bf16.msra.mxu0 %v4240
        %4264 = vmatmul.bf16.gmra.mxu0 %v4192
        %v4265 = vpop.f32.mrf.mxu0
        %v4266 = vadd.f32 %v4121, %v4265
        %v4267 = vpop.f32.mrf.mxu0
        %v4268 = vadd.f32 %v4123, %v4267
        %4269 = vmatmul.bf16.gmra.mxu0 %v4193
        %v4270 = vpop.f32.mrf.mxu0
        %v4271 = vadd.f32 %v4126, %v4270
        %v4272 = vpop.f32.mrf.mxu0
        %v4273 = vadd.f32 %v4128, %v4272
        %4274 = vmatmul.bf16.gmra.mxu0 %v4194
        %v4275 = vpop.f32.mrf.mxu0
        %v4276 = vadd.f32 %v4131, %v4275
        %v4277 = vpop.f32.mrf.mxu0
        %v4278 = vadd.f32 %v4133, %v4277
        %4279 = vmatmul.bf16.gmra.mxu0 %v4195
        %v4280 = vpop.f32.mrf.mxu0
        %v4281 = vadd.f32 %v4136, %v4280
        %v4282 = vpop.f32.mrf.mxu0
        %v4283 = vadd.f32 %v4138, %v4282
        %4284 = vmatmul.bf16.gmra.mxu0 %v4196
        %v4285 = vpop.f32.mrf.mxu0
        %v4286 = vadd.f32 %v4141, %v4285
        %v4287 = vpop.f32.mrf.mxu0
        %v4288 = vadd.f32 %v4143, %v4287
        %4289 = vmatmul.bf16.gmra.mxu0 %v4197
        %v4290 = vpop.f32.mrf.mxu0
        %v4291 = vadd.f32 %v4146, %v4290
        %v4292 = vpop.f32.mrf.mxu0
        %v4293 = vadd.f32 %v4148, %v4292
        %4294 = vmatmul.bf16.gmra.mxu0 %v4198
        %v4295 = vpop.f32.mrf.mxu0
        %v4296 = vadd.f32 %v4151, %v4295
        %v4297 = vpop.f32.mrf.mxu0
        %v4298 = vadd.f32 %v4153, %v4297
        %4299 = vmatmul.bf16.gmra.mxu0 %v4199
        %v4300 = vpop.f32.mrf.mxu0
        %v4301 = vadd.f32 %v4156, %v4300
        %v4302 = vpop.f32.mrf.mxu0
        %v4303 = vadd.f32 %v4158, %v4302
        %4304 = vdwg.mxu0
        %v4305 = vld [vmem:[#allocation3] sm:$0xe]
        %v4306 = vld [vmem:[#allocation3 + $0xc] sm:$0xe]
        %v4307 = vld [vmem:[#allocation3 + $0x18] sm:$0xe]
        %v4308 = vld [vmem:[#allocation3 + $0x24] sm:$0xe]
        %v4309 = vld [vmem:[#allocation3 + $0x30] sm:$0xe]
        %v4310 = vld [vmem:[#allocation3 + $0x3c] sm:$0xe]
        %v4311 = vld [vmem:[#allocation3 + $0x48] sm:$0xe]
        %v4312 = vld [vmem:[#allocation3 + $0x54] sm:$0xe]
        %v4329 = vrot.slane %v4305, 5
        %v4330 = vrot.slane %v4329, 4
        %v4331 = vrot.slane %v3783, 5
        %v4332 = vsel %vm1163, %v4330, %v4331
        %v4333 = vrot.slane %v4331, 4
        %v4334 = vrot.slane %v3814, 5
        %v4335 = vsel %vm1163, %v4333, %v4334
        %v4336 = vrot.slane %v4306, 5
        %v4337 = vrot.slane %v4336, 4
        %v4338 = vrot.slane %v3785, 5
        %v4339 = vsel %vm1163, %v4337, %v4338
        %v4340 = vrot.slane %v4338, 4
        %v4341 = vrot.slane %v3815, 5
        %v4342 = vsel %vm1163, %v4340, %v4341
        %v4343 = vrot.slane %v4307, 5
        %v4344 = vrot.slane %v4343, 4
        %v4345 = vrot.slane %v3787, 5
        %v4346 = vsel %vm1163, %v4344, %v4345
        %v4347 = vrot.slane %v4345, 4
        %v4348 = vrot.slane %v3816, 5
        %v4349 = vsel %vm1163, %v4347, %v4348
        %v4350 = vrot.slane %v4308, 5
        %v4351 = vrot.slane %v4350, 4
        %v4352 = vrot.slane %v3789, 5
        %v4353 = vsel %vm1163, %v4351, %v4352
        %v4354 = vrot.slane %v4352, 4
        %v4355 = vrot.slane %v3817, 5
        %v4356 = vsel %vm1163, %v4354, %v4355
        %v4357 = vrot.slane %v4309, 5
        %v4358 = vrot.slane %v4357, 4
        %v4359 = vrot.slane %v3791, 5
        %v4360 = vsel %vm1163, %v4358, %v4359
        %v4361 = vrot.slane %v4359, 4
        %v4362 = vrot.slane %v3818, 5
        %v4363 = vsel %vm1163, %v4361, %v4362
        %v4364 = vrot.slane %v4310, 5
        %v4365 = vrot.slane %v4364, 4
        %v4366 = vrot.slane %v3793, 5
        %v4367 = vsel %vm1163, %v4365, %v4366
        %v4368 = vrot.slane %v4366, 4
        %v4369 = vrot.slane %v3819, 5
        %v4370 = vsel %vm1163, %v4368, %v4369
        %v4371 = vrot.slane %v4311, 5
        %v4372 = vrot.slane %v4371, 4
        %v4373 = vrot.slane %v3795, 5
        %v4374 = vsel %vm1163, %v4372, %v4373
        %v4375 = vrot.slane %v4373, 4
        %v4376 = vrot.slane %v3820, 5
        %v4377 = vsel %vm1163, %v4375, %v4376
        %v4378 = vrot.slane %v4312, 5
        %v4379 = vrot.slane %v4378, 4
        %v4380 = vrot.slane %v3797, 5
        %v4381 = vsel %vm1163, %v4379, %v4380
        %v4382 = vrot.slane %v4380, 4
        %v4383 = vrot.slane %v3821, 5
        %v4384 = vsel %vm1163, %v4382, %v4383
        %s4385 = scalar_lea.vmem %s4, 128
        %v4386 = vld [vmem:[%s4385] sm:$0xf]
        %v4387 = vld [vmem:[%s4385 + $0x4] sm:$0xf]
        %v4388 = vld [vmem:[%s4385 + $0x8] sm:$0xf]
        %v4389 = vld [vmem:[%s4385 + $0xc] sm:$0xf]
        %v4390 = vld [vmem:[%s4385 + $0x10] sm:$0xf]
        %v4391 = vld [vmem:[%s4385 + $0x14] sm:$0xf]
        %v4392 = vld [vmem:[%s4385 + $0x18] sm:$0xf]
        %v4393 = vld [vmem:[%s4385 + $0x1c] sm:$0xf]
        %v4394 = vld [vmem:[%s4385 + $0x20] sm:$0xf]
        %v4395 = vld [vmem:[%s4385 + $0x24] sm:$0xf]
        %v4396 = vld [vmem:[%s4385 + $0x28] sm:$0xf]
        %v4397 = vld [vmem:[%s4385 + $0x2c] sm:$0xf]
        %v4398 = vld [vmem:[%s4385 + $0x30] sm:$0xf]
        %v4399 = vld [vmem:[%s4385 + $0x34] sm:$0xf]
        %v4400 = vld [vmem:[%s4385 + $0x38] sm:$0xf]
        %v4401 = vld [vmem:[%s4385 + $0x3c] sm:$0xf]
        %v4402 = vunpack.c.l.b16 %v4332
        %v4403 = vunpack.c.l.b16 %v4335
        %v4404 = vunpack.c.l.b16 %v4339
        %v4405 = vunpack.c.l.b16 %v4342
        %v4406 = vunpack.c.l.b16 %v4346
        %v4407 = vunpack.c.l.b16 %v4349
        %v4408 = vunpack.c.l.b16 %v4353
        %v4409 = vunpack.c.l.b16 %v4356
        %v4410 = vunpack.c.l.b16 %v4360
        %v4411 = vunpack.c.l.b16 %v4363
        %v4412 = vunpack.c.l.b16 %v4367
        %v4413 = vunpack.c.l.b16 %v4370
        %v4414 = vunpack.c.l.b16 %v4374
        %v4415 = vunpack.c.l.b16 %v4377
        %v4416 = vunpack.c.l.b16 %v4381
        %v4417 = vunpack.c.l.b16 %v4384
        %v4418 = vpack.c.b16 %v4403, %v4402
        %v4419 = vpack.c.b16 %v4405, %v4404
        %v4420 = vpack.c.b16 %v4407, %v4406
        %v4421 = vpack.c.b16 %v4409, %v4408
        %v4422 = vpack.c.b16 %v4411, %v4410
        %v4423 = vpack.c.b16 %v4413, %v4412
        %v4424 = vpack.c.b16 %v4415, %v4414
        %v4425 = vpack.c.b16 %v4417, %v4416
        %v4450 = vunpack.c.l.b16 %v4386
        %v4451 = vunpack.c.l.b16 %v4387
        %v4452 = vunpack.c.l.b16 %v4388
        %v4453 = vunpack.c.l.b16 %v4389
        %v4454 = vunpack.c.l.b16 %v4390
        %v4455 = vunpack.c.l.b16 %v4391
        %v4456 = vunpack.c.l.b16 %v4392
        %v4457 = vunpack.c.l.b16 %v4393
        %v4458 = vunpack.c.l.b16 %v4394
        %v4459 = vunpack.c.l.b16 %v4395
        %v4460 = vunpack.c.l.b16 %v4396
        %v4461 = vunpack.c.l.b16 %v4397
        %v4462 = vunpack.c.l.b16 %v4398
        %v4463 = vunpack.c.l.b16 %v4399
        %v4464 = vunpack.c.l.b16 %v4400
        %v4465 = vunpack.c.l.b16 %v4401
        %v4466 = vpack.c.b16 %v4451, %v4450
        %v4467 = vpack.c.b16 %v4453, %v4452
        %v4468 = vpack.c.b16 %v4455, %v4454
        %v4469 = vpack.c.b16 %v4457, %v4456
        %v4470 = vpack.c.b16 %v4459, %v4458
        %v4471 = vpack.c.b16 %v4461, %v4460
        %v4472 = vpack.c.b16 %v4463, %v4462
        %v4473 = vpack.c.b16 %v4465, %v4464
        %4482 = vmatpush.bf16.msra.mxu0 %v4473
        %4483 = vmatpush.bf16.msra.mxu0 %v4472
        %4484 = vmatpush.bf16.msra.mxu0 %v4471
        %4485 = vmatpush.bf16.msra.mxu0 %v4470
        %4486 = vmatpush.bf16.msra.mxu0 %v4469
        %4487 = vmatpush.bf16.msra.mxu0 %v4468
        %4488 = vmatpush.bf16.msra.mxu0 %v4467
        %4489 = vmatpush.bf16.msra.mxu0 %v4466
        %4490 = vmatmul.bf16.gmra.mxu0 %v4418
        %v4491 = vpop.f32.mrf.mxu0
        %v4492 = vadd.f32 0.0, %v4491
        %v4493 = vpop.f32.mrf.mxu0
        %v4494 = vadd.f32 0.0, %v4493
        %4495 = vmatmul.bf16.gmra.mxu0 %v4419
        %v4496 = vpop.f32.mrf.mxu0
        %v4497 = vadd.f32 0.0, %v4496
        %v4498 = vpop.f32.mrf.mxu0
        %v4499 = vadd.f32 0.0, %v4498
        %4500 = vmatmul.bf16.gmra.mxu0 %v4420
        %v4501 = vpop.f32.mrf.mxu0
        %v4502 = vadd.f32 0.0, %v4501
        %v4503 = vpop.f32.mrf.mxu0
        %v4504 = vadd.f32 0.0, %v4503
        %4505 = vmatmul.bf16.gmra.mxu0 %v4421
        %v4506 = vpop.f32.mrf.mxu0
        %v4507 = vadd.f32 0.0, %v4506
        %v4508 = vpop.f32.mrf.mxu0
        %v4509 = vadd.f32 0.0, %v4508
        %4510 = vmatmul.bf16.gmra.mxu0 %v4422
        %v4511 = vpop.f32.mrf.mxu0
        %v4512 = vadd.f32 0.0, %v4511
        %v4513 = vpop.f32.mrf.mxu0
        %v4514 = vadd.f32 0.0, %v4513
        %4515 = vmatmul.bf16.gmra.mxu0 %v4423
        %v4516 = vpop.f32.mrf.mxu0
        %v4517 = vadd.f32 0.0, %v4516
        %v4518 = vpop.f32.mrf.mxu0
        %v4519 = vadd.f32 0.0, %v4518
        %4520 = vmatmul.bf16.gmra.mxu0 %v4424
        %v4521 = vpop.f32.mrf.mxu0
        %v4522 = vadd.f32 0.0, %v4521
        %v4523 = vpop.f32.mrf.mxu0
        %v4524 = vadd.f32 0.0, %v4523
        %4525 = vmatmul.bf16.gmra.mxu0 %v4425
        %v4526 = vpop.f32.mrf.mxu0
        %v4527 = vadd.f32 0.0, %v4526
        %v4528 = vpop.f32.mrf.mxu0
        %v4529 = vadd.f32 0.0, %v4528
        %4530 = vdwg.mxu0
        %v4531 = vadd.f32 %v4266, %v4492
        %v4532 = vadd.f32 %v4268, %v4494
        %v4533 = vadd.f32 %v4271, %v4497
        %v4534 = vadd.f32 %v4273, %v4499
        %v4535 = vadd.f32 %v4276, %v4502
        %v4536 = vadd.f32 %v4278, %v4504
        %v4537 = vadd.f32 %v4281, %v4507
        %v4538 = vadd.f32 %v4283, %v4509
        %v4539 = vadd.f32 %v4286, %v4512
        %v4540 = vadd.f32 %v4288, %v4514
        %v4541 = vadd.f32 %v4291, %v4517
        %v4542 = vadd.f32 %v4293, %v4519
        %v4543 = vadd.f32 %v4296, %v4522
        %v4544 = vadd.f32 %v4298, %v4524
        %v4545 = vadd.f32 %v4301, %v4527
        %v4546 = vadd.f32 %v4303, %v4529
        %s4547 = scalar_lea.vmem [#allocation3], 12
        %v4548 = vld [vmem:[%s4547] sm:$0xf]
        %v4549 = vld [vmem:[%s4547 + $0x4] sm:$0xf]
        %v4550 = vld [vmem:[%s4547 + $0xc] sm:$0xf]
        %v4551 = vld [vmem:[%s4547 + $0x10] sm:$0xf]
        %v4552 = vld [vmem:[%s4547 + $0x18] sm:$0xf]
        %v4553 = vld [vmem:[%s4547 + $0x1c] sm:$0xf]
        %v4554 = vld [vmem:[%s4547 + $0x24] sm:$0xf]
        %v4555 = vld [vmem:[%s4547 + $0x28] sm:$0xf]
        %v4556 = vld [vmem:[%s4547 + $0x30] sm:$0xf]
        %v4557 = vld [vmem:[%s4547 + $0x34] sm:$0xf]
        %v4558 = vld [vmem:[%s4547 + $0x3c] sm:$0xf]
        %v4559 = vld [vmem:[%s4547 + $0x40] sm:$0xf]
        %v4560 = vld [vmem:[%s4547 + $0x48] sm:$0xf]
        %v4561 = vld [vmem:[%s4547 + $0x4c] sm:$0xf]
        %v4562 = vld [vmem:[%s4547 + $0x54] sm:$0xf]
        %v4563 = vld [vmem:[%s4547 + $0x58] sm:$0xf]
        %s4564 = scalar_lea.vmem %s4, 192
        %v4565 = vld [vmem:[%s4564] sm:$0xf]
        %v4566 = vld [vmem:[%s4564 + $0x4] sm:$0xf]
        %v4567 = vld [vmem:[%s4564 + $0x8] sm:$0xf]
        %v4568 = vld [vmem:[%s4564 + $0xc] sm:$0xf]
        %v4569 = vld [vmem:[%s4564 + $0x10] sm:$0xf]
        %v4570 = vld [vmem:[%s4564 + $0x14] sm:$0xf]
        %v4571 = vld [vmem:[%s4564 + $0x18] sm:$0xf]
        %v4572 = vld [vmem:[%s4564 + $0x1c] sm:$0xf]
        %v4573 = vld [vmem:[%s4564 + $0x20] sm:$0xf]
        %v4574 = vld [vmem:[%s4564 + $0x24] sm:$0xf]
        %v4575 = vld [vmem:[%s4564 + $0x28] sm:$0xf]
        %v4576 = vld [vmem:[%s4564 + $0x2c] sm:$0xf]
        %v4577 = vld [vmem:[%s4564 + $0x30] sm:$0xf]
        %v4578 = vld [vmem:[%s4564 + $0x34] sm:$0xf]
        %v4579 = vld [vmem:[%s4564 + $0x38] sm:$0xf]
        %v4580 = vld [vmem:[%s4564 + $0x3c] sm:$0xf]
        %v4597 = vunpack.c.l.b16 %v4548
        %v4598 = vunpack.c.l.b16 %v4549
        %v4599 = vunpack.c.l.b16 %v4550
        %v4600 = vunpack.c.l.b16 %v4551
        %v4601 = vunpack.c.l.b16 %v4552
        %v4602 = vunpack.c.l.b16 %v4553
        %v4603 = vunpack.c.l.b16 %v4554
        %v4604 = vunpack.c.l.b16 %v4555
        %v4605 = vunpack.c.l.b16 %v4556
        %v4606 = vunpack.c.l.b16 %v4557
        %v4607 = vunpack.c.l.b16 %v4558
        %v4608 = vunpack.c.l.b16 %v4559
        %v4609 = vunpack.c.l.b16 %v4560
        %v4610 = vunpack.c.l.b16 %v4561
        %v4611 = vunpack.c.l.b16 %v4562
        %v4612 = vunpack.c.l.b16 %v4563
        %v4613 = vpack.c.b16 %v4598, %v4597
        %v4614 = vpack.c.b16 %v4600, %v4599
        %v4615 = vpack.c.b16 %v4602, %v4601
        %v4616 = vpack.c.b16 %v4604, %v4603
        %v4617 = vpack.c.b16 %v4606, %v4605
        %v4618 = vpack.c.b16 %v4608, %v4607
        %v4619 = vpack.c.b16 %v4610, %v4609
        %v4620 = vpack.c.b16 %v4612, %v4611
        %v4645 = vunpack.c.l.b16 %v4565
        %v4646 = vunpack.c.l.b16 %v4566
        %v4647 = vunpack.c.l.b16 %v4567
        %v4648 = vunpack.c.l.b16 %v4568
        %v4649 = vunpack.c.l.b16 %v4569
        %v4650 = vunpack.c.l.b16 %v4570
        %v4651 = vunpack.c.l.b16 %v4571
        %v4652 = vunpack.c.l.b16 %v4572
        %v4653 = vunpack.c.l.b16 %v4573
        %v4654 = vunpack.c.l.b16 %v4574
        %v4655 = vunpack.c.l.b16 %v4575
        %v4656 = vunpack.c.l.b16 %v4576
        %v4657 = vunpack.c.l.b16 %v4577
        %v4658 = vunpack.c.l.b16 %v4578
        %v4659 = vunpack.c.l.b16 %v4579
        %v4660 = vunpack.c.l.b16 %v4580
        %v4661 = vpack.c.b16 %v4646, %v4645
        %v4662 = vpack.c.b16 %v4648, %v4647
        %v4663 = vpack.c.b16 %v4650, %v4649
        %v4664 = vpack.c.b16 %v4652, %v4651
        %v4665 = vpack.c.b16 %v4654, %v4653
        %v4666 = vpack.c.b16 %v4656, %v4655
        %v4667 = vpack.c.b16 %v4658, %v4657
        %v4668 = vpack.c.b16 %v4660, %v4659
        %4677 = vmatpush.bf16.msra.mxu0 %v4668
        %4678 = vmatpush.bf16.msra.mxu0 %v4667
        %4679 = vmatpush.bf16.msra.mxu0 %v4666
        %4680 = vmatpush.bf16.msra.mxu0 %v4665
        %4681 = vmatpush.bf16.msra.mxu0 %v4664
        %4682 = vmatpush.bf16.msra.mxu0 %v4663
        %4683 = vmatpush.bf16.msra.mxu0 %v4662
        %4684 = vmatpush.bf16.msra.mxu0 %v4661
        %4685 = vmatmul.bf16.gmra.mxu0 %v4613
        %v4686 = vpop.f32.mrf.mxu0
        %v4687 = vadd.f32 0.0, %v4686
        %v4688 = vpop.f32.mrf.mxu0
        %v4689 = vadd.f32 0.0, %v4688
        %4690 = vmatmul.bf16.gmra.mxu0 %v4614
        %v4691 = vpop.f32.mrf.mxu0
        %v4692 = vadd.f32 0.0, %v4691
        %v4693 = vpop.f32.mrf.mxu0
        %v4694 = vadd.f32 0.0, %v4693
        %4695 = vmatmul.bf16.gmra.mxu0 %v4615
        %v4696 = vpop.f32.mrf.mxu0
        %v4697 = vadd.f32 0.0, %v4696
        %v4698 = vpop.f32.mrf.mxu0
        %v4699 = vadd.f32 0.0, %v4698
        %4700 = vmatmul.bf16.gmra.mxu0 %v4616
        %v4701 = vpop.f32.mrf.mxu0
        %v4702 = vadd.f32 0.0, %v4701
        %v4703 = vpop.f32.mrf.mxu0
        %v4704 = vadd.f32 0.0, %v4703
        %4705 = vmatmul.bf16.gmra.mxu0 %v4617
        %v4706 = vpop.f32.mrf.mxu0
        %v4707 = vadd.f32 0.0, %v4706
        %v4708 = vpop.f32.mrf.mxu0
        %v4709 = vadd.f32 0.0, %v4708
        %4710 = vmatmul.bf16.gmra.mxu0 %v4618
        %v4711 = vpop.f32.mrf.mxu0
        %v4712 = vadd.f32 0.0, %v4711
        %v4713 = vpop.f32.mrf.mxu0
        %v4714 = vadd.f32 0.0, %v4713
        %4715 = vmatmul.bf16.gmra.mxu0 %v4619
        %v4716 = vpop.f32.mrf.mxu0
        %v4717 = vadd.f32 0.0, %v4716
        %v4718 = vpop.f32.mrf.mxu0
        %v4719 = vadd.f32 0.0, %v4718
        %4720 = vmatmul.bf16.gmra.mxu0 %v4620
        %v4721 = vpop.f32.mrf.mxu0
        %v4722 = vadd.f32 0.0, %v4721
        %v4723 = vpop.f32.mrf.mxu0
        %v4724 = vadd.f32 0.0, %v4723
        %4725 = vdwg.mxu0
        %v4726 = vadd.f32 %v4531, %v4687
        %v4727 = vadd.f32 %v4532, %v4689
        %v4728 = vadd.f32 %v4533, %v4692
        %v4729 = vadd.f32 %v4534, %v4694
        %v4730 = vadd.f32 %v4535, %v4697
        %v4731 = vadd.f32 %v4536, %v4699
        %v4732 = vadd.f32 %v4537, %v4702
        %v4733 = vadd.f32 %v4538, %v4704
        %v4734 = vadd.f32 %v4539, %v4707
        %v4735 = vadd.f32 %v4540, %v4709
        %v4736 = vadd.f32 %v4541, %v4712
        %v4737 = vadd.f32 %v4542, %v4714
        %v4738 = vadd.f32 %v4543, %v4717
        %v4739 = vadd.f32 %v4544, %v4719
        %v4740 = vadd.f32 %v4545, %v4722
        %v4741 = vadd.f32 %v4546, %v4724
        %v4742 = vld [vmem:[%s4547] sm:$0xf]
        %v4743 = vld [vmem:[%s4547 + $0x4] sm:$0xf]
        %v4744 = vld [vmem:[%s4547 + $0x8] sm:$0x1]
        %v4745 = vld [vmem:[%s4547 + $0xc] sm:$0xf]
        %v4746 = vld [vmem:[%s4547 + $0x10] sm:$0xf]
        %v4747 = vld [vmem:[%s4547 + $0x14] sm:$0x1]
        %v4748 = vld [vmem:[%s4547 + $0x18] sm:$0xf]
        %v4749 = vld [vmem:[%s4547 + $0x1c] sm:$0xf]
        %v4750 = vld [vmem:[%s4547 + $0x20] sm:$0x1]
        %v4751 = vld [vmem:[%s4547 + $0x24] sm:$0xf]
        %v4752 = vld [vmem:[%s4547 + $0x28] sm:$0xf]
        %v4753 = vld [vmem:[%s4547 + $0x2c] sm:$0x1]
        %v4754 = vld [vmem:[%s4547 + $0x30] sm:$0xf]
        %v4755 = vld [vmem:[%s4547 + $0x34] sm:$0xf]
        %v4756 = vld [vmem:[%s4547 + $0x38] sm:$0x1]
        %v4757 = vld [vmem:[%s4547 + $0x3c] sm:$0xf]
        %v4758 = vld [vmem:[%s4547 + $0x40] sm:$0xf]
        %v4759 = vld [vmem:[%s4547 + $0x44] sm:$0x1]
        %v4760 = vld [vmem:[%s4547 + $0x48] sm:$0xf]
        %v4761 = vld [vmem:[%s4547 + $0x4c] sm:$0xf]
        %v4762 = vld [vmem:[%s4547 + $0x50] sm:$0x1]
        %v4763 = vld [vmem:[%s4547 + $0x54] sm:$0xf]
        %v4764 = vld [vmem:[%s4547 + $0x58] sm:$0xf]
        %v4765 = vld [vmem:[%s4547 + $0x5c] sm:$0x1]
        %v4767 = vshrl.u32 %v4742, 16
        %v4769 = vrot.slane %v4767, 4
        %v4770 = vshll.u32 %v4742, 16
        %v4772 = vrot.slane %v4770, 5
        %v4773 = vor.u32 %v4769, %v4772
        %v4774 = vrot.slane %v4773, 4
        %v4776 = vshll.u32 %v4743, 16
        %v4778 = vrot.slane %v4776, 5
        %v4779 = vsel %vm559, %v4774, %v4778
        %v4780 = vshrl.u32 %v4743, 16
        %v4782 = vrot.slane %v4780, 4
        %v4783 = vor.u32 %v4782, %v4778
        %v4784 = vrot.slane %v4783, 4
        %v4786 = vshll.u32 %v4744, 16
        %v4788 = vrot.slane %v4786, 5
        %v4789 = vsel %vm559, %v4784, %v4788
        %v4791 = vshrl.u32 %v4745, 16
        %v4793 = vrot.slane %v4791, 4
        %v4794 = vshll.u32 %v4745, 16
        %v4796 = vrot.slane %v4794, 5
        %v4797 = vor.u32 %v4793, %v4796
        %v4798 = vrot.slane %v4797, 4
        %v4800 = vshll.u32 %v4746, 16
        %v4802 = vrot.slane %v4800, 5
        %v4803 = vsel %vm559, %v4798, %v4802
        %v4804 = vshrl.u32 %v4746, 16
        %v4806 = vrot.slane %v4804, 4
        %v4807 = vor.u32 %v4806, %v4802
        %v4808 = vrot.slane %v4807, 4
        %v4810 = vshll.u32 %v4747, 16
        %v4812 = vrot.slane %v4810, 5
        %v4813 = vsel %vm559, %v4808, %v4812
        %v4815 = vshrl.u32 %v4748, 16
        %v4817 = vrot.slane %v4815, 4
        %v4818 = vshll.u32 %v4748, 16
        %v4820 = vrot.slane %v4818, 5
        %v4821 = vor.u32 %v4817, %v4820
        %v4822 = vrot.slane %v4821, 4
        %v4824 = vshll.u32 %v4749, 16
        %v4826 = vrot.slane %v4824, 5
        %v4827 = vsel %vm559, %v4822, %v4826
        %v4828 = vshrl.u32 %v4749, 16
        %v4830 = vrot.slane %v4828, 4
        %v4831 = vor.u32 %v4830, %v4826
        %v4832 = vrot.slane %v4831, 4
        %v4834 = vshll.u32 %v4750, 16
        %v4836 = vrot.slane %v4834, 5
        %v4837 = vsel %vm559, %v4832, %v4836
        %v4839 = vshrl.u32 %v4751, 16
        %v4841 = vrot.slane %v4839, 4
        %v4842 = vshll.u32 %v4751, 16
        %v4844 = vrot.slane %v4842, 5
        %v4845 = vor.u32 %v4841, %v4844
        %v4846 = vrot.slane %v4845, 4
        %v4848 = vshll.u32 %v4752, 16
        %v4850 = vrot.slane %v4848, 5
        %v4851 = vsel %vm559, %v4846, %v4850
        %v4852 = vshrl.u32 %v4752, 16
        %v4854 = vrot.slane %v4852, 4
        %v4855 = vor.u32 %v4854, %v4850
        %v4856 = vrot.slane %v4855, 4
        %v4858 = vshll.u32 %v4753, 16
        %v4860 = vrot.slane %v4858, 5
        %v4861 = vsel %vm559, %v4856, %v4860
        %v4863 = vshrl.u32 %v4754, 16
        %v4865 = vrot.slane %v4863, 4
        %v4866 = vshll.u32 %v4754, 16
        %v4868 = vrot.slane %v4866, 5
        %v4869 = vor.u32 %v4865, %v4868
        %v4870 = vrot.slane %v4869, 4
        %v4872 = vshll.u32 %v4755, 16
        %v4874 = vrot.slane %v4872, 5
        %v4875 = vsel %vm559, %v4870, %v4874
        %v4876 = vshrl.u32 %v4755, 16
        %v4878 = vrot.slane %v4876, 4
        %v4879 = vor.u32 %v4878, %v4874
        %v4880 = vrot.slane %v4879, 4
        %v4882 = vshll.u32 %v4756, 16
        %v4884 = vrot.slane %v4882, 5
        %v4885 = vsel %vm559, %v4880, %v4884
        %v4887 = vshrl.u32 %v4757, 16
        %v4889 = vrot.slane %v4887, 4
        %v4890 = vshll.u32 %v4757, 16
        %v4892 = vrot.slane %v4890, 5
        %v4893 = vor.u32 %v4889, %v4892
        %v4894 = vrot.slane %v4893, 4
        %v4896 = vshll.u32 %v4758, 16
        %v4898 = vrot.slane %v4896, 5
        %v4899 = vsel %vm559, %v4894, %v4898
        %v4900 = vshrl.u32 %v4758, 16
        %v4902 = vrot.slane %v4900, 4
        %v4903 = vor.u32 %v4902, %v4898
        %v4904 = vrot.slane %v4903, 4
        %v4906 = vshll.u32 %v4759, 16
        %v4908 = vrot.slane %v4906, 5
        %v4909 = vsel %vm559, %v4904, %v4908
        %v4911 = vshrl.u32 %v4760, 16
        %v4913 = vrot.slane %v4911, 4
        %v4914 = vshll.u32 %v4760, 16
        %v4916 = vrot.slane %v4914, 5
        %v4917 = vor.u32 %v4913, %v4916
        %v4918 = vrot.slane %v4917, 4
        %v4920 = vshll.u32 %v4761, 16
        %v4922 = vrot.slane %v4920, 5
        %v4923 = vsel %vm559, %v4918, %v4922
        %v4924 = vshrl.u32 %v4761, 16
        %v4926 = vrot.slane %v4924, 4
        %v4927 = vor.u32 %v4926, %v4922
        %v4928 = vrot.slane %v4927, 4
        %v4930 = vshll.u32 %v4762, 16
        %v4932 = vrot.slane %v4930, 5
        %v4933 = vsel %vm559, %v4928, %v4932
        %v4935 = vshrl.u32 %v4763, 16
        %v4937 = vrot.slane %v4935, 4
        %v4938 = vshll.u32 %v4763, 16
        %v4940 = vrot.slane %v4938, 5
        %v4941 = vor.u32 %v4937, %v4940
        %v4942 = vrot.slane %v4941, 4
        %v4944 = vshll.u32 %v4764, 16
        %v4946 = vrot.slane %v4944, 5
        %v4947 = vsel %vm559, %v4942, %v4946
        %v4948 = vshrl.u32 %v4764, 16
        %v4950 = vrot.slane %v4948, 4
        %v4951 = vor.u32 %v4950, %v4946
        %v4952 = vrot.slane %v4951, 4
        %v4954 = vshll.u32 %v4765, 16
        %v4956 = vrot.slane %v4954, 5
        %v4957 = vsel %vm559, %v4952, %v4956
        %s4958 = scalar_lea.vmem %s4, 256
        %v4959 = vld [vmem:[%s4958] sm:$0xf]
        %v4960 = vld [vmem:[%s4958 + $0x4] sm:$0xf]
        %v4961 = vld [vmem:[%s4958 + $0x8] sm:$0xf]
        %v4962 = vld [vmem:[%s4958 + $0xc] sm:$0xf]
        %v4963 = vld [vmem:[%s4958 + $0x10] sm:$0xf]
        %v4964 = vld [vmem:[%s4958 + $0x14] sm:$0xf]
        %v4965 = vld [vmem:[%s4958 + $0x18] sm:$0xf]
        %v4966 = vld [vmem:[%s4958 + $0x1c] sm:$0xf]
        %v4967 = vld [vmem:[%s4958 + $0x20] sm:$0xf]
        %v4968 = vld [vmem:[%s4958 + $0x24] sm:$0xf]
        %v4969 = vld [vmem:[%s4958 + $0x28] sm:$0xf]
        %v4970 = vld [vmem:[%s4958 + $0x2c] sm:$0xf]
        %v4971 = vld [vmem:[%s4958 + $0x30] sm:$0xf]
        %v4972 = vld [vmem:[%s4958 + $0x34] sm:$0xf]
        %v4973 = vld [vmem:[%s4958 + $0x38] sm:$0xf]
        %v4974 = vld [vmem:[%s4958 + $0x3c] sm:$0xf]
        %v4975 = vunpack.c.l.b16 %v4779
        %v4976 = vunpack.c.l.b16 %v4789
        %v4977 = vunpack.c.l.b16 %v4803
        %v4978 = vunpack.c.l.b16 %v4813
        %v4979 = vunpack.c.l.b16 %v4827
        %v4980 = vunpack.c.l.b16 %v4837
        %v4981 = vunpack.c.l.b16 %v4851
        %v4982 = vunpack.c.l.b16 %v4861
        %v4983 = vunpack.c.l.b16 %v4875
        %v4984 = vunpack.c.l.b16 %v4885
        %v4985 = vunpack.c.l.b16 %v4899
        %v4986 = vunpack.c.l.b16 %v4909
        %v4987 = vunpack.c.l.b16 %v4923
        %v4988 = vunpack.c.l.b16 %v4933
        %v4989 = vunpack.c.l.b16 %v4947
        %v4990 = vunpack.c.l.b16 %v4957
        %v4991 = vpack.c.b16 %v4976, %v4975
        %v4992 = vpack.c.b16 %v4978, %v4977
        %v4993 = vpack.c.b16 %v4980, %v4979
        %v4994 = vpack.c.b16 %v4982, %v4981
        %v4995 = vpack.c.b16 %v4984, %v4983
        %v4996 = vpack.c.b16 %v4986, %v4985
        %v4997 = vpack.c.b16 %v4988, %v4987
        %v4998 = vpack.c.b16 %v4990, %v4989
        %v5023 = vunpack.c.l.b16 %v4959
        %v5024 = vunpack.c.l.b16 %v4960
        %v5025 = vunpack.c.l.b16 %v4961
        %v5026 = vunpack.c.l.b16 %v4962
        %v5027 = vunpack.c.l.b16 %v4963
        %v5028 = vunpack.c.l.b16 %v4964
        %v5029 = vunpack.c.l.b16 %v4965
        %v5030 = vunpack.c.l.b16 %v4966
        %v5031 = vunpack.c.l.b16 %v4967
        %v5032 = vunpack.c.l.b16 %v4968
        %v5033 = vunpack.c.l.b16 %v4969
        %v5034 = vunpack.c.l.b16 %v4970
        %v5035 = vunpack.c.l.b16 %v4971
        %v5036 = vunpack.c.l.b16 %v4972
        %v5037 = vunpack.c.l.b16 %v4973
        %v5038 = vunpack.c.l.b16 %v4974
        %v5039 = vpack.c.b16 %v5024, %v5023
        %v5040 = vpack.c.b16 %v5026, %v5025
        %v5041 = vpack.c.b16 %v5028, %v5027
        %v5042 = vpack.c.b16 %v5030, %v5029
        %v5043 = vpack.c.b16 %v5032, %v5031
        %v5044 = vpack.c.b16 %v5034, %v5033
        %v5045 = vpack.c.b16 %v5036, %v5035
        %v5046 = vpack.c.b16 %v5038, %v5037
        %5055 = vmatpush.bf16.msra.mxu0 %v5046
        %5056 = vmatpush.bf16.msra.mxu0 %v5045
        %5057 = vmatpush.bf16.msra.mxu0 %v5044
        %5058 = vmatpush.bf16.msra.mxu0 %v5043
        %5059 = vmatpush.bf16.msra.mxu0 %v5042
        %5060 = vmatpush.bf16.msra.mxu0 %v5041
        %5061 = vmatpush.bf16.msra.mxu0 %v5040
        %5062 = vmatpush.bf16.msra.mxu0 %v5039
        %5063 = vmatmul.bf16.gmra.mxu0 %v4991
        %v5064 = vpop.f32.mrf.mxu0
        %v5065 = vadd.f32 0.0, %v5064
        %v5066 = vpop.f32.mrf.mxu0
        %v5067 = vadd.f32 0.0, %v5066
        %5068 = vmatmul.bf16.gmra.mxu0 %v4992
        %v5069 = vpop.f32.mrf.mxu0
        %v5070 = vadd.f32 0.0, %v5069
        %v5071 = vpop.f32.mrf.mxu0
        %v5072 = vadd.f32 0.0, %v5071
        %5073 = vmatmul.bf16.gmra.mxu0 %v4993
        %v5074 = vpop.f32.mrf.mxu0
        %v5075 = vadd.f32 0.0, %v5074
        %v5076 = vpop.f32.mrf.mxu0
        %v5077 = vadd.f32 0.0, %v5076
        %5078 = vmatmul.bf16.gmra.mxu0 %v4994
        %v5079 = vpop.f32.mrf.mxu0
        %v5080 = vadd.f32 0.0, %v5079
        %v5081 = vpop.f32.mrf.mxu0
        %v5082 = vadd.f32 0.0, %v5081
        %5083 = vmatmul.bf16.gmra.mxu0 %v4995
        %v5084 = vpop.f32.mrf.mxu0
        %v5085 = vadd.f32 0.0, %v5084
        %v5086 = vpop.f32.mrf.mxu0
        %v5087 = vadd.f32 0.0, %v5086
        %5088 = vmatmul.bf16.gmra.mxu0 %v4996
        %v5089 = vpop.f32.mrf.mxu0
        %v5090 = vadd.f32 0.0, %v5089
        %v5091 = vpop.f32.mrf.mxu0
        %v5092 = vadd.f32 0.0, %v5091
        %5093 = vmatmul.bf16.gmra.mxu0 %v4997
        %v5094 = vpop.f32.mrf.mxu0
        %v5095 = vadd.f32 0.0, %v5094
        %v5096 = vpop.f32.mrf.mxu0
        %v5097 = vadd.f32 0.0, %v5096
        %5098 = vmatmul.bf16.gmra.mxu0 %v4998
        %v5099 = vpop.f32.mrf.mxu0
        %v5100 = vadd.f32 0.0, %v5099
        %v5101 = vpop.f32.mrf.mxu0
        %v5102 = vadd.f32 0.0, %v5101
        %5103 = vdwg.mxu0
        %v5104 = vadd.f32 %v4726, %v5065
        %v5105 = vadd.f32 %v4727, %v5067
        %v5106 = vadd.f32 %v4728, %v5070
        %v5107 = vadd.f32 %v4729, %v5072
        %v5108 = vadd.f32 %v4730, %v5075
        %v5109 = vadd.f32 %v4731, %v5077
        %v5110 = vadd.f32 %v4732, %v5080
        %v5111 = vadd.f32 %v4733, %v5082
        %v5112 = vadd.f32 %v4734, %v5085
        %v5113 = vadd.f32 %v4735, %v5087
        %v5114 = vadd.f32 %v4736, %v5090
        %v5115 = vadd.f32 %v4737, %v5092
        %v5116 = vadd.f32 %v4738, %v5095
        %v5117 = vadd.f32 %v4739, %v5097
        %v5118 = vadd.f32 %v4740, %v5100
        %v5119 = vadd.f32 %v4741, %v5102
        %v5120 = vld [vmem:[%s4547] sm:$0xe]
        %v5121 = vld [vmem:[%s4547 + $0xc] sm:$0xe]
        %v5122 = vld [vmem:[%s4547 + $0x18] sm:$0xe]
        %v5123 = vld [vmem:[%s4547 + $0x24] sm:$0xe]
        %v5124 = vld [vmem:[%s4547 + $0x30] sm:$0xe]
        %v5125 = vld [vmem:[%s4547 + $0x3c] sm:$0xe]
        %v5126 = vld [vmem:[%s4547 + $0x48] sm:$0xe]
        %v5127 = vld [vmem:[%s4547 + $0x54] sm:$0xe]
        %v5152 = vrot.slane %v5120, 5
        %v5153 = vrot.slane %v5152, 4
        %v5154 = vrot.slane %v4743, 5
        %v5155 = vsel %vm1163, %v5153, %v5154
        %v5156 = vrot.slane %v5154, 4
        %v5157 = vrot.slane %v4744, 5
        %v5158 = vsel %vm1163, %v5156, %v5157
        %v5159 = vrot.slane %v5121, 5
        %v5160 = vrot.slane %v5159, 4
        %v5161 = vrot.slane %v4746, 5
        %v5162 = vsel %vm1163, %v5160, %v5161
        %v5163 = vrot.slane %v5161, 4
        %v5164 = vrot.slane %v4747, 5
        %v5165 = vsel %vm1163, %v5163, %v5164
        %v5166 = vrot.slane %v5122, 5
        %v5167 = vrot.slane %v5166, 4
        %v5168 = vrot.slane %v4749, 5
        %v5169 = vsel %vm1163, %v5167, %v5168
        %v5170 = vrot.slane %v5168, 4
        %v5171 = vrot.slane %v4750, 5
        %v5172 = vsel %vm1163, %v5170, %v5171
        %v5173 = vrot.slane %v5123, 5
        %v5174 = vrot.slane %v5173, 4
        %v5175 = vrot.slane %v4752, 5
        %v5176 = vsel %vm1163, %v5174, %v5175
        %v5177 = vrot.slane %v5175, 4
        %v5178 = vrot.slane %v4753, 5
        %v5179 = vsel %vm1163, %v5177, %v5178
        %v5180 = vrot.slane %v5124, 5
        %v5181 = vrot.slane %v5180, 4
        %v5182 = vrot.slane %v4755, 5
        %v5183 = vsel %vm1163, %v5181, %v5182
        %v5184 = vrot.slane %v5182, 4
        %v5185 = vrot.slane %v4756, 5
        %v5186 = vsel %vm1163, %v5184, %v5185
        %v5187 = vrot.slane %v5125, 5
        %v5188 = vrot.slane %v5187, 4
        %v5189 = vrot.slane %v4758, 5
        %v5190 = vsel %vm1163, %v5188, %v5189
        %v5191 = vrot.slane %v5189, 4
        %v5192 = vrot.slane %v4759, 5
        %v5193 = vsel %vm1163, %v5191, %v5192
        %v5194 = vrot.slane %v5126, 5
        %v5195 = vrot.slane %v5194, 4
        %v5196 = vrot.slane %v4761, 5
        %v5197 = vsel %vm1163, %v5195, %v5196
        %v5198 = vrot.slane %v5196, 4
        %v5199 = vrot.slane %v4762, 5
        %v5200 = vsel %vm1163, %v5198, %v5199
        %v5201 = vrot.slane %v5127, 5
        %v5202 = vrot.slane %v5201, 4
        %v5203 = vrot.slane %v4764, 5
        %v5204 = vsel %vm1163, %v5202, %v5203
        %v5205 = vrot.slane %v5203, 4
        %v5206 = vrot.slane %v4765, 5
        %v5207 = vsel %vm1163, %v5205, %v5206
        %s5208 = scalar_lea.vmem %s4, 320
        %v5209 = vld [vmem:[%s5208] sm:$0xf]
        %v5210 = vld [vmem:[%s5208 + $0x4] sm:$0xf]
        %v5211 = vld [vmem:[%s5208 + $0x8] sm:$0xf]
        %v5212 = vld [vmem:[%s5208 + $0xc] sm:$0xf]
        %v5213 = vld [vmem:[%s5208 + $0x10] sm:$0xf]
        %v5214 = vld [vmem:[%s5208 + $0x14] sm:$0xf]
        %v5215 = vld [vmem:[%s5208 + $0x18] sm:$0xf]
        %v5216 = vld [vmem:[%s5208 + $0x1c] sm:$0xf]
        %v5217 = vld [vmem:[%s5208 + $0x20] sm:$0xf]
        %v5218 = vld [vmem:[%s5208 + $0x24] sm:$0xf]
        %v5219 = vld [vmem:[%s5208 + $0x28] sm:$0xf]
        %v5220 = vld [vmem:[%s5208 + $0x2c] sm:$0xf]
        %v5221 = vld [vmem:[%s5208 + $0x30] sm:$0xf]
        %v5222 = vld [vmem:[%s5208 + $0x34] sm:$0xf]
        %v5223 = vld [vmem:[%s5208 + $0x38] sm:$0xf]
        %v5224 = vld [vmem:[%s5208 + $0x3c] sm:$0xf]
        %v5225 = vunpack.c.l.b16 %v5155
        %v5226 = vunpack.c.l.b16 %v5158
        %v5227 = vunpack.c.l.b16 %v5162
        %v5228 = vunpack.c.l.b16 %v5165
        %v5229 = vunpack.c.l.b16 %v5169
        %v5230 = vunpack.c.l.b16 %v5172
        %v5231 = vunpack.c.l.b16 %v5176
        %v5232 = vunpack.c.l.b16 %v5179
        %v5233 = vunpack.c.l.b16 %v5183
        %v5234 = vunpack.c.l.b16 %v5186
        %v5235 = vunpack.c.l.b16 %v5190
        %v5236 = vunpack.c.l.b16 %v5193
        %v5237 = vunpack.c.l.b16 %v5197
        %v5238 = vunpack.c.l.b16 %v5200
        %v5239 = vunpack.c.l.b16 %v5204
        %v5240 = vunpack.c.l.b16 %v5207
        %v5241 = vpack.c.b16 %v5226, %v5225
        %v5242 = vpack.c.b16 %v5228, %v5227
        %v5243 = vpack.c.b16 %v5230, %v5229
        %v5244 = vpack.c.b16 %v5232, %v5231
        %v5245 = vpack.c.b16 %v5234, %v5233
        %v5246 = vpack.c.b16 %v5236, %v5235
        %v5247 = vpack.c.b16 %v5238, %v5237
        %v5248 = vpack.c.b16 %v5240, %v5239
        %v5273 = vunpack.c.l.b16 %v5209
        %v5274 = vunpack.c.l.b16 %v5210
        %v5275 = vunpack.c.l.b16 %v5211
        %v5276 = vunpack.c.l.b16 %v5212
        %v5277 = vunpack.c.l.b16 %v5213
        %v5278 = vunpack.c.l.b16 %v5214
        %v5279 = vunpack.c.l.b16 %v5215
        %v5280 = vunpack.c.l.b16 %v5216
        %v5281 = vunpack.c.l.b16 %v5217
        %v5282 = vunpack.c.l.b16 %v5218
        %v5283 = vunpack.c.l.b16 %v5219
        %v5284 = vunpack.c.l.b16 %v5220
        %v5285 = vunpack.c.l.b16 %v5221
        %v5286 = vunpack.c.l.b16 %v5222
        %v5287 = vunpack.c.l.b16 %v5223
        %v5288 = vunpack.c.l.b16 %v5224
        %v5289 = vpack.c.b16 %v5274, %v5273
        %v5290 = vpack.c.b16 %v5276, %v5275
        %v5291 = vpack.c.b16 %v5278, %v5277
        %v5292 = vpack.c.b16 %v5280, %v5279
        %v5293 = vpack.c.b16 %v5282, %v5281
        %v5294 = vpack.c.b16 %v5284, %v5283
        %v5295 = vpack.c.b16 %v5286, %v5285
        %v5296 = vpack.c.b16 %v5288, %v5287
        %5305 = vmatpush.bf16.msra.mxu0 %v5296
        %5306 = vmatpush.bf16.msra.mxu0 %v5295
        %5307 = vmatpush.bf16.msra.mxu0 %v5294
        %5308 = vmatpush.bf16.msra.mxu0 %v5293
        %5309 = vmatpush.bf16.msra.mxu0 %v5292
        %5310 = vmatpush.bf16.msra.mxu0 %v5291
        %5311 = vmatpush.bf16.msra.mxu0 %v5290
        %5312 = vmatpush.bf16.msra.mxu0 %v5289
        %5313 = vmatmul.bf16.gmra.mxu0 %v5241
        %v5314 = vpop.f32.mrf.mxu0
        %v5315 = vadd.f32 0.0, %v5314
        %v5316 = vpop.f32.mrf.mxu0
        %v5317 = vadd.f32 0.0, %v5316
        %5318 = vmatmul.bf16.gmra.mxu0 %v5242
        %v5319 = vpop.f32.mrf.mxu0
        %v5320 = vadd.f32 0.0, %v5319
        %v5321 = vpop.f32.mrf.mxu0
        %v5322 = vadd.f32 0.0, %v5321
        %5323 = vmatmul.bf16.gmra.mxu0 %v5243
        %v5324 = vpop.f32.mrf.mxu0
        %v5325 = vadd.f32 0.0, %v5324
        %v5326 = vpop.f32.mrf.mxu0
        %v5327 = vadd.f32 0.0, %v5326
        %5328 = vmatmul.bf16.gmra.mxu0 %v5244
        %v5329 = vpop.f32.mrf.mxu0
        %v5330 = vadd.f32 0.0, %v5329
        %v5331 = vpop.f32.mrf.mxu0
        %v5332 = vadd.f32 0.0, %v5331
        %5333 = vmatmul.bf16.gmra.mxu0 %v5245
        %v5334 = vpop.f32.mrf.mxu0
        %v5335 = vadd.f32 0.0, %v5334
        %v5336 = vpop.f32.mrf.mxu0
        %v5337 = vadd.f32 0.0, %v5336
        %5338 = vmatmul.bf16.gmra.mxu0 %v5246
        %v5339 = vpop.f32.mrf.mxu0
        %v5340 = vadd.f32 0.0, %v5339
        %v5341 = vpop.f32.mrf.mxu0
        %v5342 = vadd.f32 0.0, %v5341
        %5343 = vmatmul.bf16.gmra.mxu0 %v5247
        %v5344 = vpop.f32.mrf.mxu0
        %v5345 = vadd.f32 0.0, %v5344
        %v5346 = vpop.f32.mrf.mxu0
        %v5347 = vadd.f32 0.0, %v5346
        %5348 = vmatmul.bf16.gmra.mxu0 %v5248
        %v5349 = vpop.f32.mrf.mxu0
        %v5350 = vadd.f32 0.0, %v5349
        %v5351 = vpop.f32.mrf.mxu0
        %v5352 = vadd.f32 0.0, %v5351
        %5353 = vdwg.mxu0
        %v5354 = vadd.f32 %v5104, %v5315
        %v5355 = vadd.f32 %v5105, %v5317
        %v5356 = vadd.f32 %v5106, %v5320
        %v5357 = vadd.f32 %v5107, %v5322
        %v5358 = vadd.f32 %v5108, %v5325
        %v5359 = vadd.f32 %v5109, %v5327
        %v5360 = vadd.f32 %v5110, %v5330
        %v5361 = vadd.f32 %v5111, %v5332
        %v5362 = vadd.f32 %v5112, %v5335
        %v5363 = vadd.f32 %v5113, %v5337
        %v5364 = vadd.f32 %v5114, %v5340
        %v5365 = vadd.f32 %v5115, %v5342
        %v5366 = vadd.f32 %v5116, %v5345
        %v5367 = vadd.f32 %v5117, %v5347
        %v5368 = vadd.f32 %v5118, %v5350
        %v5369 = vadd.f32 %v5119, %v5352
        %s5370 = scalar_lea.vmem [#allocation3], 24
        %v5371 = vld [vmem:[%s5370] sm:$0xf]
        %v5372 = vld [vmem:[%s5370 + $0x4] sm:$0xf]
        %v5373 = vld [vmem:[%s5370 + $0xc] sm:$0xf]
        %v5374 = vld [vmem:[%s5370 + $0x10] sm:$0xf]
        %v5375 = vld [vmem:[%s5370 + $0x18] sm:$0xf]
        %v5376 = vld [vmem:[%s5370 + $0x1c] sm:$0xf]
        %v5377 = vld [vmem:[%s5370 + $0x24] sm:$0xf]
        %v5378 = vld [vmem:[%s5370 + $0x28] sm:$0xf]
        %v5379 = vld [vmem:[%s5370 + $0x30] sm:$0xf]
        %v5380 = vld [vmem:[%s5370 + $0x34] sm:$0xf]
        %v5381 = vld [vmem:[%s5370 + $0x3c] sm:$0xf]
        %v5382 = vld [vmem:[%s5370 + $0x40] sm:$0xf]
        %v5383 = vld [vmem:[%s5370 + $0x48] sm:$0xf]
        %v5384 = vld [vmem:[%s5370 + $0x4c] sm:$0xf]
        %v5385 = vld [vmem:[%s5370 + $0x54] sm:$0xf]
        %v5386 = vld [vmem:[%s5370 + $0x58] sm:$0xf]
        %s5387 = scalar_lea.vmem %s4, 384
        %v5388 = vld [vmem:[%s5387] sm:$0xf]
        %v5389 = vld [vmem:[%s5387 + $0x4] sm:$0xf]
        %v5390 = vld [vmem:[%s5387 + $0x8] sm:$0xf]
        %v5391 = vld [vmem:[%s5387 + $0xc] sm:$0xf]
        %v5392 = vld [vmem:[%s5387 + $0x10] sm:$0xf]
        %v5393 = vld [vmem:[%s5387 + $0x14] sm:$0xf]
        %v5394 = vld [vmem:[%s5387 + $0x18] sm:$0xf]
        %v5395 = vld [vmem:[%s5387 + $0x1c] sm:$0xf]
        %v5396 = vld [vmem:[%s5387 + $0x20] sm:$0xf]
        %v5397 = vld [vmem:[%s5387 + $0x24] sm:$0xf]
        %v5398 = vld [vmem:[%s5387 + $0x28] sm:$0xf]
        %v5399 = vld [vmem:[%s5387 + $0x2c] sm:$0xf]
        %v5400 = vld [vmem:[%s5387 + $0x30] sm:$0xf]
        %v5401 = vld [vmem:[%s5387 + $0x34] sm:$0xf]
        %v5402 = vld [vmem:[%s5387 + $0x38] sm:$0xf]
        %v5403 = vld [vmem:[%s5387 + $0x3c] sm:$0xf]
        %v5420 = vunpack.c.l.b16 %v5371
        %v5421 = vunpack.c.l.b16 %v5372
        %v5422 = vunpack.c.l.b16 %v5373
        %v5423 = vunpack.c.l.b16 %v5374
        %v5424 = vunpack.c.l.b16 %v5375
        %v5425 = vunpack.c.l.b16 %v5376
        %v5426 = vunpack.c.l.b16 %v5377
        %v5427 = vunpack.c.l.b16 %v5378
        %v5428 = vunpack.c.l.b16 %v5379
        %v5429 = vunpack.c.l.b16 %v5380
        %v5430 = vunpack.c.l.b16 %v5381
        %v5431 = vunpack.c.l.b16 %v5382
        %v5432 = vunpack.c.l.b16 %v5383
        %v5433 = vunpack.c.l.b16 %v5384
        %v5434 = vunpack.c.l.b16 %v5385
        %v5435 = vunpack.c.l.b16 %v5386
        %v5436 = vpack.c.b16 %v5421, %v5420
        %v5437 = vpack.c.b16 %v5423, %v5422
        %v5438 = vpack.c.b16 %v5425, %v5424
        %v5439 = vpack.c.b16 %v5427, %v5426
        %v5440 = vpack.c.b16 %v5429, %v5428
        %v5441 = vpack.c.b16 %v5431, %v5430
        %v5442 = vpack.c.b16 %v5433, %v5432
        %v5443 = vpack.c.b16 %v5435, %v5434
        %v5468 = vunpack.c.l.b16 %v5388
        %v5469 = vunpack.c.l.b16 %v5389
        %v5470 = vunpack.c.l.b16 %v5390
        %v5471 = vunpack.c.l.b16 %v5391
        %v5472 = vunpack.c.l.b16 %v5392
        %v5473 = vunpack.c.l.b16 %v5393
        %v5474 = vunpack.c.l.b16 %v5394
        %v5475 = vunpack.c.l.b16 %v5395
        %v5476 = vunpack.c.l.b16 %v5396
        %v5477 = vunpack.c.l.b16 %v5397
        %v5478 = vunpack.c.l.b16 %v5398
        %v5479 = vunpack.c.l.b16 %v5399
        %v5480 = vunpack.c.l.b16 %v5400
        %v5481 = vunpack.c.l.b16 %v5401
        %v5482 = vunpack.c.l.b16 %v5402
        %v5483 = vunpack.c.l.b16 %v5403
        %v5484 = vpack.c.b16 %v5469, %v5468
        %v5485 = vpack.c.b16 %v5471, %v5470
        %v5486 = vpack.c.b16 %v5473, %v5472
        %v5487 = vpack.c.b16 %v5475, %v5474
        %v5488 = vpack.c.b16 %v5477, %v5476
        %v5489 = vpack.c.b16 %v5479, %v5478
        %v5490 = vpack.c.b16 %v5481, %v5480
        %v5491 = vpack.c.b16 %v5483, %v5482
        %5500 = vmatpush.bf16.msra.mxu0 %v5491
        %5501 = vmatpush.bf16.msra.mxu0 %v5490
        %5502 = vmatpush.bf16.msra.mxu0 %v5489
        %5503 = vmatpush.bf16.msra.mxu0 %v5488
        %5504 = vmatpush.bf16.msra.mxu0 %v5487
        %5505 = vmatpush.bf16.msra.mxu0 %v5486
        %5506 = vmatpush.bf16.msra.mxu0 %v5485
        %5507 = vmatpush.bf16.msra.mxu0 %v5484
        %5508 = vmatmul.bf16.gmra.mxu0 %v5436
        %v5509 = vpop.f32.mrf.mxu0
        %v5510 = vadd.f32 0.0, %v5509
        %v5511 = vpop.f32.mrf.mxu0
        %v5512 = vadd.f32 0.0, %v5511
        %5513 = vmatmul.bf16.gmra.mxu0 %v5437
        %v5514 = vpop.f32.mrf.mxu0
        %v5515 = vadd.f32 0.0, %v5514
        %v5516 = vpop.f32.mrf.mxu0
        %v5517 = vadd.f32 0.0, %v5516
        %5518 = vmatmul.bf16.gmra.mxu0 %v5438
        %v5519 = vpop.f32.mrf.mxu0
        %v5520 = vadd.f32 0.0, %v5519
        %v5521 = vpop.f32.mrf.mxu0
        %v5522 = vadd.f32 0.0, %v5521
        %5523 = vmatmul.bf16.gmra.mxu0 %v5439
        %v5524 = vpop.f32.mrf.mxu0
        %v5525 = vadd.f32 0.0, %v5524
        %v5526 = vpop.f32.mrf.mxu0
        %v5527 = vadd.f32 0.0, %v5526
        %5528 = vmatmul.bf16.gmra.mxu0 %v5440
        %v5529 = vpop.f32.mrf.mxu0
        %v5530 = vadd.f32 0.0, %v5529
        %v5531 = vpop.f32.mrf.mxu0
        %v5532 = vadd.f32 0.0, %v5531
        %5533 = vmatmul.bf16.gmra.mxu0 %v5441
        %v5534 = vpop.f32.mrf.mxu0
        %v5535 = vadd.f32 0.0, %v5534
        %v5536 = vpop.f32.mrf.mxu0
        %v5537 = vadd.f32 0.0, %v5536
        %5538 = vmatmul.bf16.gmra.mxu0 %v5442
        %v5539 = vpop.f32.mrf.mxu0
        %v5540 = vadd.f32 0.0, %v5539
        %v5541 = vpop.f32.mrf.mxu0
        %v5542 = vadd.f32 0.0, %v5541
        %5543 = vmatmul.bf16.gmra.mxu0 %v5443
        %v5544 = vpop.f32.mrf.mxu0
        %v5545 = vadd.f32 0.0, %v5544
        %v5546 = vpop.f32.mrf.mxu0
        %v5547 = vadd.f32 0.0, %v5546
        %5548 = vdwg.mxu0
        %v5549 = vadd.f32 %v5354, %v5510
        %v5550 = vadd.f32 %v5355, %v5512
        %v5551 = vadd.f32 %v5356, %v5515
        %v5552 = vadd.f32 %v5357, %v5517
        %v5553 = vadd.f32 %v5358, %v5520
        %v5554 = vadd.f32 %v5359, %v5522
        %v5555 = vadd.f32 %v5360, %v5525
        %v5556 = vadd.f32 %v5361, %v5527
        %v5557 = vadd.f32 %v5362, %v5530
        %v5558 = vadd.f32 %v5363, %v5532
        %v5559 = vadd.f32 %v5364, %v5535
        %v5560 = vadd.f32 %v5365, %v5537
        %v5561 = vadd.f32 %v5366, %v5540
        %v5562 = vadd.f32 %v5367, %v5542
        %v5563 = vadd.f32 %v5368, %v5545
        %v5564 = vadd.f32 %v5369, %v5547
        %v5565 = vld [vmem:[%s5370] sm:$0xf]
        %v5566 = vld [vmem:[%s5370 + $0x4] sm:$0xf]
        %v5567 = vld [vmem:[%s5370 + $0x8] sm:$0x1]
        %v5568 = vld [vmem:[%s5370 + $0xc] sm:$0xf]
        %v5569 = vld [vmem:[%s5370 + $0x10] sm:$0xf]
        %v5570 = vld [vmem:[%s5370 + $0x14] sm:$0x1]
        %v5571 = vld [vmem:[%s5370 + $0x18] sm:$0xf]
        %v5572 = vld [vmem:[%s5370 + $0x1c] sm:$0xf]
        %v5573 = vld [vmem:[%s5370 + $0x20] sm:$0x1]
        %v5574 = vld [vmem:[%s5370 + $0x24] sm:$0xf]
        %v5575 = vld [vmem:[%s5370 + $0x28] sm:$0xf]
        %v5576 = vld [vmem:[%s5370 + $0x2c] sm:$0x1]
        %v5577 = vld [vmem:[%s5370 + $0x30] sm:$0xf]
        %v5578 = vld [vmem:[%s5370 + $0x34] sm:$0xf]
        %v5579 = vld [vmem:[%s5370 + $0x38] sm:$0x1]
        %v5580 = vld [vmem:[%s5370 + $0x3c] sm:$0xf]
        %v5581 = vld [vmem:[%s5370 + $0x40] sm:$0xf]
        %v5582 = vld [vmem:[%s5370 + $0x44] sm:$0x1]
        %v5583 = vld [vmem:[%s5370 + $0x48] sm:$0xf]
        %v5584 = vld [vmem:[%s5370 + $0x4c] sm:$0xf]
        %v5585 = vld [vmem:[%s5370 + $0x50] sm:$0x1]
        %v5586 = vld [vmem:[%s5370 + $0x54] sm:$0xf]
        %v5587 = vld [vmem:[%s5370 + $0x58] sm:$0xf]
        %v5588 = vld [vmem:[%s5370 + $0x5c] sm:$0x1]
        %v5590 = vshrl.u32 %v5565, 16
        %v5592 = vrot.slane %v5590, 4
        %v5593 = vshll.u32 %v5565, 16
        %v5595 = vrot.slane %v5593, 5
        %v5596 = vor.u32 %v5592, %v5595
        %v5597 = vrot.slane %v5596, 4
        %v5599 = vshll.u32 %v5566, 16
        %v5601 = vrot.slane %v5599, 5
        %v5602 = vsel %vm559, %v5597, %v5601
        %v5603 = vshrl.u32 %v5566, 16
        %v5605 = vrot.slane %v5603, 4
        %v5606 = vor.u32 %v5605, %v5601
        %v5607 = vrot.slane %v5606, 4
        %v5609 = vshll.u32 %v5567, 16
        %v5611 = vrot.slane %v5609, 5
        %v5612 = vsel %vm559, %v5607, %v5611
        %v5614 = vshrl.u32 %v5568, 16
        %v5616 = vrot.slane %v5614, 4
        %v5617 = vshll.u32 %v5568, 16
        %v5619 = vrot.slane %v5617, 5
        %v5620 = vor.u32 %v5616, %v5619
        %v5621 = vrot.slane %v5620, 4
        %v5623 = vshll.u32 %v5569, 16
        %v5625 = vrot.slane %v5623, 5
        %v5626 = vsel %vm559, %v5621, %v5625
        %v5627 = vshrl.u32 %v5569, 16
        %v5629 = vrot.slane %v5627, 4
        %v5630 = vor.u32 %v5629, %v5625
        %v5631 = vrot.slane %v5630, 4
        %v5633 = vshll.u32 %v5570, 16
        %v5635 = vrot.slane %v5633, 5
        %v5636 = vsel %vm559, %v5631, %v5635
        %v5638 = vshrl.u32 %v5571, 16
        %v5640 = vrot.slane %v5638, 4
        %v5641 = vshll.u32 %v5571, 16
        %v5643 = vrot.slane %v5641, 5
        %v5644 = vor.u32 %v5640, %v5643
        %v5645 = vrot.slane %v5644, 4
        %v5647 = vshll.u32 %v5572, 16
        %v5649 = vrot.slane %v5647, 5
        %v5650 = vsel %vm559, %v5645, %v5649
        %v5651 = vshrl.u32 %v5572, 16
        %v5653 = vrot.slane %v5651, 4
        %v5654 = vor.u32 %v5653, %v5649
        %v5655 = vrot.slane %v5654, 4
        %v5657 = vshll.u32 %v5573, 16
        %v5659 = vrot.slane %v5657, 5
        %v5660 = vsel %vm559, %v5655, %v5659
        %v5662 = vshrl.u32 %v5574, 16
        %v5664 = vrot.slane %v5662, 4
        %v5665 = vshll.u32 %v5574, 16
        %v5667 = vrot.slane %v5665, 5
        %v5668 = vor.u32 %v5664, %v5667
        %v5669 = vrot.slane %v5668, 4
        %v5671 = vshll.u32 %v5575, 16
        %v5673 = vrot.slane %v5671, 5
        %v5674 = vsel %vm559, %v5669, %v5673
        %v5675 = vshrl.u32 %v5575, 16
        %v5677 = vrot.slane %v5675, 4
        %v5678 = vor.u32 %v5677, %v5673
        %v5679 = vrot.slane %v5678, 4
        %v5681 = vshll.u32 %v5576, 16
        %v5683 = vrot.slane %v5681, 5
        %v5684 = vsel %vm559, %v5679, %v5683
        %v5686 = vshrl.u32 %v5577, 16
        %v5688 = vrot.slane %v5686, 4
        %v5689 = vshll.u32 %v5577, 16
        %v5691 = vrot.slane %v5689, 5
        %v5692 = vor.u32 %v5688, %v5691
        %v5693 = vrot.slane %v5692, 4
        %v5695 = vshll.u32 %v5578, 16
        %v5697 = vrot.slane %v5695, 5
        %v5698 = vsel %vm559, %v5693, %v5697
        %v5699 = vshrl.u32 %v5578, 16
        %v5701 = vrot.slane %v5699, 4
        %v5702 = vor.u32 %v5701, %v5697
        %v5703 = vrot.slane %v5702, 4
        %v5705 = vshll.u32 %v5579, 16
        %v5707 = vrot.slane %v5705, 5
        %v5708 = vsel %vm559, %v5703, %v5707
        %v5710 = vshrl.u32 %v5580, 16
        %v5712 = vrot.slane %v5710, 4
        %v5713 = vshll.u32 %v5580, 16
        %v5715 = vrot.slane %v5713, 5
        %v5716 = vor.u32 %v5712, %v5715
        %v5717 = vrot.slane %v5716, 4
        %v5719 = vshll.u32 %v5581, 16
        %v5721 = vrot.slane %v5719, 5
        %v5722 = vsel %vm559, %v5717, %v5721
        %v5723 = vshrl.u32 %v5581, 16
        %v5725 = vrot.slane %v5723, 4
        %v5726 = vor.u32 %v5725, %v5721
        %v5727 = vrot.slane %v5726, 4
        %v5729 = vshll.u32 %v5582, 16
        %v5731 = vrot.slane %v5729, 5
        %v5732 = vsel %vm559, %v5727, %v5731
        %v5734 = vshrl.u32 %v5583, 16
        %v5736 = vrot.slane %v5734, 4
        %v5737 = vshll.u32 %v5583, 16
        %v5739 = vrot.slane %v5737, 5
        %v5740 = vor.u32 %v5736, %v5739
        %v5741 = vrot.slane %v5740, 4
        %v5743 = vshll.u32 %v5584, 16
        %v5745 = vrot.slane %v5743, 5
        %v5746 = vsel %vm559, %v5741, %v5745
        %v5747 = vshrl.u32 %v5584, 16
        %v5749 = vrot.slane %v5747, 4
        %v5750 = vor.u32 %v5749, %v5745
        %v5751 = vrot.slane %v5750, 4
        %v5753 = vshll.u32 %v5585, 16
        %v5755 = vrot.slane %v5753, 5
        %v5756 = vsel %vm559, %v5751, %v5755
        %v5758 = vshrl.u32 %v5586, 16
        %v5760 = vrot.slane %v5758, 4
        %v5761 = vshll.u32 %v5586, 16
        %v5763 = vrot.slane %v5761, 5
        %v5764 = vor.u32 %v5760, %v5763
        %v5765 = vrot.slane %v5764, 4
        %v5767 = vshll.u32 %v5587, 16
        %v5769 = vrot.slane %v5767, 5
        %v5770 = vsel %vm559, %v5765, %v5769
        %v5771 = vshrl.u32 %v5587, 16
        %v5773 = vrot.slane %v5771, 4
        %v5774 = vor.u32 %v5773, %v5769
        %v5775 = vrot.slane %v5774, 4
        %v5777 = vshll.u32 %v5588, 16
        %v5779 = vrot.slane %v5777, 5
        %v5780 = vsel %vm559, %v5775, %v5779
        %s5781 = scalar_lea.vmem %s4, 448
        %v5782 = vld [vmem:[%s5781] sm:$0xf]
        %v5783 = vld [vmem:[%s5781 + $0x4] sm:$0xf]
        %v5784 = vld [vmem:[%s5781 + $0x8] sm:$0xf]
        %v5785 = vld [vmem:[%s5781 + $0xc] sm:$0xf]
        %v5786 = vld [vmem:[%s5781 + $0x10] sm:$0xf]
        %v5787 = vld [vmem:[%s5781 + $0x14] sm:$0xf]
        %v5788 = vld [vmem:[%s5781 + $0x18] sm:$0xf]
        %v5789 = vld [vmem:[%s5781 + $0x1c] sm:$0xf]
        %v5790 = vld [vmem:[%s5781 + $0x20] sm:$0xf]
        %v5791 = vld [vmem:[%s5781 + $0x24] sm:$0xf]
        %v5792 = vld [vmem:[%s5781 + $0x28] sm:$0xf]
        %v5793 = vld [vmem:[%s5781 + $0x2c] sm:$0xf]
        %v5794 = vld [vmem:[%s5781 + $0x30] sm:$0xf]
        %v5795 = vld [vmem:[%s5781 + $0x34] sm:$0xf]
        %v5796 = vld [vmem:[%s5781 + $0x38] sm:$0xf]
        %v5797 = vld [vmem:[%s5781 + $0x3c] sm:$0xf]
        %v5798 = vunpack.c.l.b16 %v5602
        %v5799 = vunpack.c.l.b16 %v5612
        %v5800 = vunpack.c.l.b16 %v5626
        %v5801 = vunpack.c.l.b16 %v5636
        %v5802 = vunpack.c.l.b16 %v5650
        %v5803 = vunpack.c.l.b16 %v5660
        %v5804 = vunpack.c.l.b16 %v5674
        %v5805 = vunpack.c.l.b16 %v5684
        %v5806 = vunpack.c.l.b16 %v5698
        %v5807 = vunpack.c.l.b16 %v5708
        %v5808 = vunpack.c.l.b16 %v5722
        %v5809 = vunpack.c.l.b16 %v5732
        %v5810 = vunpack.c.l.b16 %v5746
        %v5811 = vunpack.c.l.b16 %v5756
        %v5812 = vunpack.c.l.b16 %v5770
        %v5813 = vunpack.c.l.b16 %v5780
        %v5814 = vpack.c.b16 %v5799, %v5798
        %v5815 = vpack.c.b16 %v5801, %v5800
        %v5816 = vpack.c.b16 %v5803, %v5802
        %v5817 = vpack.c.b16 %v5805, %v5804
        %v5818 = vpack.c.b16 %v5807, %v5806
        %v5819 = vpack.c.b16 %v5809, %v5808
        %v5820 = vpack.c.b16 %v5811, %v5810
        %v5821 = vpack.c.b16 %v5813, %v5812
        %v5846 = vunpack.c.l.b16 %v5782
        %v5847 = vunpack.c.l.b16 %v5783
        %v5848 = vunpack.c.l.b16 %v5784
        %v5849 = vunpack.c.l.b16 %v5785
        %v5850 = vunpack.c.l.b16 %v5786
        %v5851 = vunpack.c.l.b16 %v5787
        %v5852 = vunpack.c.l.b16 %v5788
        %v5853 = vunpack.c.l.b16 %v5789
        %v5854 = vunpack.c.l.b16 %v5790
        %v5855 = vunpack.c.l.b16 %v5791
        %v5856 = vunpack.c.l.b16 %v5792
        %v5857 = vunpack.c.l.b16 %v5793
        %v5858 = vunpack.c.l.b16 %v5794
        %v5859 = vunpack.c.l.b16 %v5795
        %v5860 = vunpack.c.l.b16 %v5796
        %v5861 = vunpack.c.l.b16 %v5797
        %v5862 = vpack.c.b16 %v5847, %v5846
        %v5863 = vpack.c.b16 %v5849, %v5848
        %v5864 = vpack.c.b16 %v5851, %v5850
        %v5865 = vpack.c.b16 %v5853, %v5852
        %v5866 = vpack.c.b16 %v5855, %v5854
        %v5867 = vpack.c.b16 %v5857, %v5856
        %v5868 = vpack.c.b16 %v5859, %v5858
        %v5869 = vpack.c.b16 %v5861, %v5860
        %5878 = vmatpush.bf16.msra.mxu0 %v5869
        %5879 = vmatpush.bf16.msra.mxu0 %v5868
        %5880 = vmatpush.bf16.msra.mxu0 %v5867
        %5881 = vmatpush.bf16.msra.mxu0 %v5866
        %5882 = vmatpush.bf16.msra.mxu0 %v5865
        %5883 = vmatpush.bf16.msra.mxu0 %v5864
        %5884 = vmatpush.bf16.msra.mxu0 %v5863
        %5885 = vmatpush.bf16.msra.mxu0 %v5862
        %5886 = vmatmul.bf16.gmra.mxu0 %v5814
        %v5887 = vpop.f32.mrf.mxu0
        %v5888 = vadd.f32 0.0, %v5887
        %v5889 = vpop.f32.mrf.mxu0
        %v5890 = vadd.f32 0.0, %v5889
        %5891 = vmatmul.bf16.gmra.mxu0 %v5815
        %v5892 = vpop.f32.mrf.mxu0
        %v5893 = vadd.f32 0.0, %v5892
        %v5894 = vpop.f32.mrf.mxu0
        %v5895 = vadd.f32 0.0, %v5894
        %5896 = vmatmul.bf16.gmra.mxu0 %v5816
        %v5897 = vpop.f32.mrf.mxu0
        %v5898 = vadd.f32 0.0, %v5897
        %v5899 = vpop.f32.mrf.mxu0
        %v5900 = vadd.f32 0.0, %v5899
        %5901 = vmatmul.bf16.gmra.mxu0 %v5817
        %v5902 = vpop.f32.mrf.mxu0
        %v5903 = vadd.f32 0.0, %v5902
        %v5904 = vpop.f32.mrf.mxu0
        %v5905 = vadd.f32 0.0, %v5904
        %5906 = vmatmul.bf16.gmra.mxu0 %v5818
        %v5907 = vpop.f32.mrf.mxu0
        %v5908 = vadd.f32 0.0, %v5907
        %v5909 = vpop.f32.mrf.mxu0
        %v5910 = vadd.f32 0.0, %v5909
        %5911 = vmatmul.bf16.gmra.mxu0 %v5819
        %v5912 = vpop.f32.mrf.mxu0
        %v5913 = vadd.f32 0.0, %v5912
        %v5914 = vpop.f32.mrf.mxu0
        %v5915 = vadd.f32 0.0, %v5914
        %5916 = vmatmul.bf16.gmra.mxu0 %v5820
        %v5917 = vpop.f32.mrf.mxu0
        %v5918 = vadd.f32 0.0, %v5917
        %v5919 = vpop.f32.mrf.mxu0
        %v5920 = vadd.f32 0.0, %v5919
        %5921 = vmatmul.bf16.gmra.mxu0 %v5821
        %v5922 = vpop.f32.mrf.mxu0
        %v5923 = vadd.f32 0.0, %v5922
        %v5924 = vpop.f32.mrf.mxu0
        %v5925 = vadd.f32 0.0, %v5924
        %5926 = vdwg.mxu0
        %v5927 = vadd.f32 %v5549, %v5888
        %v5928 = vadd.f32 %v5550, %v5890
        %v5929 = vadd.f32 %v5551, %v5893
        %v5930 = vadd.f32 %v5552, %v5895
        %v5931 = vadd.f32 %v5553, %v5898
        %v5932 = vadd.f32 %v5554, %v5900
        %v5933 = vadd.f32 %v5555, %v5903
        %v5934 = vadd.f32 %v5556, %v5905
        %v5935 = vadd.f32 %v5557, %v5908
        %v5936 = vadd.f32 %v5558, %v5910
        %v5937 = vadd.f32 %v5559, %v5913
        %v5938 = vadd.f32 %v5560, %v5915
        %v5939 = vadd.f32 %v5561, %v5918
        %v5940 = vadd.f32 %v5562, %v5920
        %v5941 = vadd.f32 %v5563, %v5923
        %v5942 = vadd.f32 %v5564, %v5925
        %v5943 = vld [vmem:[%s5370] sm:$0xe]
        %v5944 = vld [vmem:[%s5370 + $0xc] sm:$0xe]
        %v5945 = vld [vmem:[%s5370 + $0x18] sm:$0xe]
        %v5946 = vld [vmem:[%s5370 + $0x24] sm:$0xe]
        %v5947 = vld [vmem:[%s5370 + $0x30] sm:$0xe]
        %v5948 = vld [vmem:[%s5370 + $0x3c] sm:$0xe]
        %v5949 = vld [vmem:[%s5370 + $0x48] sm:$0xe]
        %v5950 = vld [vmem:[%s5370 + $0x54] sm:$0xe]
        %v5975 = vrot.slane %v5943, 5
        %v5976 = vrot.slane %v5975, 4
        %v5977 = vrot.slane %v5566, 5
        %v5978 = vsel %vm1163, %v5976, %v5977
        %v5979 = vrot.slane %v5977, 4
        %v5980 = vrot.slane %v5567, 5
        %v5981 = vsel %vm1163, %v5979, %v5980
        %v5982 = vrot.slane %v5944, 5
        %v5983 = vrot.slane %v5982, 4
        %v5984 = vrot.slane %v5569, 5
        %v5985 = vsel %vm1163, %v5983, %v5984
        %v5986 = vrot.slane %v5984, 4
        %v5987 = vrot.slane %v5570, 5
        %v5988 = vsel %vm1163, %v5986, %v5987
        %v5989 = vrot.slane %v5945, 5
        %v5990 = vrot.slane %v5989, 4
        %v5991 = vrot.slane %v5572, 5
        %v5992 = vsel %vm1163, %v5990, %v5991
        %v5993 = vrot.slane %v5991, 4
        %v5994 = vrot.slane %v5573, 5
        %v5995 = vsel %vm1163, %v5993, %v5994
        %v5996 = vrot.slane %v5946, 5
        %v5997 = vrot.slane %v5996, 4
        %v5998 = vrot.slane %v5575, 5
        %v5999 = vsel %vm1163, %v5997, %v5998
        %v6000 = vrot.slane %v5998, 4
        %v6001 = vrot.slane %v5576, 5
        %v6002 = vsel %vm1163, %v6000, %v6001
        %v6003 = vrot.slane %v5947, 5
        %v6004 = vrot.slane %v6003, 4
        %v6005 = vrot.slane %v5578, 5
        %v6006 = vsel %vm1163, %v6004, %v6005
        %v6007 = vrot.slane %v6005, 4
        %v6008 = vrot.slane %v5579, 5
        %v6009 = vsel %vm1163, %v6007, %v6008
        %v6010 = vrot.slane %v5948, 5
        %v6011 = vrot.slane %v6010, 4
        %v6012 = vrot.slane %v5581, 5
        %v6013 = vsel %vm1163, %v6011, %v6012
        %v6014 = vrot.slane %v6012, 4
        %v6015 = vrot.slane %v5582, 5
        %v6016 = vsel %vm1163, %v6014, %v6015
        %v6017 = vrot.slane %v5949, 5
        %v6018 = vrot.slane %v6017, 4
        %v6019 = vrot.slane %v5584, 5
        %v6020 = vsel %vm1163, %v6018, %v6019
        %v6021 = vrot.slane %v6019, 4
        %v6022 = vrot.slane %v5585, 5
        %v6023 = vsel %vm1163, %v6021, %v6022
        %v6024 = vrot.slane %v5950, 5
        %v6025 = vrot.slane %v6024, 4
        %v6026 = vrot.slane %v5587, 5
        %v6027 = vsel %vm1163, %v6025, %v6026
        %v6028 = vrot.slane %v6026, 4
        %v6029 = vrot.slane %v5588, 5
        %v6030 = vsel %vm1163, %v6028, %v6029
        %s6031 = scalar_lea.vmem %s4, 512
        %v6032 = vld [vmem:[%s6031] sm:$0xf]
        %v6033 = vld [vmem:[%s6031 + $0x4] sm:$0xf]
        %v6034 = vld [vmem:[%s6031 + $0x8] sm:$0xf]
        %v6035 = vld [vmem:[%s6031 + $0xc] sm:$0xf]
        %v6036 = vld [vmem:[%s6031 + $0x10] sm:$0xf]
        %v6037 = vld [vmem:[%s6031 + $0x14] sm:$0xf]
        %v6038 = vld [vmem:[%s6031 + $0x18] sm:$0xf]
        %v6039 = vld [vmem:[%s6031 + $0x1c] sm:$0xf]
        %v6040 = vld [vmem:[%s6031 + $0x20] sm:$0xf]
        %v6041 = vld [vmem:[%s6031 + $0x24] sm:$0xf]
        %v6042 = vld [vmem:[%s6031 + $0x28] sm:$0xf]
        %v6043 = vld [vmem:[%s6031 + $0x2c] sm:$0xf]
        %v6044 = vld [vmem:[%s6031 + $0x30] sm:$0xf]
        %v6045 = vld [vmem:[%s6031 + $0x34] sm:$0xf]
        %v6046 = vld [vmem:[%s6031 + $0x38] sm:$0xf]
        %v6047 = vld [vmem:[%s6031 + $0x3c] sm:$0xf]
        %v6048 = vunpack.c.l.b16 %v5978
        %v6049 = vunpack.c.l.b16 %v5981
        %v6050 = vunpack.c.l.b16 %v5985
        %v6051 = vunpack.c.l.b16 %v5988
        %v6052 = vunpack.c.l.b16 %v5992
        %v6053 = vunpack.c.l.b16 %v5995
        %v6054 = vunpack.c.l.b16 %v5999
        %v6055 = vunpack.c.l.b16 %v6002
        %v6056 = vunpack.c.l.b16 %v6006
        %v6057 = vunpack.c.l.b16 %v6009
        %v6058 = vunpack.c.l.b16 %v6013
        %v6059 = vunpack.c.l.b16 %v6016
        %v6060 = vunpack.c.l.b16 %v6020
        %v6061 = vunpack.c.l.b16 %v6023
        %v6062 = vunpack.c.l.b16 %v6027
        %v6063 = vunpack.c.l.b16 %v6030
        %v6064 = vpack.c.b16 %v6049, %v6048
        %v6065 = vpack.c.b16 %v6051, %v6050
        %v6066 = vpack.c.b16 %v6053, %v6052
        %v6067 = vpack.c.b16 %v6055, %v6054
        %v6068 = vpack.c.b16 %v6057, %v6056
        %v6069 = vpack.c.b16 %v6059, %v6058
        %v6070 = vpack.c.b16 %v6061, %v6060
        %v6071 = vpack.c.b16 %v6063, %v6062
        %v6096 = vunpack.c.l.b16 %v6032
        %v6097 = vunpack.c.l.b16 %v6033
        %v6098 = vunpack.c.l.b16 %v6034
        %v6099 = vunpack.c.l.b16 %v6035
        %v6100 = vunpack.c.l.b16 %v6036
        %v6101 = vunpack.c.l.b16 %v6037
        %v6102 = vunpack.c.l.b16 %v6038
        %v6103 = vunpack.c.l.b16 %v6039
        %v6104 = vunpack.c.l.b16 %v6040
        %v6105 = vunpack.c.l.b16 %v6041
        %v6106 = vunpack.c.l.b16 %v6042
        %v6107 = vunpack.c.l.b16 %v6043
        %v6108 = vunpack.c.l.b16 %v6044
        %v6109 = vunpack.c.l.b16 %v6045
        %v6110 = vunpack.c.l.b16 %v6046
        %v6111 = vunpack.c.l.b16 %v6047
        %v6112 = vpack.c.b16 %v6097, %v6096
        %v6113 = vpack.c.b16 %v6099, %v6098
        %v6114 = vpack.c.b16 %v6101, %v6100
        %v6115 = vpack.c.b16 %v6103, %v6102
        %v6116 = vpack.c.b16 %v6105, %v6104
        %v6117 = vpack.c.b16 %v6107, %v6106
        %v6118 = vpack.c.b16 %v6109, %v6108
        %v6119 = vpack.c.b16 %v6111, %v6110
        %6128 = vmatpush.bf16.msra.mxu0 %v6119
        %6129 = vmatpush.bf16.msra.mxu0 %v6118
        %6130 = vmatpush.bf16.msra.mxu0 %v6117
        %6131 = vmatpush.bf16.msra.mxu0 %v6116
        %6132 = vmatpush.bf16.msra.mxu0 %v6115
        %6133 = vmatpush.bf16.msra.mxu0 %v6114
        %6134 = vmatpush.bf16.msra.mxu0 %v6113
        %6135 = vmatpush.bf16.msra.mxu0 %v6112
        %6136 = vmatmul.bf16.gmra.mxu0 %v6064
        %v6137 = vpop.f32.mrf.mxu0
        %v6138 = vadd.f32 0.0, %v6137
        %v6139 = vpop.f32.mrf.mxu0
        %v6140 = vadd.f32 0.0, %v6139
        %6141 = vmatmul.bf16.gmra.mxu0 %v6065
        %v6142 = vpop.f32.mrf.mxu0
        %v6143 = vadd.f32 0.0, %v6142
        %v6144 = vpop.f32.mrf.mxu0
        %v6145 = vadd.f32 0.0, %v6144
        %6146 = vmatmul.bf16.gmra.mxu0 %v6066
        %v6147 = vpop.f32.mrf.mxu0
        %v6148 = vadd.f32 0.0, %v6147
        %v6149 = vpop.f32.mrf.mxu0
        %v6150 = vadd.f32 0.0, %v6149
        %6151 = vmatmul.bf16.gmra.mxu0 %v6067
        %v6152 = vpop.f32.mrf.mxu0
        %v6153 = vadd.f32 0.0, %v6152
        %v6154 = vpop.f32.mrf.mxu0
        %v6155 = vadd.f32 0.0, %v6154
        %6156 = vmatmul.bf16.gmra.mxu0 %v6068
        %v6157 = vpop.f32.mrf.mxu0
        %v6158 = vadd.f32 0.0, %v6157
        %v6159 = vpop.f32.mrf.mxu0
        %v6160 = vadd.f32 0.0, %v6159
        %6161 = vmatmul.bf16.gmra.mxu0 %v6069
        %v6162 = vpop.f32.mrf.mxu0
        %v6163 = vadd.f32 0.0, %v6162
        %v6164 = vpop.f32.mrf.mxu0
        %v6165 = vadd.f32 0.0, %v6164
        %6166 = vmatmul.bf16.gmra.mxu0 %v6070
        %v6167 = vpop.f32.mrf.mxu0
        %v6168 = vadd.f32 0.0, %v6167
        %v6169 = vpop.f32.mrf.mxu0
        %v6170 = vadd.f32 0.0, %v6169
        %6171 = vmatmul.bf16.gmra.mxu0 %v6071
        %v6172 = vpop.f32.mrf.mxu0
        %v6173 = vadd.f32 0.0, %v6172
        %v6174 = vpop.f32.mrf.mxu0
        %v6175 = vadd.f32 0.0, %v6174
        %6176 = vdwg.mxu0
        %v6177 = vadd.f32 %v5927, %v6138
        %v6178 = vadd.f32 %v5928, %v6140
        %v6179 = vadd.f32 %v5929, %v6143
        %v6180 = vadd.f32 %v5930, %v6145
        %v6181 = vadd.f32 %v5931, %v6148
        %v6182 = vadd.f32 %v5932, %v6150
        %v6183 = vadd.f32 %v5933, %v6153
        %v6184 = vadd.f32 %v5934, %v6155
        %v6185 = vadd.f32 %v5935, %v6158
        %v6186 = vadd.f32 %v5936, %v6160
        %v6187 = vadd.f32 %v5937, %v6163
        %v6188 = vadd.f32 %v5938, %v6165
        %v6189 = vadd.f32 %v5939, %v6168
        %v6190 = vadd.f32 %v5940, %v6170
        %v6191 = vadd.f32 %v5941, %v6173
        %v6192 = vadd.f32 %v5942, %v6175
        %v6193 = vld [vmem:[%s6] sm:$0x1]
        %v6195 = vperm.slane %v6193, 0
        %v6197 = vadd.f32 %v6177, %v6195
        %v6198 = vadd.f32 %v6178, %v6195
        %v6199 = vadd.f32 %v6179, %v6195
        %v6200 = vadd.f32 %v6180, %v6195
        %v6201 = vadd.f32 %v6181, %v6195
        %v6202 = vadd.f32 %v6182, %v6195
        %v6203 = vadd.f32 %v6183, %v6195
        %v6204 = vadd.f32 %v6184, %v6195
        %v6205 = vadd.f32 %v6185, %v6195
        %v6206 = vadd.f32 %v6186, %v6195
        %v6207 = vadd.f32 %v6187, %v6195
        %v6208 = vadd.f32 %v6188, %v6195
        %v6209 = vadd.f32 %v6189, %v6195
        %v6210 = vadd.f32 %v6190, %v6195
        %v6211 = vadd.f32 %v6191, %v6195
        %v6212 = vadd.f32 %v6192, %v6195
        %v6213 = vld [vmem:[%s340] sm:$0xff]
        %v6214 = vld [vmem:[%s340 + $0x8] sm:$0xff]
        %v6215 = vld [vmem:[%s340 + $0x10] sm:$0xff]
        %v6216 = vld [vmem:[%s340 + $0x18] sm:$0xff]
        %v6217 = vld [vmem:[%s340 + $0x20] sm:$0xff]
        %v6218 = vld [vmem:[%s340 + $0x28] sm:$0xff]
        %v6219 = vld [vmem:[%s340 + $0x30] sm:$0xff]
        %v6220 = vld [vmem:[%s340 + $0x38] sm:$0xff]
        %v6221 = vld [vmem:[%s340 + $0x40] sm:$0xff]
        %v6222 = vld [vmem:[%s340 + $0x48] sm:$0xff]
        %v6223 = vld [vmem:[%s340 + $0x50] sm:$0xff]
        %v6224 = vld [vmem:[%s340 + $0x58] sm:$0xff]
        %v6225 = vld [vmem:[%s340 + $0x60] sm:$0xff]
        %v6226 = vld [vmem:[%s340 + $0x68] sm:$0xff]
        %v6227 = vld [vmem:[%s340 + $0x70] sm:$0xff]
        %v6228 = vld [vmem:[%s340 + $0x78] sm:$0xff]
        %v6229 = vadd.f32 %v6197, %v6213
        %v6230 = vadd.f32 %v6198, %v6214
        %v6231 = vadd.f32 %v6199, %v6215
        %v6232 = vadd.f32 %v6200, %v6216
        %v6233 = vadd.f32 %v6201, %v6217
        %v6234 = vadd.f32 %v6202, %v6218
        %v6235 = vadd.f32 %v6203, %v6219
        %v6236 = vadd.f32 %v6204, %v6220
        %v6237 = vadd.f32 %v6205, %v6221
        %v6238 = vadd.f32 %v6206, %v6222
        %v6239 = vadd.f32 %v6207, %v6223
        %v6240 = vadd.f32 %v6208, %v6224
        %v6241 = vadd.f32 %v6209, %v6225
        %v6242 = vadd.f32 %v6210, %v6226
        %v6243 = vadd.f32 %v6211, %v6227
        %v6244 = vadd.f32 %v6212, %v6228
        %v6245 = vmax.f32 %v6229, 0.0
        %v6246 = vmax.f32 %v6230, 0.0
        %v6247 = vmax.f32 %v6231, 0.0
        %v6248 = vmax.f32 %v6232, 0.0
        %v6249 = vmax.f32 %v6233, 0.0
        %v6250 = vmax.f32 %v6234, 0.0
        %v6251 = vmax.f32 %v6235, 0.0
        %v6252 = vmax.f32 %v6236, 0.0
        %v6253 = vmax.f32 %v6237, 0.0
        %v6254 = vmax.f32 %v6238, 0.0
        %v6255 = vmax.f32 %v6239, 0.0
        %v6256 = vmax.f32 %v6240, 0.0
        %v6257 = vmax.f32 %v6241, 0.0
        %v6258 = vmax.f32 %v6242, 0.0
        %v6259 = vmax.f32 %v6243, 0.0
        %v6260 = vmax.f32 %v6244, 0.0
        %6261 = vst [vmem:[%s398] sm:$0xff] %v6245
        %6262 = vst [vmem:[%s398 + $0x8] sm:$0xff] %v6246
        %6263 = vst [vmem:[%s398 + $0x10] sm:$0xff] %v6247
        %6264 = vst [vmem:[%s398 + $0x18] sm:$0xff] %v6248
        %6265 = vst [vmem:[%s398 + $0x20] sm:$0xff] %v6249
        %6266 = vst [vmem:[%s398 + $0x28] sm:$0xff] %v6250
        %6267 = vst [vmem:[%s398 + $0x30] sm:$0xff] %v6251
        %6268 = vst [vmem:[%s398 + $0x38] sm:$0xff] %v6252
        %6269 = vst [vmem:[%s398 + $0x40] sm:$0xff] %v6253
        %6270 = vst [vmem:[%s398 + $0x48] sm:$0xff] %v6254
        %6271 = vst [vmem:[%s398 + $0x50] sm:$0xff] %v6255
        %6272 = vst [vmem:[%s398 + $0x58] sm:$0xff] %v6256
        %6273 = vst [vmem:[%s398 + $0x60] sm:$0xff] %v6257
        %6274 = vst [vmem:[%s398 + $0x68] sm:$0xff] %v6258
        %6275 = vst [vmem:[%s398 + $0x70] sm:$0xff] %v6259
        %6276 = vst [vmem:[%s398 + $0x78] sm:$0xff] %v6260
        %s6277 = sand.u32 %s218, 1
        %s6278 = scalar_lea.sflag [#allocation6], %s6277
        %s6279 = sand.u32 %s218, 1
        %s6280 = smul.addr %s6279, 128
        %s6281 = scalar_lea.vmem [#allocation7], %s6280
        // Predicated region
        $region61: #{tpu_custom_call.1} parent=47 // pred_check
          %p6282 = pneg %p228
        $region62: #{tpu_custom_call.1} parent=47 // pred_check_branch
          %6284 = sbr.rel (%p6282) target = $region64
        $region63: #{tpu_custom_call.1} parent=47 // pred_region
          %s6285 = smul.u32 8, %s29
          %6287 = vsyncadd %s6278, 0
          %s6288 = smul.addr %s6285, 2
          %s6289 = smul.addr %s28, 32
          %s6290 = sadd.s32 %s6288, %s6289
          %s6291 = smul.addr %s6290, 8
          %s6292 = scalar_lea.hbm %s7, %s6291
          %s6293 = sshll.u32 %s6281, 4
          %s6294 = int_to_ptr.vmem [resolvable:$true] %s6293
          %s6295 = sshll.u32 %s6292, 4
          %s6296 = int_to_ptr.hbm [resolvable:$true] %s6295
          %6301 = dma.vmem_to_hbm [thread:$0]  %s6294, 2048, %s6296, %s6278, 128, 128, 8
        $region64: #{tpu_custom_call.1} parent=47 // pred_fallthru
          _
      $region48: #{tpu_custom_call.1} parent=5 // pred_fallthru
        _
      %p6302 = scmp.le.s32.totalorder 2, %s19
      // Predicated region
      $region65: #{tpu_custom_call.1} parent=5 // pred_check
        %p6303 = pneg %p6302
      $region66: #{tpu_custom_call.1} parent=5 // pred_check_branch
        %6305 = sbr.rel (%p6303) target = $region68
      $region67: #{tpu_custom_call.1} parent=5 // pred_region
        %s6306 = ssub.s32 %s19, 2
        // Predicated region
        $region69: #{tpu_custom_call.1} parent=67 // pred_check
          %p6307 = pneg %p234
        $region70: #{tpu_custom_call.1} parent=67 // pred_check_branch
          %6309 = sbr.rel (%p6307) target = $region72
        $region71: #{tpu_custom_call.1} parent=67 // pred_region
          %s6310 = sand.u32 %s219, 1
          %s6311 = scalar_lea.sflag [#allocation6], %s6310
          %s6312 = sand.u32 %s219, 1
          %s6313 = smul.addr %s6312, 128
          %s6314 = scalar_lea.vmem [#allocation7], %s6313
          %6316 = dma.done %s6311, 2048
        $region72: #{tpu_custom_call.1} parent=67 // pred_fallthru
          _
      $region68: #{tpu_custom_call.1} parent=5 // pred_fallthru
        _
    $region6: #{tpu_custom_call.1} parent=1 // loop_footer
      %s23 = sadd.s32 1, %s19
    $region7: #{tpu_custom_call.1} parent=1 // loop_footer_branch
      %18 = sbr.rel target = $region3
    $region8: #{tpu_custom_call.1} parent=1 // loop_exit
      _
    %6317 = vsyncpa [#allocation5], 1
    %s6318 = scalar_lea.sflag [#allocation5], 1
    %6319 = vsyncpa %s6318, 1
    %6320 = vsyncpa [#allocation6], 1
    %s6321 = scalar_lea.sflag [#allocation6], 1
    %6322 = vsyncpa %s6321, 1

</llo_original>
